<compile_context>
chip_gen: v5e
topology: v5e:2x2
jax: 0.10.0
libtpu: 0.0.40
codegen_flags: <defaults>
</compile_context>

<pallas_src>
import functools

import jax
import jax.numpy as jnp
from jax import lax
from jax.experimental import pallas as pl
from jax.experimental.pallas import tpu as pltpu


_VMEM_LIMIT = 64 * 1024 * 1024  # fits v5e/v6e (128 MiB) and v7x (64 MiB) VMEM


def _pick_tile_n(n, c):
    """Pixel-axis tile: big enough to hit HBM roofline, small enough for VMEM."""
    budget = 4 * 1024 * 1024  # bytes for one f32 (C, TN) tile buffer
    divisors = [t for t in (8192, 4096, 2048, 1024, 512, 256, 128) if n % t == 0]
    if not divisors:
        # TODO(synk): N with no 128-aligned divisor -> one block per batch
        # (correct, just unpipelined); padding would pollute the per-class
        # accumulators.
        return n
    for t in divisors:
        if c * t * 4 <= budget:
            return t
    return divisors[-1]


# ----------------------------------------------------------------------------
# Kernel 1: fused k-means (all Lloyd iterations in one pallas_call)
# ----------------------------------------------------------------------------
def _kmeans_kernel(x_ref, c0_ref, c_out_ref, cent_sc, cnt_sc, sum_sc):
    it = pl.program_id(1)
    nt = pl.program_id(2)
    n_nt = pl.num_programs(2)

    @pl.when(jnp.logical_and(it == 0, nt == 0))
    def _init_centroids():
        cent_sc[...] = c0_ref[...]

    @pl.when(nt == 0)
    def _zero_accumulators():
        cnt_sc[...] = jnp.zeros_like(cnt_sc)
        sum_sc[...] = jnp.zeros_like(sum_sc)

    x = x_ref[...]                                      # (C, TN) bf16 pixel tile
    c = cent_sc[...]                                    # (K, C)  f32 centroids
    k = c.shape[0]
    tn = x.shape[1]

    # ||x - c||^2 up to a per-pixel constant:  ||c||^2 - 2 c.x
    cn = jnp.sum(c * c, axis=1, keepdims=True)          # (K, 1)
    d = cn - 2.0 * jnp.dot(c.astype(jnp.bfloat16), x,
                           preferred_element_type=jnp.float32)   # (K, TN)

    kiota = lax.broadcasted_iota(jnp.int32, (k, tn), 0)
    dmin = jnp.min(d, axis=0, keepdims=True)                      # (1, TN)
    cls = jnp.min(jnp.where(d <= dmin, kiota, jnp.int32(k)),
                  axis=0, keepdims=True)                          # (1, TN)
    onehot = (kiota == cls).astype(jnp.float32)                   # (K, TN)

    cnt_sc[...] += jnp.sum(onehot, axis=1, keepdims=True)         # (K, 1)
    sum_sc[...] += lax.dot_general(                               # (K, C)
        onehot.astype(jnp.bfloat16), x,
        (((1,), (1,)), ((), ())),
        preferred_element_type=jnp.float32)

    @pl.when(nt == n_nt - 1)
    def _update_centroids():
        cnt = cnt_sc[...]
        new_c = sum_sc[...] / jnp.maximum(cnt, 1.0)
        cent_sc[...] = jnp.where(cnt > 0.0, new_c, cent_sc[...])
        c_out_ref[...] = cent_sc[...]


def kmeans_fit(x16, c_init, num_iters, tile_n):
    """x16 (B,C,N) bf16, c_init (B,K,C) f32 -> final centroids (B,K,C) f32."""
    B, C, N = x16.shape
    K = c_init.shape[1]
    nt = N // tile_n
    return pl.pallas_call(
        _kmeans_kernel,
        out_shape=jax.ShapeDtypeStruct((B, K, C), jnp.float32),
        grid=(B, num_iters, nt),
        in_specs=[
            pl.BlockSpec((None, C, tile_n), lambda b, i, n: (b, 0, n)),
            pl.BlockSpec((None, K, C), lambda b, i, n: (b, 0, 0)),
        ],
        out_specs=pl.BlockSpec((None, K, C), lambda b, i, n: (b, 0, 0)),
        scratch_shapes=[
            pltpu.VMEM((K, C), jnp.float32),   # centroids
            pltpu.VMEM((K, 1), jnp.float32),   # counts
            pltpu.VMEM((K, C), jnp.float32),   # pixel sums
        ],
        compiler_params=pltpu.CompilerParams(
            dimension_semantics=("parallel", "arbitrary", "arbitrary"),
            vmem_limit_bytes=_VMEM_LIMIT),
    )(x16, c_init)


# ----------------------------------------------------------------------------
# Kernel 2: final labels + per-class counts / sums / second moments (f32)
# ----------------------------------------------------------------------------
def _stats_kernel(x_ref, c_ref, cls_ref, cnt_ref, sum_ref, mom_ref):
    x = x_ref[...]                                      # (C, TN) f32
    c = c_ref[...]                                      # (K, C)  f32
    k = c.shape[0]
    tn = x.shape[1]

    cn = jnp.sum(c * c, axis=1, keepdims=True)          # (K, 1)
    d = cn - 2.0 * jnp.dot(c, x, preferred_element_type=jnp.float32)   # (K, TN)

    kiota = lax.broadcasted_iota(jnp.int32, (k, tn), 0)
    dmin = jnp.min(d, axis=0, keepdims=True)
    cls = jnp.min(jnp.where(d <= dmin, kiota, jnp.int32(k)),
                  axis=0, keepdims=True)                # (1, TN) i32
    cls_ref[...] = cls                                  # lane-dense labels
    onehot = (kiota == cls).astype(jnp.float32)         # (K, TN)

    @pl.when(pl.program_id(1) == 0)
    def _init():
        cnt_ref[...] = jnp.zeros_like(cnt_ref)
        sum_ref[...] = jnp.zeros_like(sum_ref)
        mom_ref[...] = jnp.zeros_like(mom_ref)

    cnt_ref[...] += jnp.sum(onehot, axis=1, keepdims=True)        # (K, 1)
    sum_ref[...] += lax.dot_general(                              # (K, C)
        onehot, x, (((1,), (1,)), ((), ())),
        preferred_element_type=jnp.float32)

    # Per-class second moments M_k = (onehot_k . x) x^T accumulated over the
    # N tiles into the resident (K, C, C) output (mask^2 == mask, so masking a
    # single operand is exact).
    for i in range(k):
        xm = x * onehot[i:i + 1, :]                               # (C, TN)
        mom_ref[i] += lax.dot_general(                            # (C, C)
            xm, x, (((1,), (1,)), ((), ())),
            preferred_element_type=jnp.float32)


def class_stats(x32, centroids, tile_n):
    """x32 (B,C,N) f32, centroids (B,K,C) f32 -> labels (B,1,N) i32,
    counts (B,K,1), sums (B,K,C), moments (B,K,C,C), all f32."""
    B, C, N = x32.shape
    K = centroids.shape[1]
    nt = N // tile_n
    return pl.pallas_call(
        _stats_kernel,
        out_shape=(jax.ShapeDtypeStruct((B, 1, N), jnp.int32),
                   jax.ShapeDtypeStruct((B, K, 1), jnp.float32),
                   jax.ShapeDtypeStruct((B, K, C), jnp.float32),
                   jax.ShapeDtypeStruct((B, K, C, C), jnp.float32)),
        grid=(B, nt),
        in_specs=[
            pl.BlockSpec((None, C, tile_n), lambda b, n: (b, 0, n)),
            pl.BlockSpec((None, K, C), lambda b, n: (b, 0, 0)),
        ],
        out_specs=(
            pl.BlockSpec((None, 1, tile_n), lambda b, n: (b, 0, n)),
            pl.BlockSpec((None, K, 1), lambda b, n: (b, 0, 0)),
            pl.BlockSpec((None, K, C), lambda b, n: (b, 0, 0)),
            pl.BlockSpec((None, K, C, C), lambda b, n: (b, 0, 0, 0)),
        ),
        compiler_params=pltpu.CompilerParams(
            dimension_semantics=("parallel", "arbitrary"),
            vmem_limit_bytes=_VMEM_LIMIT),
    )(x32, centroids)


# ----------------------------------------------------------------------------
# Kernel 3: per-pixel matched (spectral linear) filter
# ----------------------------------------------------------------------------
def _filter_kernel(x_ref, a_ref, b_ref, cls_ref, o_ref):
    x = x_ref[...]                                      # (C, TN) bf16
    a = a_ref[...].astype(jnp.bfloat16)                 # (K, C)  valid-folded filter
    bias = b_ref[...]                                   # (K, 1)  valid-folded bias
    cls = cls_ref[...]                                  # (1, TN) i32
    k = a.shape[0]
    tn = x.shape[1]

    scores = jnp.dot(a, x, preferred_element_type=jnp.float32)    # (K, TN)
    contrib = scores - bias                                       # (K, TN)
    onehot = (lax.broadcasted_iota(jnp.int32, (k, tn), 0) == cls).astype(jnp.float32)
    o_ref[...] = jnp.sum(onehot * contrib, axis=0, keepdims=True)  # (1, TN)


def matched_filter(x16, a_filt, bias, cls, tile_n):
    """x16 (B,C,N) bf16, a_filt (B,K,C) f32, bias (B,K,1) f32, cls (B,1,N) i32
    -> (B,1,N) f32."""
    B, C, N = x16.shape
    K = a_filt.shape[1]
    nt = N // tile_n
    return pl.pallas_call(
        _filter_kernel,
        out_shape=jax.ShapeDtypeStruct((B, 1, N), jnp.float32),
        grid=(B, nt),
        in_specs=[
            pl.BlockSpec((None, C, tile_n), lambda b, n: (b, 0, n)),
            pl.BlockSpec((None, K, C), lambda b, n: (b, 0, 0)),
            pl.BlockSpec((None, K, 1), lambda b, n: (b, 0, 0)),
            pl.BlockSpec((None, 1, tile_n), lambda b, n: (b, 0, n)),
        ],
        out_specs=pl.BlockSpec((None, 1, tile_n), lambda b, n: (b, 0, n)),
        compiler_params=pltpu.CompilerParams(
            dimension_semantics=("parallel", "parallel"),
            vmem_limit_bytes=_VMEM_LIMIT),
    )(x16, a_filt, bias, cls)


# ----------------------------------------------------------------------------
# Module wrapper mirroring the PyTorch SpectralLinearFilter
# ----------------------------------------------------------------------------
class SpectralLinearFilter:
    def __init__(self, num_classes: int = 20, min_class_size: int = 10000,
                 kmeans_iters: int = 10):
        self.num_classes = num_classes
        self.min_class_size = min_class_size
        self.kmeans_iters = kmeans_iters

    @functools.partial(jax.jit, static_argnums=0)
    def forward(self, hyperspectral_image, methane_pattern):
        # hyperspectral_image: (B, C, H, W) float32 (NCHW, like PyTorch)
        # methane_pattern:     (C,) float32
        B, C, H, W = hyperspectral_image.shape
        N = H * W
        K = self.num_classes
        tn = _pick_tile_n(N, C)

        # Native channels-major pixel layout (no HBM relayout pass).
        x32 = hyperspectral_image.reshape(B, C, N).astype(jnp.float32)
        x16 = x32.astype(jnp.bfloat16)           # bf16 stream for the hot loops
        p = jnp.asarray(methane_pattern, dtype=jnp.float32).reshape(C)

        # ---- k-means segmentation (deterministic init + fused Lloyd) ----
        # TODO(synk): sklearn KMeans (k-means++ init, random_state=0, tol-based
        # stop) has no clean Pallas/JAX equivalent; deterministic evenly-spaced
        # init + fixed-iteration Lloyd is used.
        init_idx = (jnp.arange(K) * N) // K
        c0 = jnp.transpose(x32[:, :, init_idx], (0, 2, 1))            # (B, K, C)
        if self.kmeans_iters > 0:
            centroids = kmeans_fit(x16, c0, self.kmeans_iters, tn)    # (B, K, C)
        else:
            centroids = c0

        # ---- labels + per-class filter parameters (single f32 stats pass) ----
        cls, counts, sums, moments = class_stats(x32, centroids, tn)
        counts = counts[:, :, 0]                                       # (B, K)
        safe = jnp.maximum(counts, 1.0)
        means = sums / safe[:, :, None]                                # (B, K, C)
        cov = (moments / safe[:, :, None, None]
               - means[:, :, :, None] * means[:, :, None, :])          # (B, K, C, C)
        eye = jnp.eye(C, dtype=jnp.float32)
        cov = cov + 1e-6 * eye
        valid = counts >= float(self.min_class_size)                   # (B, K)
        cov = jnp.where(valid[:, :, None, None], cov, eye)
        inv_cov = jnp.linalg.inv(cov)                                  # (B, K, C, C)
        q = jnp.einsum("bkcd,d->bkc", inv_cov, p)                      # (B, K, C)
        denom = jnp.sqrt(jnp.maximum(jnp.einsum("c,bkc->bk", p, q), 0.0))
        denom = jnp.maximum(denom, 1e-12)
        vmask = valid.astype(jnp.float32)
        a_filt = (q / denom[:, :, None]) * vmask[:, :, None]           # (B, K, C)
        bias = (jnp.einsum("bkc,bkc->bk", means, q) / denom) * vmask   # (B, K)

        out = matched_filter(x16, a_filt, bias[:, :, None], cls, tn)   # (B, 1, N)
        return out.reshape(B, H, W)

    def __call__(self, hyperspectral_image, methane_pattern):
        return self.forward(hyperspectral_image, methane_pattern)


if __name__ == "__main__":
    key = jax.random.PRNGKey(0)
    B, C, H, W = 2, 4, 16, 16
    k_img, _ = jax.random.split(key)
    x = jax.random.normal(k_img, (B, C, H, W), dtype=jnp.float32)
    # deterministic methane pattern (the module takes it as an input, not a weight)
    methane_pattern = jnp.linspace(0.1, 1.0, C, dtype=jnp.float32)

    # small, test-friendly hyperparameters (defaults 20 / 10000 are for full images)
    model = SpectralLinearFilter(num_classes=4, min_class_size=16)
    out = model(x, methane_pattern)
    out = jax.block_until_ready(out)

    assert out.shape == (B, H, W), out.shape
    assert out.dtype == jnp.float32
    assert bool(jnp.all(jnp.isfinite(out)))
    print("KERNEL_OK")
</pallas_src>

<mosaic_0001>
module attributes {stable_mosaic.version = 11 : i64} {
  func.func @_stats_kernel(%arg0: i32, %arg1: i32, %arg2: memref<1x4x256xf32, #tpu.memory_space<vmem>>, %arg3: memref<1x4x4xf32, #tpu.memory_space<vmem>>, %arg4: memref<1x1x256xi32, #tpu.memory_space<vmem>>, %arg5: memref<1x4x1xf32, #tpu.memory_space<vmem>>, %arg6: memref<1x4x4xf32, #tpu.memory_space<vmem>>, %arg7: memref<1x4x4x4xf32, #tpu.memory_space<vmem>>) attributes {dimension_semantics = [#tpu.dimension_semantics<parallel>, #tpu.dimension_semantics<arbitrary>], iteration_bounds = array<i64: 2, 1>, scalar_prefetch = 0 : i64, scratch_operands = 0 : i64, tpu.core_type = #tpu.core_type<tc>, window_params = [{transform_indices = @transform_0, window_bounds = array<i64: 1, 4, 256>}, {transform_indices = @transform_1, window_bounds = array<i64: 1, 4, 4>}, {transform_indices = @transform_2, window_bounds = array<i64: 1, 1, 256>}, {transform_indices = @transform_3, window_bounds = array<i64: 1, 4, 1>}, {transform_indices = @transform_4, window_bounds = array<i64: 1, 4, 4>}, {transform_indices = @transform_5, window_bounds = array<i64: 1, 4, 4, 4>}]} {
    %c0 = arith.constant 0 : index
    %c0_0 = arith.constant 0 : index
    %c0_1 = arith.constant 0 : index
    %0 = vector.load %arg2[%c0, %c0_0, %c0_1] : memref<1x4x256xf32, #tpu.memory_space<vmem>>, vector<1x4x256xf32>
    %1 = vector.shape_cast %0 : vector<1x4x256xf32> to vector<4x256xf32>
    %c0_2 = arith.constant 0 : index
    %c0_3 = arith.constant 0 : index
    %c0_4 = arith.constant 0 : index
    %2 = vector.load %arg3[%c0_2, %c0_3, %c0_4] : memref<1x4x4xf32, #tpu.memory_space<vmem>>, vector<1x4x4xf32>
    %3 = vector.shape_cast %2 : vector<1x4x4xf32> to vector<4x4xf32>
    %4 = arith.mulf %3, %3 : vector<4x4xf32>
    %cst = arith.constant dense<0.000000e+00> : vector<4xf32>
    %5 = vector.multi_reduction <add>, %4, %cst [1] : vector<4x4xf32> to vector<4xf32>
    %6 = vector.shape_cast %5 : vector<4xf32> to vector<4x1xf32>
    %cst_5 = arith.constant dense<0.000000e+00> : vector<4x256xf32>
    %7 = tpu.matmul %3, %1, %cst_5 {dimension_numbers = #tpu.dot_dimension_numbers<[1], [0], [0], [1], [0, 0, 1, 1], [], []>} : vector<4x4xf32>, vector<4x256xf32>, vector<4x256xf32> -> vector<4x256xf32>
    %cst_6 = arith.constant 2.000000e+00 : f32
    %8 = vector.broadcast %cst_6 : f32 to vector<4x256xf32>
    %9 = arith.mulf %8, %7 : vector<4x256xf32>
    %10 = vector.broadcast %6 : vector<4x1xf32> to vector<4x256xf32>
    %11 = arith.subf %10, %9 : vector<4x256xf32>
    %12 = tpu.iota {dimensions = array<i32: 0>} : vector<4x256xi32>
    %cst_7 = arith.constant dense<0x7F800000> : vector<256xf32>
    %13 = vector.multi_reduction <minimumf>, %11, %cst_7 [0] : vector<4x256xf32> to vector<256xf32>
    %14 = vector.shape_cast %13 : vector<256xf32> to vector<1x256xf32>
    %15 = vector.broadcast %14 : vector<1x256xf32> to vector<4x256xf32>
    %16 = arith.cmpf ole, %11, %15 : vector<4x256xf32>
    %c4_i32 = arith.constant 4 : i32
    %17 = vector.broadcast %c4_i32 : i32 to vector<4x256xi32>
    %18 = arith.select %16, %12, %17 : vector<4x256xi1>, vector<4x256xi32>
    %cst_8 = arith.constant dense<2147483647> : vector<256xi32>
    %19 = vector.multi_reduction <minsi>, %18, %cst_8 [0] : vector<4x256xi32> to vector<256xi32>
    %20 = vector.shape_cast %19 : vector<256xi32> to vector<1x256xi32>
    %c0_9 = arith.constant 0 : index
    %c0_10 = arith.constant 0 : index
    %c0_11 = arith.constant 0 : index
    %21 = vector.load %arg4[%c0_9, %c0_10, %c0_11] : memref<1x1x256xi32, #tpu.memory_space<vmem>>, vector<1x1x256xi32>
    %22 = vector.shape_cast %21 : vector<1x1x256xi32> to vector<1x256xi32>
    %23 = vector.shape_cast %20 : vector<1x256xi32> to vector<1x1x256xi32>
    tpu.vector_store %arg4[%c0_9, %c0_10, %c0_11], %23 {strides = array<i32>} : memref<1x1x256xi32, #tpu.memory_space<vmem>>, vector<1x1x256xi32>,
    %24 = vector.broadcast %20 : vector<1x256xi32> to vector<4x256xi32>
    %25 = arith.cmpi eq, %12, %24 : vector<4x256xi32>
    %26 = arith.extui %25 : vector<4x256xi1> to vector<4x256xi32>
    %27 = arith.sitofp %26 : vector<4x256xi32> to vector<4x256xf32>
    %c0_i32 = arith.constant 0 : i32
    %28 = arith.cmpi eq, %arg1, %c0_i32 : i32
    %29 = arith.extui %28 : i1 to i32
    %c0_i32_12 = arith.constant 0 : i32
    %30 = arith.cmpi ne, %29, %c0_i32_12 : i32
    scf.if %30 {
      %cst_60 = arith.constant 0.000000e+00 : f32
      %86 = vector.broadcast %cst_60 : f32 to vector<4x1xf32>
      %c0_61 = arith.constant 0 : index
      %c0_62 = arith.constant 0 : index
      %c0_63 = arith.constant 0 : index
      %87 = vector.load %arg5[%c0_61, %c0_62, %c0_63] : memref<1x4x1xf32, #tpu.memory_space<vmem>>, vector<1x4x1xf32>
      %88 = vector.shape_cast %87 : vector<1x4x1xf32> to vector<4x1xf32>
      %89 = vector.shape_cast %86 : vector<4x1xf32> to vector<1x4x1xf32>
      tpu.vector_store %arg5[%c0_61, %c0_62, %c0_63], %89 {strides = array<i32>} : memref<1x4x1xf32, #tpu.memory_space<vmem>>, vector<1x4x1xf32>,
      %cst_64 = arith.constant 0.000000e+00 : f32
      %90 = vector.broadcast %cst_64 : f32 to vector<4x4xf32>
      %c0_65 = arith.constant 0 : index
      %c0_66 = arith.constant 0 : index
      %c0_67 = arith.constant 0 : index
      %91 = vector.load %arg6[%c0_65, %c0_66, %c0_67] : memref<1x4x4xf32, #tpu.memory_space<vmem>>, vector<1x4x4xf32>
      %92 = vector.shape_cast %91 : vector<1x4x4xf32> to vector<4x4xf32>
      %93 = vector.shape_cast %90 : vector<4x4xf32> to vector<1x4x4xf32>
      tpu.vector_store %arg6[%c0_65, %c0_66, %c0_67], %93 {strides = array<i32>} : memref<1x4x4xf32, #tpu.memory_space<vmem>>, vector<1x4x4xf32>,
      %cst_68 = arith.constant 0.000000e+00 : f32
      %94 = vector.broadcast %cst_68 : f32 to vector<4x4x4xf32>
      %c0_69 = arith.constant 0 : index
      %c0_70 = arith.constant 0 : index
      %c0_71 = arith.constant 0 : index
      %c0_72 = arith.constant 0 : index
      %95 = vector.load %arg7[%c0_69, %c0_70, %c0_71, %c0_72] : memref<1x4x4x4xf32, #tpu.memory_space<vmem>>, vector<1x4x4x4xf32>
      %96 = vector.shape_cast %95 : vector<1x4x4x4xf32> to vector<4x4x4xf32>
      %97 = vector.shape_cast %94 : vector<4x4x4xf32> to vector<1x4x4x4xf32>
      tpu.vector_store %arg7[%c0_69, %c0_70, %c0_71, %c0_72], %97 {strides = array<i32>} : memref<1x4x4x4xf32, #tpu.memory_space<vmem>>, vector<1x4x4x4xf32>,
    } else {
    }
    %c0_13 = arith.constant 0 : index
    %c0_14 = arith.constant 0 : index
    %c0_15 = arith.constant 0 : index
    %31 = vector.load %arg5[%c0_13, %c0_14, %c0_15] : memref<1x4x1xf32, #tpu.memory_space<vmem>>, vector<1x4x1xf32>
    %32 = vector.shape_cast %31 : vector<1x4x1xf32> to vector<4x1xf32>
    %cst_16 = arith.constant dense<0.000000e+00> : vector<4xf32>
    %33 = vector.multi_reduction <add>, %27, %cst_16 [1] : vector<4x256xf32> to vector<4xf32>
    %34 = vector.shape_cast %33 : vector<4xf32> to vector<4x1xf32>
    %35 = arith.addf %32, %34 : vector<4x1xf32>
    %c0_17 = arith.constant 0 : index
    %c0_18 = arith.constant 0 : index
    %c0_19 = arith.constant 0 : index
    %36 = vector.load %arg5[%c0_17, %c0_18, %c0_19] : memref<1x4x1xf32, #tpu.memory_space<vmem>>, vector<1x4x1xf32>
    %37 = vector.shape_cast %36 : vector<1x4x1xf32> to vector<4x1xf32>
    %38 = vector.shape_cast %35 : vector<4x1xf32> to vector<1x4x1xf32>
    tpu.vector_store %arg5[%c0_17, %c0_18, %c0_19], %38 {strides = array<i32>} : memref<1x4x1xf32, #tpu.memory_space<vmem>>, vector<1x4x1xf32>,
    %c0_20 = arith.constant 0 : index
    %c0_21 = arith.constant 0 : index
    %c0_22 = arith.constant 0 : index
    %39 = vector.load %arg6[%c0_20, %c0_21, %c0_22] : memref<1x4x4xf32, #tpu.memory_space<vmem>>, vector<1x4x4xf32>
    %40 = vector.shape_cast %39 : vector<1x4x4xf32> to vector<4x4xf32>
    %cst_23 = arith.constant dense<0.000000e+00> : vector<4x4xf32>
    %41 = tpu.matmul %27, %1, %cst_23 {dimension_numbers = #tpu.dot_dimension_numbers<[1], [1], [0], [0], [0, 0, 1, 0], [], []>} : vector<4x256xf32>, vector<4x256xf32>, vector<4x4xf32> -> vector<4x4xf32>
    %42 = arith.addf %40, %41 : vector<4x4xf32>
    %c0_24 = arith.constant 0 : index
    %c0_25 = arith.constant 0 : index
    %c0_26 = arith.constant 0 : index
    %43 = vector.load %arg6[%c0_24, %c0_25, %c0_26] : memref<1x4x4xf32, #tpu.memory_space<vmem>>, vector<1x4x4xf32>
    %44 = vector.shape_cast %43 : vector<1x4x4xf32> to vector<4x4xf32>
    %45 = vector.shape_cast %42 : vector<4x4xf32> to vector<1x4x4xf32>
    tpu.vector_store %arg6[%c0_24, %c0_25, %c0_26], %45 {strides = array<i32>} : memref<1x4x4xf32, #tpu.memory_space<vmem>>, vector<1x4x4xf32>,
    %46 = vector.extract_strided_slice %27 {offsets = [0, 0], sizes = [1, 256], strides = [1, 1]} : vector<4x256xf32> to vector<1x256xf32>
    %47 = vector.broadcast %46 : vector<1x256xf32> to vector<4x256xf32>
    %48 = arith.mulf %1, %47 : vector<4x256xf32>
    %c0_27 = arith.constant 0 : index
    %c0_28 = arith.constant 0 : index
    %c0_29 = arith.constant 0 : index
    %c0_30 = arith.constant 0 : index
    %49 = vector.load %arg7[%c0_27, %c0_28, %c0_29, %c0_30] : memref<1x4x4x4xf32, #tpu.memory_space<vmem>>, vector<1x1x4x4xf32>
    %50 = vector.shape_cast %49 : vector<1x1x4x4xf32> to vector<4x4xf32>
    %cst_31 = arith.constant dense<0.000000e+00> : vector<4x4xf32>
    %51 = tpu.matmul %48, %1, %cst_31 {dimension_numbers = #tpu.dot_dimension_numbers<[1], [1], [0], [0], [0, 0, 1, 0], [], []>} : vector<4x256xf32>, vector<4x256xf32>, vector<4x4xf32> -> vector<4x4xf32>
    %52 = arith.addf %50, %51 : vector<4x4xf32>
    %c0_32 = arith.constant 0 : index
    %c0_33 = arith.constant 0 : index
    %c0_34 = arith.constant 0 : index
    %c0_35 = arith.constant 0 : index
    %53 = vector.load %arg7[%c0_32, %c0_33, %c0_34, %c0_35] : memref<1x4x4x4xf32, #tpu.memory_space<vmem>>, vector<1x1x4x4xf32>
    %54 = vector.shape_cast %53 : vector<1x1x4x4xf32> to vector<4x4xf32>
    %55 = vector.shape_cast %52 : vector<4x4xf32> to vector<1x1x4x4xf32>
    tpu.vector_store %arg7[%c0_32, %c0_33, %c0_34, %c0_35], %55 {strides = array<i32>} : memref<1x4x4x4xf32, #tpu.memory_space<vmem>>, vector<1x1x4x4xf32>,
    %56 = vector.extract_strided_slice %27 {offsets = [1, 0], sizes = [1, 256], strides = [1, 1]} : vector<4x256xf32> to vector<1x256xf32>
    %57 = vector.broadcast %56 : vector<1x256xf32> to vector<4x256xf32>
    %58 = arith.mulf %1, %57 : vector<4x256xf32>
    %c0_36 = arith.constant 0 : index
    %c1 = arith.constant 1 : index
    %c0_37 = arith.constant 0 : index
    %c0_38 = arith.constant 0 : index
    %59 = vector.load %arg7[%c0_36, %c1, %c0_37, %c0_38] : memref<1x4x4x4xf32, #tpu.memory_space<vmem>>, vector<1x1x4x4xf32>
    %60 = vector.shape_cast %59 : vector<1x1x4x4xf32> to vector<4x4xf32>
    %cst_39 = arith.constant dense<0.000000e+00> : vector<4x4xf32>
    %61 = tpu.matmul %58, %1, %cst_39 {dimension_numbers = #tpu.dot_dimension_numbers<[1], [1], [0], [0], [0, 0, 1, 0], [], []>} : vector<4x256xf32>, vector<4x256xf32>, vector<4x4xf32> -> vector<4x4xf32>
    %62 = arith.addf %60, %61 : vector<4x4xf32>
    %c0_40 = arith.constant 0 : index
    %c1_41 = arith.constant 1 : index
    %c0_42 = arith.constant 0 : index
    %c0_43 = arith.constant 0 : index
    %63 = vector.load %arg7[%c0_40, %c1_41, %c0_42, %c0_43] : memref<1x4x4x4xf32, #tpu.memory_space<vmem>>, vector<1x1x4x4xf32>
    %64 = vector.shape_cast %63 : vector<1x1x4x4xf32> to vector<4x4xf32>
    %65 = vector.shape_cast %62 : vector<4x4xf32> to vector<1x1x4x4xf32>
    tpu.vector_store %arg7[%c0_40, %c1_41, %c0_42, %c0_43], %65 {strides = array<i32>} : memref<1x4x4x4xf32, #tpu.memory_space<vmem>>, vector<1x1x4x4xf32>,
    %66 = vector.extract_strided_slice %27 {offsets = [2, 0], sizes = [1, 256], strides = [1, 1]} : vector<4x256xf32> to vector<1x256xf32>
    %67 = vector.broadcast %66 : vector<1x256xf32> to vector<4x256xf32>
    %68 = arith.mulf %1, %67 : vector<4x256xf32>
    %c0_44 = arith.constant 0 : index
    %c2 = arith.constant 2 : index
    %c0_45 = arith.constant 0 : index
    %c0_46 = arith.constant 0 : index
    %69 = vector.load %arg7[%c0_44, %c2, %c0_45, %c0_46] : memref<1x4x4x4xf32, #tpu.memory_space<vmem>>, vector<1x1x4x4xf32>
    %70 = vector.shape_cast %69 : vector<1x1x4x4xf32> to vector<4x4xf32>
    %cst_47 = arith.constant dense<0.000000e+00> : vector<4x4xf32>
    %71 = tpu.matmul %68, %1, %cst_47 {dimension_numbers = #tpu.dot_dimension_numbers<[1], [1], [0], [0], [0, 0, 1, 0], [], []>} : vector<4x256xf32>, vector<4x256xf32>, vector<4x4xf32> -> vector<4x4xf32>
    %72 = arith.addf %70, %71 : vector<4x4xf32>
    %c0_48 = arith.constant 0 : index
    %c2_49 = arith.constant 2 : index
    %c0_50 = arith.constant 0 : index
    %c0_51 = arith.constant 0 : index
    %73 = vector.load %arg7[%c0_48, %c2_49, %c0_50, %c0_51] : memref<1x4x4x4xf32, #tpu.memory_space<vmem>>, vector<1x1x4x4xf32>
    %74 = vector.shape_cast %73 : vector<1x1x4x4xf32> to vector<4x4xf32>
    %75 = vector.shape_cast %72 : vector<4x4xf32> to vector<1x1x4x4xf32>
    tpu.vector_store %arg7[%c0_48, %c2_49, %c0_50, %c0_51], %75 {strides = array<i32>} : memref<1x4x4x4xf32, #tpu.memory_space<vmem>>, vector<1x1x4x4xf32>,
    %76 = vector.extract_strided_slice %27 {offsets = [3, 0], sizes = [1, 256], strides = [1, 1]} : vector<4x256xf32> to vector<1x256xf32>
    %77 = vector.broadcast %76 : vector<1x256xf32> to vector<4x256xf32>
    %78 = arith.mulf %1, %77 : vector<4x256xf32>
    %c0_52 = arith.constant 0 : index
    %c3 = arith.constant 3 : index
    %c0_53 = arith.constant 0 : index
    %c0_54 = arith.constant 0 : index
    %79 = vector.load %arg7[%c0_52, %c3, %c0_53, %c0_54] : memref<1x4x4x4xf32, #tpu.memory_space<vmem>>, vector<1x1x4x4xf32>
    %80 = vector.shape_cast %79 : vector<1x1x4x4xf32> to vector<4x4xf32>
    %cst_55 = arith.constant dense<0.000000e+00> : vector<4x4xf32>
    %81 = tpu.matmul %78, %1, %cst_55 {dimension_numbers = #tpu.dot_dimension_numbers<[1], [1], [0], [0], [0, 0, 1, 0], [], []>} : vector<4x256xf32>, vector<4x256xf32>, vector<4x4xf32> -> vector<4x4xf32>
    %82 = arith.addf %80, %81 : vector<4x4xf32>
    %c0_56 = arith.constant 0 : index
    %c3_57 = arith.constant 3 : index
    %c0_58 = arith.constant 0 : index
    %c0_59 = arith.constant 0 : index
    %83 = vector.load %arg7[%c0_56, %c3_57, %c0_58, %c0_59] : memref<1x4x4x4xf32, #tpu.memory_space<vmem>>, vector<1x1x4x4xf32>
    %84 = vector.shape_cast %83 : vector<1x1x4x4xf32> to vector<4x4xf32>
    %85 = vector.shape_cast %82 : vector<4x4xf32> to vector<1x1x4x4xf32>
    tpu.vector_store %arg7[%c0_56, %c3_57, %c0_58, %c0_59], %85 {strides = array<i32>} : memref<1x4x4x4xf32, #tpu.memory_space<vmem>>, vector<1x1x4x4xf32>,
    return
  }
  func.func @transform_0(%arg0: i32, %arg1: i32) -> (i32, i32, i32) {
    %c0_i32 = arith.constant 0 : i32
    %c0_i32_0 = arith.constant 0 : i32
    return %arg0, %c0_i32, %arg1 : i32, i32, i32
  }
  func.func @transform_1(%arg0: i32, %arg1: i32) -> (i32, i32, i32) {
    %c0_i32 = arith.constant 0 : i32
    %c0_i32_0 = arith.constant 0 : i32
    %c0_i32_1 = arith.constant 0 : i32
    return %arg0, %c0_i32, %c0_i32_0 : i32, i32, i32
  }
  func.func @transform_2(%arg0: i32, %arg1: i32) -> (i32, i32, i32) {
    %c0_i32 = arith.constant 0 : i32
    %c0_i32_0 = arith.constant 0 : i32
    return %arg0, %c0_i32, %arg1 : i32, i32, i32
  }
  func.func @transform_3(%arg0: i32, %arg1: i32) -> (i32, i32, i32) {
    %c0_i32 = arith.constant 0 : i32
    %c0_i32_0 = arith.constant 0 : i32
    %c0_i32_1 = arith.constant 0 : i32
    return %arg0, %c0_i32, %c0_i32_0 : i32, i32, i32
  }
  func.func @transform_4(%arg0: i32, %arg1: i32) -> (i32, i32, i32) {
    %c0_i32 = arith.constant 0 : i32
    %c0_i32_0 = arith.constant 0 : i32
    %c0_i32_1 = arith.constant 0 : i32
    return %arg0, %c0_i32, %c0_i32_0 : i32, i32, i32
  }
  func.func @transform_5(%arg0: i32, %arg1: i32) -> (i32, i32, i32, i32) {
    %c0_i32 = arith.constant 0 : i32
    %c0_i32_0 = arith.constant 0 : i32
    %c0_i32_1 = arith.constant 0 : i32
    %c0_i32_2 = arith.constant 0 : i32
    return %arg0, %c0_i32, %c0_i32_0, %c0_i32_1 : i32, i32, i32, i32
  }
}

module attributes {stable_mosaic.version = 11 : i64} {
  func.func @_kmeans_kernel(%arg0: i32, %arg1: i32, %arg2: i32, %arg3: memref<1x4x256xbf16, #tpu.memory_space<vmem>>, %arg4: memref<1x4x4xf32, #tpu.memory_space<vmem>>, %arg5: memref<1x4x4xf32, #tpu.memory_space<vmem>>, %arg6: memref<4x4xf32, #tpu.memory_space<vmem>>, %arg7: memref<4x1xf32, #tpu.memory_space<vmem>>, %arg8: memref<4x4xf32, #tpu.memory_space<vmem>>) attributes {dimension_semantics = [#tpu.dimension_semantics<parallel>, #tpu.dimension_semantics<arbitrary>, #tpu.dimension_semantics<arbitrary>], iteration_bounds = array<i64: 2, 10, 1>, scalar_prefetch = 0 : i64, scratch_operands = 3 : i64, tpu.core_type = #tpu.core_type<tc>, window_params = [{transform_indices = @transform_0, window_bounds = array<i64: 1, 4, 256>}, {transform_indices = @transform_1, window_bounds = array<i64: 1, 4, 4>}, {transform_indices = @transform_2, window_bounds = array<i64: 1, 4, 4>}]} {
    %c0_i32 = arith.constant 0 : i32
    %0 = arith.cmpi eq, %arg1, %c0_i32 : i32
    %c0_i32_0 = arith.constant 0 : i32
    %1 = arith.cmpi eq, %arg2, %c0_i32_0 : i32
    %2 = arith.andi %0, %1 : i1
    %3 = arith.extui %2 : i1 to i32
    %c0_i32_1 = arith.constant 0 : i32
    %4 = arith.cmpi ne, %3, %c0_i32_1 : i32
    scf.if %4 {
      %c0_24 = arith.constant 0 : index
      %c0_25 = arith.constant 0 : index
      %c0_26 = arith.constant 0 : index
      %46 = vector.load %arg4[%c0_24, %c0_25, %c0_26] : memref<1x4x4xf32, #tpu.memory_space<vmem>>, vector<1x4x4xf32>
      %47 = vector.shape_cast %46 : vector<1x4x4xf32> to vector<4x4xf32>
      %c0_27 = arith.constant 0 : index
      %c0_28 = arith.constant 0 : index
      %48 = vector.load %arg6[%c0_27, %c0_28] : memref<4x4xf32, #tpu.memory_space<vmem>>, vector<4x4xf32>
      tpu.vector_store %arg6[%c0_27, %c0_28], %47 {strides = array<i32>} : memref<4x4xf32, #tpu.memory_space<vmem>>, vector<4x4xf32>,
    } else {
    }
    %c0_i32_2 = arith.constant 0 : i32
    %5 = arith.cmpi eq, %arg2, %c0_i32_2 : i32
    %6 = arith.extui %5 : i1 to i32
    %c0_i32_3 = arith.constant 0 : i32
    %7 = arith.cmpi ne, %6, %c0_i32_3 : i32
    scf.if %7 {
      %cst_24 = arith.constant 0.000000e+00 : f32
      %46 = vector.broadcast %cst_24 : f32 to vector<4x1xf32>
      %c0_25 = arith.constant 0 : index
      %c0_26 = arith.constant 0 : index
      %47 = vector.load %arg7[%c0_25, %c0_26] : memref<4x1xf32, #tpu.memory_space<vmem>>, vector<4x1xf32>
      tpu.vector_store %arg7[%c0_25, %c0_26], %46 {strides = array<i32>} : memref<4x1xf32, #tpu.memory_space<vmem>>, vector<4x1xf32>,
      %cst_27 = arith.constant 0.000000e+00 : f32
      %48 = vector.broadcast %cst_27 : f32 to vector<4x4xf32>
      %c0_28 = arith.constant 0 : index
      %c0_29 = arith.constant 0 : index
      %49 = vector.load %arg8[%c0_28, %c0_29] : memref<4x4xf32, #tpu.memory_space<vmem>>, vector<4x4xf32>
      tpu.vector_store %arg8[%c0_28, %c0_29], %48 {strides = array<i32>} : memref<4x4xf32, #tpu.memory_space<vmem>>, vector<4x4xf32>,
    } else {
    }
    %c0 = arith.constant 0 : index
    %c0_4 = arith.constant 0 : index
    %c0_5 = arith.constant 0 : index
    %8 = vector.load %arg3[%c0, %c0_4, %c0_5] : memref<1x4x256xbf16, #tpu.memory_space<vmem>>, vector<1x4x256xbf16>
    %9 = vector.shape_cast %8 : vector<1x4x256xbf16> to vector<4x256xbf16>
    %c0_6 = arith.constant 0 : index
    %c0_7 = arith.constant 0 : index
    %10 = vector.load %arg6[%c0_6, %c0_7] : memref<4x4xf32, #tpu.memory_space<vmem>>, vector<4x4xf32>
    %11 = arith.mulf %10, %10 : vector<4x4xf32>
    %cst = arith.constant dense<0.000000e+00> : vector<4xf32>
    %12 = vector.multi_reduction <add>, %11, %cst [1] : vector<4x4xf32> to vector<4xf32>
    %13 = vector.shape_cast %12 : vector<4xf32> to vector<4x1xf32>
    %14 = arith.truncf %10 : vector<4x4xf32> to vector<4x4xbf16>
    %cst_8 = arith.constant dense<0.000000e+00> : vector<4x256xf32>
    %15 = tpu.matmul %14, %9, %cst_8 {dimension_numbers = #tpu.dot_dimension_numbers<[1], [0], [0], [1], [0, 0, 1, 1], [], []>} : vector<4x4xbf16>, vector<4x256xbf16>, vector<4x256xf32> -> vector<4x256xf32>
    %cst_9 = arith.constant 2.000000e+00 : f32
    %16 = vector.broadcast %cst_9 : f32 to vector<4x256xf32>
    %17 = arith.mulf %16, %15 : vector<4x256xf32>
    %18 = vector.broadcast %13 : vector<4x1xf32> to vector<4x256xf32>
    %19 = arith.subf %18, %17 : vector<4x256xf32>
    %20 = tpu.iota {dimensions = array<i32: 0>} : vector<4x256xi32>
    %cst_10 = arith.constant dense<0x7F800000> : vector<256xf32>
    %21 = vector.multi_reduction <minimumf>, %19, %cst_10 [0] : vector<4x256xf32> to vector<256xf32>
    %22 = vector.shape_cast %21 : vector<256xf32> to vector<1x256xf32>
    %23 = vector.broadcast %22 : vector<1x256xf32> to vector<4x256xf32>
    %24 = arith.cmpf ole, %19, %23 : vector<4x256xf32>
    %c4_i32 = arith.constant 4 : i32
    %25 = vector.broadcast %c4_i32 : i32 to vector<4x256xi32>
    %26 = arith.select %24, %20, %25 : vector<4x256xi1>, vector<4x256xi32>
    %cst_11 = arith.constant dense<2147483647> : vector<256xi32>
    %27 = vector.multi_reduction <minsi>, %26, %cst_11 [0] : vector<4x256xi32> to vector<256xi32>
    %28 = vector.shape_cast %27 : vector<256xi32> to vector<1x256xi32>
    %29 = vector.broadcast %28 : vector<1x256xi32> to vector<4x256xi32>
    %30 = arith.cmpi eq, %20, %29 : vector<4x256xi32>
    %31 = arith.extui %30 : vector<4x256xi1> to vector<4x256xi32>
    %32 = arith.sitofp %31 : vector<4x256xi32> to vector<4x256xf32>
    %c0_12 = arith.constant 0 : index
    %c0_13 = arith.constant 0 : index
    %33 = vector.load %arg7[%c0_12, %c0_13] : memref<4x1xf32, #tpu.memory_space<vmem>>, vector<4x1xf32>
    %cst_14 = arith.constant dense<0.000000e+00> : vector<4xf32>
    %34 = vector.multi_reduction <add>, %32, %cst_14 [1] : vector<4x256xf32> to vector<4xf32>
    %35 = vector.shape_cast %34 : vector<4xf32> to vector<4x1xf32>
    %36 = arith.addf %33, %35 : vector<4x1xf32>
    %c0_15 = arith.constant 0 : index
    %c0_16 = arith.constant 0 : index
    %37 = vector.load %arg7[%c0_15, %c0_16] : memref<4x1xf32, #tpu.memory_space<vmem>>, vector<4x1xf32>
    tpu.vector_store %arg7[%c0_15, %c0_16], %36 {strides = array<i32>} : memref<4x1xf32, #tpu.memory_space<vmem>>, vector<4x1xf32>,
    %c0_17 = arith.constant 0 : index
    %c0_18 = arith.constant 0 : index
    %38 = vector.load %arg8[%c0_17, %c0_18] : memref<4x4xf32, #tpu.memory_space<vmem>>, vector<4x4xf32>
    %39 = arith.truncf %32 : vector<4x256xf32> to vector<4x256xbf16>
    %cst_19 = arith.constant dense<0.000000e+00> : vector<4x4xf32>
    %40 = tpu.matmul %39, %9, %cst_19 {dimension_numbers = #tpu.dot_dimension_numbers<[1], [1], [0], [0], [0, 0, 1, 0], [], []>} : vector<4x256xbf16>, vector<4x256xbf16>, vector<4x4xf32> -> vector<4x4xf32>
    %41 = arith.addf %38, %40 : vector<4x4xf32>
    %c0_20 = arith.constant 0 : index
    %c0_21 = arith.constant 0 : index
    %42 = vector.load %arg8[%c0_20, %c0_21] : memref<4x4xf32, #tpu.memory_space<vmem>>, vector<4x4xf32>
    tpu.vector_store %arg8[%c0_20, %c0_21], %41 {strides = array<i32>} : memref<4x4xf32, #tpu.memory_space<vmem>>, vector<4x4xf32>,
    %c0_i32_22 = arith.constant 0 : i32
    %43 = arith.cmpi eq, %arg2, %c0_i32_22 : i32
    %44 = arith.extui %43 : i1 to i32
    %c0_i32_23 = arith.constant 0 : i32
    %45 = arith.cmpi ne, %44, %c0_i32_23 : i32
    scf.if %45 {
      %c0_24 = arith.constant 0 : index
      %c0_25 = arith.constant 0 : index
      %46 = vector.load %arg7[%c0_24, %c0_25] : memref<4x1xf32, #tpu.memory_space<vmem>>, vector<4x1xf32>
      %c0_26 = arith.constant 0 : index
      %c0_27 = arith.constant 0 : index
      %47 = vector.load %arg8[%c0_26, %c0_27] : memref<4x4xf32, #tpu.memory_space<vmem>>, vector<4x4xf32>
      %cst_28 = arith.constant 1.000000e+00 : f32
      %48 = vector.broadcast %cst_28 : f32 to vector<4x1xf32>
      %49 = arith.maximumf %46, %48 : vector<4x1xf32>
      %50 = vector.broadcast %49 : vector<4x1xf32> to vector<4x4xf32>
      %51 = arith.divf %47, %50 : vector<4x4xf32>
      %cst_29 = arith.constant 0.000000e+00 : f32
      %52 = vector.broadcast %cst_29 : f32 to vector<4x1xf32>
      %53 = arith.cmpf ogt, %46, %52 : vector<4x1xf32>
      %c0_30 = arith.constant 0 : index
      %c0_31 = arith.constant 0 : index
      %54 = vector.load %arg6[%c0_30, %c0_31] : memref<4x4xf32, #tpu.memory_space<vmem>>, vector<4x4xf32>
      %55 = vector.shape_cast %53 : vector<4x1xi1> to vector<4x1xi1>
      %56 = vector.broadcast %55 : vector<4x1xi1> to vector<4x4xi1>
      %57 = arith.select %56, %51, %54 : vector<4x4xi1>, vector<4x4xf32>
      %c0_32 = arith.constant 0 : index
      %c0_33 = arith.constant 0 : index
      %58 = vector.load %arg6[%c0_32, %c0_33] : memref<4x4xf32, #tpu.memory_space<vmem>>, vector<4x4xf32>
      tpu.vector_store %arg6[%c0_32, %c0_33], %57 {strides = array<i32>} : memref<4x4xf32, #tpu.memory_space<vmem>>, vector<4x4xf32>,
      %c0_34 = arith.constant 0 : index
      %c0_35 = arith.constant 0 : index
      %59 = vector.load %arg6[%c0_34, %c0_35] : memref<4x4xf32, #tpu.memory_space<vmem>>, vector<4x4xf32>
      %c0_36 = arith.constant 0 : index
      %c0_37 = arith.constant 0 : index
      %c0_38 = arith.constant 0 : index
      %60 = vector.load %arg5[%c0_36, %c0_37, %c0_38] : memref<1x4x4xf32, #tpu.memory_space<vmem>>, vector<1x4x4xf32>
      %61 = vector.shape_cast %60 : vector<1x4x4xf32> to vector<4x4xf32>
      %62 = vector.shape_cast %59 : vector<4x4xf32> to vector<1x4x4xf32>
      tpu.vector_store %arg5[%c0_36, %c0_37, %c0_38], %62 {strides = array<i32>} : memref<1x4x4xf32, #tpu.memory_space<vmem>>, vector<1x4x4xf32>,
    } else {
    }
    return
  }
  func.func @transform_0(%arg0: i32, %arg1: i32, %arg2: i32) -> (i32, i32, i32) {
    %c0_i32 = arith.constant 0 : i32
    %c0_i32_0 = arith.constant 0 : i32
    return %arg0, %c0_i32, %arg2 : i32, i32, i32
  }
  func.func @transform_1(%arg0: i32, %arg1: i32, %arg2: i32) -> (i32, i32, i32) {
    %c0_i32 = arith.constant 0 : i32
    %c0_i32_0 = arith.constant 0 : i32
    %c0_i32_1 = arith.constant 0 : i32
    return %arg0, %c0_i32, %c0_i32_0 : i32, i32, i32
  }
  func.func @transform_2(%arg0: i32, %arg1: i32, %arg2: i32) -> (i32, i32, i32) {
    %c0_i32 = arith.constant 0 : i32
    %c0_i32_0 = arith.constant 0 : i32
    %c0_i32_1 = arith.constant 0 : i32
    return %arg0, %c0_i32, %c0_i32_0 : i32, i32, i32
  }
}

module attributes {stable_mosaic.version = 11 : i64} {
  func.func @_filter_kernel(%arg0: i32, %arg1: i32, %arg2: memref<1x4x256xbf16, #tpu.memory_space<vmem>>, %arg3: memref<1x4x4xf32, #tpu.memory_space<vmem>>, %arg4: memref<1x4x1xf32, #tpu.memory_space<vmem>>, %arg5: memref<1x1x256xi32, #tpu.memory_space<vmem>>, %arg6: memref<1x1x256xf32, #tpu.memory_space<vmem>>) attributes {dimension_semantics = [#tpu.dimension_semantics<parallel>, #tpu.dimension_semantics<parallel>], iteration_bounds = array<i64: 2, 1>, scalar_prefetch = 0 : i64, scratch_operands = 0 : i64, tpu.core_type = #tpu.core_type<tc>, window_params = [{transform_indices = @transform_0, window_bounds = array<i64: 1, 4, 256>}, {transform_indices = @transform_1, window_bounds = array<i64: 1, 4, 4>}, {transform_indices = @transform_2, window_bounds = array<i64: 1, 4, 1>}, {transform_indices = @transform_3, window_bounds = array<i64: 1, 1, 256>}, {transform_indices = @transform_4, window_bounds = array<i64: 1, 1, 256>}]} {
    %c0 = arith.constant 0 : index
    %c0_0 = arith.constant 0 : index
    %c0_1 = arith.constant 0 : index
    %0 = vector.load %arg2[%c0, %c0_0, %c0_1] : memref<1x4x256xbf16, #tpu.memory_space<vmem>>, vector<1x4x256xbf16>
    %1 = vector.shape_cast %0 : vector<1x4x256xbf16> to vector<4x256xbf16>
    %c0_2 = arith.constant 0 : index
    %c0_3 = arith.constant 0 : index
    %c0_4 = arith.constant 0 : index
    %2 = vector.load %arg3[%c0_2, %c0_3, %c0_4] : memref<1x4x4xf32, #tpu.memory_space<vmem>>, vector<1x4x4xf32>
    %3 = vector.shape_cast %2 : vector<1x4x4xf32> to vector<4x4xf32>
    %4 = arith.truncf %3 : vector<4x4xf32> to vector<4x4xbf16>
    %c0_5 = arith.constant 0 : index
    %c0_6 = arith.constant 0 : index
    %c0_7 = arith.constant 0 : index
    %5 = vector.load %arg4[%c0_5, %c0_6, %c0_7] : memref<1x4x1xf32, #tpu.memory_space<vmem>>, vector<1x4x1xf32>
    %6 = vector.shape_cast %5 : vector<1x4x1xf32> to vector<4x1xf32>
    %c0_8 = arith.constant 0 : index
    %c0_9 = arith.constant 0 : index
    %c0_10 = arith.constant 0 : index
    %7 = vector.load %arg5[%c0_8, %c0_9, %c0_10] : memref<1x1x256xi32, #tpu.memory_space<vmem>>, vector<1x1x256xi32>
    %8 = vector.shape_cast %7 : vector<1x1x256xi32> to vector<1x256xi32>
    %cst = arith.constant dense<0.000000e+00> : vector<4x256xf32>
    %9 = tpu.matmul %4, %1, %cst {dimension_numbers = #tpu.dot_dimension_numbers<[1], [0], [0], [1], [0, 0, 1, 1], [], []>} : vector<4x4xbf16>, vector<4x256xbf16>, vector<4x256xf32> -> vector<4x256xf32>
    %10 = vector.broadcast %6 : vector<4x1xf32> to vector<4x256xf32>
    %11 = arith.subf %9, %10 : vector<4x256xf32>
    %12 = tpu.iota {dimensions = array<i32: 0>} : vector<4x256xi32>
    %13 = vector.broadcast %8 : vector<1x256xi32> to vector<4x256xi32>
    %14 = arith.cmpi eq, %12, %13 : vector<4x256xi32>
    %15 = arith.extui %14 : vector<4x256xi1> to vector<4x256xi32>
    %16 = arith.sitofp %15 : vector<4x256xi32> to vector<4x256xf32>
    %17 = arith.mulf %16, %11 : vector<4x256xf32>
    %cst_11 = arith.constant dense<0.000000e+00> : vector<256xf32>
    %18 = vector.multi_reduction <add>, %17, %cst_11 [0] : vector<4x256xf32> to vector<256xf32>
    %19 = vector.shape_cast %18 : vector<256xf32> to vector<1x256xf32>
    %c0_12 = arith.constant 0 : index
    %c0_13 = arith.constant 0 : index
    %c0_14 = arith.constant 0 : index
    %20 = vector.load %arg6[%c0_12, %c0_13, %c0_14] : memref<1x1x256xf32, #tpu.memory_space<vmem>>, vector<1x1x256xf32>
    %21 = vector.shape_cast %20 : vector<1x1x256xf32> to vector<1x256xf32>
    %22 = vector.shape_cast %19 : vector<1x256xf32> to vector<1x1x256xf32>
    tpu.vector_store %arg6[%c0_12, %c0_13, %c0_14], %22 {strides = array<i32>} : memref<1x1x256xf32, #tpu.memory_space<vmem>>, vector<1x1x256xf32>,
    return
  }
  func.func @transform_0(%arg0: i32, %arg1: i32) -> (i32, i32, i32) {
    %c0_i32 = arith.constant 0 : i32
    %c0_i32_0 = arith.constant 0 : i32
    return %arg0, %c0_i32, %arg1 : i32, i32, i32
  }
  func.func @transform_1(%arg0: i32, %arg1: i32) -> (i32, i32, i32) {
    %c0_i32 = arith.constant 0 : i32
    %c0_i32_0 = arith.constant 0 : i32
    %c0_i32_1 = arith.constant 0 : i32
    return %arg0, %c0_i32, %c0_i32_0 : i32, i32, i32
  }
  func.func @transform_2(%arg0: i32, %arg1: i32) -> (i32, i32, i32) {
    %c0_i32 = arith.constant 0 : i32
    %c0_i32_0 = arith.constant 0 : i32
    %c0_i32_1 = arith.constant 0 : i32
    return %arg0, %c0_i32, %c0_i32_0 : i32, i32, i32
  }
  func.func @transform_3(%arg0: i32, %arg1: i32) -> (i32, i32, i32) {
    %c0_i32 = arith.constant 0 : i32
    %c0_i32_0 = arith.constant 0 : i32
    return %arg0, %c0_i32, %arg1 : i32, i32, i32
  }
  func.func @transform_4(%arg0: i32, %arg1: i32) -> (i32, i32, i32) {
    %c0_i32 = arith.constant 0 : i32
    %c0_i32_0 = arith.constant 0 : i32
    return %arg0, %c0_i32, %arg1 : i32, i32, i32
  }
}

</mosaic_0001>

<llo_original>
// kernel: custom-call.11
$region0: #{custom-call.11}
  %s0 = inlined_call_operand.vmem [shape: f32[2,4,4,4], index: 0, kind: input, shape index: {}]
  %s1 = inlined_call_operand.vmem [shape: f32[2,4,4,4], index: 1, kind: output, shape index: {0}]
  %s2 = inlined_call_operand.hbm [shape: s32[2,4,4], index: 2, kind: output, shape index: {1}]
  %s3 = inlined_call_operand.vmem [shape: s32[2,4,4], index: 3, kind: output, shape index: {2}]
  %4 = xla_tuple %s1, %s2, %s3
  $region1: #{custom-call.11} parent=0
    #allocation0 [shape = 'u8[4096]{0}', space=vmem, size = 0x1000, scoped, tag = 'operand span for operand 0']
    #allocation1 [shape = 'u8[4096]{0}', space=vmem, size = 0x1000, scoped, tag = 'packed  for operand 0']
    #allocation2 [shape = 'u8[4096]{0}', space=vmem, size = 0x1000, scoped, tag = 'operand span for operand 1']
    #allocation3 [shape = 'u8[4096]{0}', space=vmem, size = 0x1000, scoped, tag = 'packed  for operand 1']
    #allocation4 [shape = 'u8[4096]{0}', space=vmem, size = 0x1000, scoped, tag = 'operand span for operand 2']
    #allocation5 [shape = 'u8[4096]{0}', space=vmem, size = 0x1000, scoped, tag = 'packed  for operand 2']
    #allocation6 [shape = 's32[2]{0}', space=sflag, size = 0x8, scoped, tag = 'scoped memory for custom-call.11']
    #allocation7 [shape = 'u8[4096]{0}', space=vmem, size = 0x1000, scoped, tag = 'operand span for operand 3']
    #allocation8 [shape = 'u8[4096]{0}', space=vmem, size = 0x1000, scoped, tag = 'packed  for operand 3']
    %5 = vsyncpa [#allocation6], 0
    %s6 = scalar_lea.sflag [#allocation6], 1
    %7 = vsyncpa %s6, 0
    loop: start=0, step=1, limit=10
    $region2: #{custom-call.11} parent=1 // loop_pre_header
      _
    $region3: #{custom-call.11} parent=1 // loop_header
      %s9 = sphi 0, %s13
      %p10 = scmp.ge.s32.totalorder %s9, 10
      %s16 = sphi 0, %s28
      %s17 = sphi 0, %s24
      %s18 = sphi 0, %s16
      %s19 = sphi 0, %s17
      %s20 = sphi 0, %s18
      %s21 = sphi 0, %s19
      %s35 = sphi 0, %s37
      %s38 = sphi 0, %s35
      %s39 = sphi 0, %s38
      %s55 = sphi 0, %s39
      %s65 = sphi 0, %s67
      %s68 = sphi 0, %s65
      %s69 = sphi 0, %s68
      %s85 = sphi 0, %s69
    $region4: #{custom-call.11} parent=1 // loop_header_branch
      %12 = sbr.rel (%p10) target = $region8
    $region5: #{custom-call.11} parent=1 // loop_body
      %s14 = ssub.s32 %s9, 1
      %s15 = ssub.s32 %s9, 2
      %s22 = sadd.s32 1, %s17
      %p23 = scmp.ge.s32.totalorder %s22, 4
      %s24 = scalar_select %p23, 0, %s22
      %s25 = sadd.s32 1, %s16
      %s26 = scalar_select %p23, %s25, %s16
      %p27 = scmp.ge.s32.totalorder %s26, 2
      %s28 = scalar_select %p27, 0, %s26
      %s29 = sshrl.u32 %s17, 3
      %s30 = sshrl.u32 %s24, 3
      %s31 = ssub.s32 %s16, %s28
      %s32 = ssub.s32 %s29, %s30
      %s33 = sor.u32 %s31, %s32
      %p34 = scmp.eq.s32.totalorder %s33, 0
      %s36 = sadd.s32 %s35, 1
      %s37 = scalar_select %p34, %s35, %s36
      %p40 = pneg %p34
      %p41 = scmp.eq.s32.totalorder %s9, 7
      %p42 = por %p40, %p41
      %p43 = scmp.ne.s32.totalorder %s35, %s38
      %p44 = scmp.eq.s32.totalorder %s9, 0
      %p45 = por %p43, %p44
      %p46 = scmp.ne.s32.totalorder %s35, %s38
      %p47 = scmp.eq.s32.totalorder %s14, 7
      %p48 = por %p46, %p47
      %p49 = scmp.ne.s32.totalorder %s38, %s39
      %p50 = scmp.eq.s32.totalorder %s14, 0
      %p51 = por %p49, %p50
      %p52 = scmp.ne.s32.totalorder %s38, %s39
      %p53 = scmp.eq.s32.totalorder %s15, 7
      %p54 = por %p52, %p53
      %p56 = scmp.ne.s32.totalorder %s39, %s55
      %p57 = scmp.eq.s32.totalorder %s15, 0
      %p58 = por %p56, %p57
      %s59 = sshrl.u32 %s17, 3
      %s60 = sshrl.u32 %s24, 3
      %s61 = ssub.s32 %s16, %s28
      %s62 = ssub.s32 %s59, %s60
      %s63 = sor.u32 %s61, %s62
      %p64 = scmp.eq.s32.totalorder %s63, 0
      %s66 = sadd.s32 %s65, 1
      %s67 = scalar_select %p64, %s65, %s66
      %p70 = pneg %p64
      %p71 = scmp.eq.s32.totalorder %s9, 7
      %p72 = por %p70, %p71
      %p73 = scmp.ne.s32.totalorder %s65, %s68
      %p74 = scmp.eq.s32.totalorder %s9, 0
      %p75 = por %p73, %p74
      %p76 = scmp.ne.s32.totalorder %s65, %s68
      %p77 = scmp.eq.s32.totalorder %s14, 7
      %p78 = por %p76, %p77
      %p79 = scmp.ne.s32.totalorder %s68, %s69
      %p80 = scmp.eq.s32.totalorder %s14, 0
      %p81 = por %p79, %p80
      %p82 = scmp.ne.s32.totalorder %s68, %s69
      %p83 = scmp.eq.s32.totalorder %s15, 7
      %p84 = por %p82, %p83
      %p86 = scmp.ne.s32.totalorder %s69, %s85
      %p87 = scmp.eq.s32.totalorder %s15, 0
      %p88 = por %p86, %p87
      %p89 = scmp.le.s32.totalorder 1, %s9
      %p90 = scmp.lt.s32.totalorder %s9, 9
      %p91 = pnand %p89, %p90
      %p92 = pneg %p91
      // Predicated region
      $region9: #{custom-call.11} parent=5 // pred_check
        _
      $region10: #{custom-call.11} parent=5 // pred_check_branch
        %94 = sbr.rel (%p91) target = $region12
      $region11: #{custom-call.11} parent=5 // pred_region
        %s95 = ssub.s32 %s9, 1
      $region12: #{custom-call.11} parent=5 // pred_fallthru
        _
      %p96 = scmp.lt.s32.totalorder %s9, 8
      // Predicated region
      $region13: #{custom-call.11} parent=5 // pred_check
        %p97 = pneg %p96
      $region14: #{custom-call.11} parent=5 // pred_check_branch
        %99 = sbr.rel (%p97) target = $region16
      $region15: #{custom-call.11} parent=5 // pred_region
        %s100 = sand.u32 %s9, 1
        %s101 = sand.u32 %s9, 1
        %s102 = smul.addr %s101, 4
        %s103 = scalar_lea.vmem [#allocation1], %s102
        %s104 = smul.addr %s16, 4
        %s105 = sadd.s32 %s17, %s104
        %s106 = smul.addr %s105, 4
        %s107 = scalar_lea.vmem %s0, %s106
        // Predicated region
        $region17: #{custom-call.11} parent=15 // pred_check
          _
        $region18: #{custom-call.11} parent=15 // pred_check_branch
          %109 = sbr.rel (0) target = $region20
        $region19: #{custom-call.11} parent=15 // pred_region
          // Predicated region
          $region21: #{custom-call.11} parent=19 // pred_check
            _
          $region22: #{custom-call.11} parent=19 // pred_check_branch
            %111 = sbr.rel target = $region24
          $region23: #{custom-call.11} parent=19 // pred_region
            // Predicated region
            $region36: #{custom-call.11} parent=23 // pred_check
              _
            $region37: #{custom-call.11} parent=23 // pred_check_branch
              %127 = sbr.rel (0) target = $region39
            $region38: #{custom-call.11} parent=23 // pred_region
              %s129 = ssub.s32 16, 1
              loop: start=0, step=1, limit=1
              $region40: #{custom-call.11} parent=38 // loop_pre_header
                _
              $region41: #{custom-call.11} parent=38 // loop_header
                %s131 = sphi 0, %s135
                %p132 = scmp.ge.s32.totalorder %s131, 1
                %s136 = sphi %s107, %s107
                %s137 = sphi %s103, %s103
              $region42: #{custom-call.11} parent=38 // loop_header_branch
                %134 = sbr.rel (%p132) target = $region46
              $region43: #{custom-call.11} parent=38 // loop_body
                %v138 = vld [vmem:[%s136] sm:%s129]
                %139 = vst [vmem:[%s137] sm:%s129] %v138
              $region44: #{custom-call.11} parent=38 // loop_footer
                %s135 = sadd.s32 1, %s131
              $region45: #{custom-call.11} parent=38 // loop_footer_branch
                %130 = sbr.rel target = $region41
              $region46: #{custom-call.11} parent=38 // loop_exit
                _
            $region39: #{custom-call.11} parent=23 // pred_fallthru
              _
          $region24: #{custom-call.11} parent=19 // pred_fallthru
            _
          // Predicated region
          $region25: #{custom-call.11} parent=19 // pred_check
            _
          $region26: #{custom-call.11} parent=19 // pred_check_branch
            %113 = sbr.rel (0) target = $region28
          $region27: #{custom-call.11} parent=19 // pred_region
            %s115 = ssub.s32 16, 1
            loop: start=0, step=1, limit=1
            $region29: #{custom-call.11} parent=27 // loop_pre_header
              _
            $region30: #{custom-call.11} parent=27 // loop_header
              %s117 = sphi 0, %s121
              %p118 = scmp.ge.s32.totalorder %s117, 1
              %s122 = sphi %s107, %s107
              %s123 = sphi %s103, %s103
            $region31: #{custom-call.11} parent=27 // loop_header_branch
              %120 = sbr.rel (%p118) target = $region35
            $region32: #{custom-call.11} parent=27 // loop_body
              %v124 = vld [vmem:[%s122] sm:%s115]
              %125 = vst [vmem:[%s123] sm:%s115] %v124
            $region33: #{custom-call.11} parent=27 // loop_footer
              %s121 = sadd.s32 1, %s117
            $region34: #{custom-call.11} parent=27 // loop_footer_branch
              %116 = sbr.rel target = $region30
            $region35: #{custom-call.11} parent=27 // loop_exit
              _
          $region28: #{custom-call.11} parent=19 // pred_fallthru
            _
        $region20: #{custom-call.11} parent=15 // pred_fallthru
          _
        %140 = vnop
      $region16: #{custom-call.11} parent=5 // pred_fallthru
        _
      %p141 = scmp.le.s32.totalorder 1, %s9
      %p142 = scmp.lt.s32.totalorder %s9, 9
      %p143 = pnand %p141, %p142
      %p144 = pneg %p143
      // Predicated region
      $region47: #{custom-call.11} parent=5 // pred_check
        _
      $region48: #{custom-call.11} parent=5 // pred_check_branch
        %146 = sbr.rel (%p143) target = $region50
      $region49: #{custom-call.11} parent=5 // pred_region
        #allocation9 [shape = 's32[4,128]{1,0}', space=vmem, size = 0x1000, scoped, tag = 'scratch for permutations']
        %s147 = ssub.s32 %s9, 1
        %s148 = sand.u32 %s14, 1
        %s149 = sand.u32 %s14, 1
        %s150 = smul.addr %s149, 4
        %s151 = scalar_lea.vmem [#allocation1], %s150
        %s152 = sand.u32 %s14, 1
        %s153 = sand.u32 %s14, 1
        %s154 = smul.addr %s153, 4
        %s155 = scalar_lea.vmem [#allocation1], %s154
        %s156 = sand.u32 %s14, 1
        %s157 = sand.u32 %s14, 1
        %s158 = smul.addr %s157, 4
        %s159 = scalar_lea.vmem [#allocation3], %s158
        %p160 = pneg %p51
        %p161 = pneg %p48
        %s162 = sand.u32 %s38, 1
        %s163 = scalar_lea.sflag [#allocation6], %s162
        %s164 = sand.u32 %s38, 1
        %s165 = smul.addr %s164, 4
        %s166 = scalar_lea.vmem [#allocation5], %s165
        %p167 = pneg %p81
        %p168 = pneg %p78
        %s169 = sand.u32 %s68, 1
        %s170 = sand.u32 %s68, 1
        %s171 = smul.addr %s170, 4
        %s172 = scalar_lea.vmem [#allocation8], %s171
        %s174 = ssub.s32 16, 1
        %v175 = vld [vmem:[%s155] sm:%s174]
        %176 = vst [vmem:[#allocation0] sm:%s174] %v175
        %s177 = sshrl.u32 %s19, 3
        %s178 = sshrl.u32 %s19, 3
        %v179 = vld [vmem:[#allocation0] sm:$0xff]
        %180 = vst [vmem:[#allocation2] sm:$0xff] %v179
        %s181 = sand.u32 %s19, 7
        %s182 = scalar_lea.vmem [#allocation4], %s181
        %s183 = sand.u32 %s19, 7
        %s184 = scalar_lea.vmem [#allocation7], %s183
        %185 = vst [vmem:[%s182] sm:$0x1] 0
        %v186 = vlaneseq
        %v187 = vshrl.u32 %v186, 7
        %v188 = vmov %v187
        %190 = vst [vmem:[#allocation9] sm:$0xff] %v188
        loop: start=0, step=1, limit=4
        $region52: #{custom-call.11} parent=49 // loop_pre_header
          _
        $region53: #{custom-call.11} parent=49 // loop_header
          %s192 = sphi 0, %s196
          %p193 = scmp.ge.s32.totalorder %s192, 4
        $region54: #{custom-call.11} parent=49 // loop_header_branch
          %195 = sbr.rel (%p193) target = $region58
        $region55: #{custom-call.11} parent=49 // loop_body
          %v197 = vstv %s192
          %v198 = vlaneseq
          %v199 = vshrl.u32 %v198, 7
          %v200 = vmov %v199
          %v201 = vld [vmem:[#allocation2] sm:$0xff]
          %v202 = vand.u32 2147483647, %v201
          %v204 = vstv %s192
          %vm205 = vcmp.ge.s32.totalorder %v200, %v204
          %vm206 = vcmp.lt.s32.totalorder %v200, 4
          %vm207 = vmand %vm205, %vm206
          %vm208 = vcmp.lt.f32.partialorder -inf, %v202
          %vm209 = vmand %vm207, %vm208
          %v210 = vsel %vm209, %v200, %v197
          %v211 = vsel %vm209, %v202, -inf
          %v212 = vrot.slane %v211, 1
          %v213 = vrot.slane %v210, 1
          %vm214 = vcmp.ge.f32.partialorder %v212, %v211
          %v215 = vsel %vm214, %v212, %v211
          %v216 = vsel %vm214, %v213, %v210
          %v217 = vrot.slane %v212, 1
          %v218 = vrot.slane %v213, 1
          %vm219 = vcmp.ge.f32.partialorder %v217, %v215
          %v220 = vsel %vm219, %v217, %v215
          %v221 = vsel %vm219, %v218, %v216
          %v222 = vrot.slane %v217, 1
          %v223 = vrot.slane %v218, 1
          %vm224 = vcmp.ge.f32.partialorder %v222, %v220
          %v225 = vsel %vm224, %v222, %v220
          %v226 = vsel %vm224, %v223, %v221
          %v227 = vrot.slane %v222, 1
          %v228 = vrot.slane %v223, 1
          %vm229 = vcmp.ge.f32.partialorder %v227, %v225
          %v230 = vsel %vm229, %v227, %v225
          %v231 = vsel %vm229, %v228, %v226
          %v232 = vrot.slane %v227, 1
          %v233 = vrot.slane %v228, 1
          %vm234 = vcmp.ge.f32.partialorder %v232, %v230
          %v235 = vsel %vm234, %v232, %v230
          %v236 = vsel %vm234, %v233, %v231
          %v237 = vrot.slane %v232, 1
          %v238 = vrot.slane %v233, 1
          %vm239 = vcmp.ge.f32.partialorder %v237, %v235
          %v240 = vsel %vm239, %v237, %v235
          %v241 = vsel %vm239, %v238, %v236
          %v242 = vrot.slane %v237, 1
          %v243 = vrot.slane %v238, 1
          %vm244 = vcmp.ge.f32.partialorder %v242, %v240
          %v245 = vsel %vm244, %v242, %v240
          %v246 = vsel %vm244, %v243, %v241
          %s247 = ssub.s32 128, %s192
          %248 = vrot.lane.b32.xlu0 %v246, %s247
          %v249 = vpop.permute.xlu0 %248
          %s250 = vtos %v249
          %v251 = vstv %s192
          %v252 = vlaneseq
          %v253 = vand.u32 %v252, 127
          %vm254 = vcmp.eq.s32.totalorder %v253, %v251
          %v255 = vstv %s250
          %v256 = vld [vmem:[%s182] ss:$0 sm:$0xff]
          %v257 = vsel %vm254, %v255, %v256
          %258 = vst [vmem:[%s182] sm:$0x1] %v257
          %s259 = scalar_lea.vmem [#allocation2], %s192
          %s260 = scalar_lea.vmem [#allocation2], %s250
          %v261 = vld [vmem:[%s259] ss:$0 sm:$0xff]
          %v262 = vld [vmem:[%s260] ss:$0 sm:$0xff]
          %263 = vst [vmem:[%s260] sm:$0x1] %v261
          %264 = vst [vmem:[%s259] sm:$0x1] %v262
          %s265 = scalar_lea.vmem [#allocation9], %s192
          %s266 = scalar_lea.vmem [#allocation9], %s250
          %v267 = vld [vmem:[%s265] ss:$0 sm:$0xff]
          %v268 = vld [vmem:[%s266] ss:$0 sm:$0xff]
          %269 = vst [vmem:[%s266] sm:$0x1] %v267
          %270 = vst [vmem:[%s265] sm:$0x1] %v268
          %vm271 = vcmp.ne.f32.partialorder %v262, 0.0
          %vm272 = vmand %vm254, %vm271
          %v273 = vsel %vm272, %v262, 1.0
          %v274 = vlaneseq
          %v275 = vand.u32 %v274, 127
          %v276 = vstv %s192
          %vm277 = vcmp.gt.s32.totalorder %v275, %v276
          %v278 = vsel %vm277, %v262, 0.0
          %v279 = vlaneseq
          %v280 = vshrl.u32 %v279, 7
          %v281 = vmov %v280
          %v282 = vld [vmem:[#allocation2] sm:$0xff]
          %v284 = vstv %s192
          %vm285 = vcmp.gt.s32.totalorder %v281, %v284
          %v286 = vsel %vm285, %v273, 1.0
          %v287 = vrcp.pop %v286
          %v288 = vmul.f32 %v286, %v287
          %v289 = vsub.f32 1.0, %v288
          %v290 = vmul.f32 %v287, %v289
          %v291 = vadd.f32 %v287, %v290
          %vm292 = vweird.f32 %v286
          %vm293 = vweird.f32 %v287
          %vm294 = vmor %vm292, %vm293
          %v295 = vsel %vm294, %v287, %v291
          %v296 = vand.u32 2147483647, %v286
          %vm297 = vcmp.eq.f32.partialorder %v296, 8.507059e+37
          %v298 = vand.u32 %v286, 2147483648
          %v299 = vor.u32 1.1754944e-38, %v298
          %v300 = vsel %vm297, %v299, %v295
          %v301 = vmul.f32 %v282, %v300
          %vm302 = vmand %vm285, %vm254
          %v303 = vsel %vm302, %v301, 0.0
          %304 = vadd.xlane.f32.xlu0 %v303
          %v305 = vpop.xlane.xlu0 %304
          %v306 = vmul.f32 %v305, %v278
          %v307 = vsub.f32 %v301, %v306
          %308 = vst [vmem:[#allocation2] sm:$0xff] %v307
        $region56: #{custom-call.11} parent=49 // loop_footer
          %s196 = sadd.s32 1, %s192
        $region57: #{custom-call.11} parent=49 // loop_footer_branch
          %191 = sbr.rel target = $region53
        $region58: #{custom-call.11} parent=49 // loop_exit
          _
        %v309 = vld [vmem:[#allocation9] sm:$0xff]
        %s310 = scalar_lea.vmem [#allocation9], 8
        %s311 = scalar_lea.vmem [#allocation9], 16
        %s312 = scalar_lea.vmem [#allocation9], 24
        %s313 = scalar_lea.vmem [#allocation9], 32
        %s314 = scalar_lea.vmem [#allocation9], 40
        %s315 = scalar_lea.vmem [#allocation9], 48
        %s316 = scalar_lea.vmem [#allocation9], 56
        %s317 = scalar_lea.vmem [#allocation9], 64
        %s318 = scalar_lea.vmem [#allocation9], 72
        %s319 = scalar_lea.vmem [#allocation9], 80
        %s320 = scalar_lea.vmem [#allocation9], 88
        %s321 = scalar_lea.vmem [#allocation9], 96
        %s322 = scalar_lea.vmem [#allocation9], 104
        %s323 = scalar_lea.vmem [#allocation9], 112
        %s324 = scalar_lea.vmem [#allocation9], 120
        %325 = vxpose.xlu0.b32.start [1/16] %v309, 128
        %326 = vxpose.xlu0.b32.cont [2/16] 0, 128
        %327 = vxpose.xlu0.b32.cont [3/16] 0, 128
        %328 = vxpose.xlu0.b32.cont [4/16] 0, 128
        %329 = vxpose.xlu0.b32.cont [5/16] 0, 128
        %330 = vxpose.xlu0.b32.cont [6/16] 0, 128
        %331 = vxpose.xlu0.b32.cont [7/16] 0, 128
        %332 = vxpose.xlu0.b32.cont [8/16] 0, 128
        %333 = vxpose.xlu0.b32.cont [9/16] 0, 128
        %334 = vxpose.xlu0.b32.cont [10/16] 0, 128
        %335 = vxpose.xlu0.b32.cont [11/16] 0, 128
        %336 = vxpose.xlu0.b32.cont [12/16] 0, 128
        %337 = vxpose.xlu0.b32.cont [13/16] 0, 128
        %338 = vxpose.xlu0.b32.cont [14/16] 0, 128
        %339 = vxpose.xlu0.b32.cont [15/16] 0, 128
        %340 = vxpose.xlu0.b32.end [16/16] 0, 128
        %v341 = vpop.trf.xlu0
        %v342 = vpop.trf.xlu0
        %v343 = vpop.trf.xlu0
        %v344 = vpop.trf.xlu0
        %v345 = vpop.trf.xlu0
        %v346 = vpop.trf.xlu0
        %v347 = vpop.trf.xlu0
        %v348 = vpop.trf.xlu0
        %v349 = vpop.trf.xlu0
        %v350 = vpop.trf.xlu0
        %v351 = vpop.trf.xlu0
        %v352 = vpop.trf.xlu0
        %v353 = vpop.trf.xlu0
        %v354 = vpop.trf.xlu0
        %v355 = vpop.trf.xlu0
        %v356 = vpop.trf.xlu0
        %357 = vst [vmem:[%s184] sm:$0x1] %v341
        %s359 = ssub.s32 16, 1
        %v360 = vld [vmem:[#allocation2] sm:%s359]
        %s362 = ssub.s32 16, 1
        %363 = vst [vmem:[%s159] sm:%s362] %v360
        %s365 = ssub.s32 16, 1
        %v366 = vld [vmem:[#allocation4] sm:%s365]
        %s368 = ssub.s32 16, 1
        %369 = vst [vmem:[%s166] sm:%s368] %v366
        %s371 = ssub.s32 16, 1
        %v372 = vld [vmem:[#allocation7] sm:%s371]
        %s374 = ssub.s32 16, 1
        %375 = vst [vmem:[%s172] sm:%s374] %v372
        %s376 = sand.u32 %s14, 1
        %s377 = sand.u32 %s14, 1
        %s378 = smul.addr %s377, 4
        %s379 = scalar_lea.vmem [#allocation3], %s378
        %s380 = sand.u32 %s38, 1
        %s381 = scalar_lea.sflag [#allocation6], %s380
        %s382 = sand.u32 %s38, 1
        %s383 = smul.addr %s382, 4
        %s384 = scalar_lea.vmem [#allocation5], %s383
        %s385 = sand.u32 %s68, 1
        %s386 = sand.u32 %s68, 1
        %s387 = smul.addr %s386, 4
        %s388 = scalar_lea.vmem [#allocation8], %s387
        %s389 = smul.addr %s18, 4
        %s390 = sadd.s32 %s19, %s389
        %s391 = smul.addr %s390, 4
        %s392 = scalar_lea.vmem %s1, %s391
        // Predicated region
        $region59: #{custom-call.11} parent=49 // pred_check
          _
        $region60: #{custom-call.11} parent=49 // pred_check_branch
          %394 = sbr.rel (0) target = $region62
        $region61: #{custom-call.11} parent=49 // pred_region
          // Predicated region
          $region63: #{custom-call.11} parent=61 // pred_check
            _
          $region64: #{custom-call.11} parent=61 // pred_check_branch
            %396 = sbr.rel target = $region66
          $region65: #{custom-call.11} parent=61 // pred_region
            // Predicated region
            $region78: #{custom-call.11} parent=65 // pred_check
              _
            $region79: #{custom-call.11} parent=65 // pred_check_branch
              %412 = sbr.rel (0) target = $region81
            $region80: #{custom-call.11} parent=65 // pred_region
              %s414 = ssub.s32 16, 1
              loop: start=0, step=1, limit=1
              $region82: #{custom-call.11} parent=80 // loop_pre_header
                _
              $region83: #{custom-call.11} parent=80 // loop_header
                %s416 = sphi 0, %s420
                %p417 = scmp.ge.s32.totalorder %s416, 1
                %s421 = sphi %s379, %s379
                %s422 = sphi %s392, %s392
              $region84: #{custom-call.11} parent=80 // loop_header_branch
                %419 = sbr.rel (%p417) target = $region88
              $region85: #{custom-call.11} parent=80 // loop_body
                %v423 = vld [vmem:[%s421] sm:%s414]
                %424 = vst [vmem:[%s422] sm:%s414] %v423
              $region86: #{custom-call.11} parent=80 // loop_footer
                %s420 = sadd.s32 1, %s416
              $region87: #{custom-call.11} parent=80 // loop_footer_branch
                %415 = sbr.rel target = $region83
              $region88: #{custom-call.11} parent=80 // loop_exit
                _
            $region81: #{custom-call.11} parent=65 // pred_fallthru
              _
          $region66: #{custom-call.11} parent=61 // pred_fallthru
            _
          // Predicated region
          $region67: #{custom-call.11} parent=61 // pred_check
            _
          $region68: #{custom-call.11} parent=61 // pred_check_branch
            %398 = sbr.rel (0) target = $region70
          $region69: #{custom-call.11} parent=61 // pred_region
            %s400 = ssub.s32 16, 1
            loop: start=0, step=1, limit=1
            $region71: #{custom-call.11} parent=69 // loop_pre_header
              _
            $region72: #{custom-call.11} parent=69 // loop_header
              %s402 = sphi 0, %s406
              %p403 = scmp.ge.s32.totalorder %s402, 1
              %s407 = sphi %s379, %s379
              %s408 = sphi %s392, %s392
            $region73: #{custom-call.11} parent=69 // loop_header_branch
              %405 = sbr.rel (%p403) target = $region77
            $region74: #{custom-call.11} parent=69 // loop_body
              %v409 = vld [vmem:[%s407] sm:%s400]
              %410 = vst [vmem:[%s408] sm:%s400] %v409
            $region75: #{custom-call.11} parent=69 // loop_footer
              %s406 = sadd.s32 1, %s402
            $region76: #{custom-call.11} parent=69 // loop_footer_branch
              %401 = sbr.rel target = $region72
            $region77: #{custom-call.11} parent=69 // loop_exit
              _
          $region70: #{custom-call.11} parent=61 // pred_fallthru
            _
        $region62: #{custom-call.11} parent=49 // pred_fallthru
          _
        %425 = vnop
        // Predicated region
        $region89: #{custom-call.11} parent=49 // pred_check
          %p426 = pneg %p48
        $region90: #{custom-call.11} parent=49 // pred_check_branch
          %428 = sbr.rel (%p426) target = $region92
        $region91: #{custom-call.11} parent=49 // pred_region
          %s429 = sshrl.u32 %s19, 3
          %431 = vsyncadd %s381, 0
          %s432 = sadd.s32 %s429, %s18
          %s433 = smul.addr %s432, 4
          %s434 = scalar_lea.hbm %s2, %s433
          %s436 = sshll.u32 %s384, 4
          %s437 = int_to_ptr.vmem [resolvable:$true] %s436
          %s438 = sshll.u32 %s434, 4
          %s439 = int_to_ptr.hbm [resolvable:$true] %s438
          %441 = dma.vmem_to_hbm [thread:$0]  %s437, 64, %s439, %s381
        $region92: #{custom-call.11} parent=49 // pred_fallthru
          _
        // Predicated region
        $region93: #{custom-call.11} parent=49 // pred_check
          %p442 = pneg %p78
        $region94: #{custom-call.11} parent=49 // pred_check_branch
          %444 = sbr.rel (%p442) target = $region96
        $region95: #{custom-call.11} parent=49 // pred_region
          %s445 = sshrl.u32 %s19, 3
          %s446 = sadd.s32 %s445, %s18
          %s447 = smul.addr %s446, 4
          %s448 = scalar_lea.vmem %s3, %s447
          // Predicated region
          $region97: #{custom-call.11} parent=95 // pred_check
            _
          $region98: #{custom-call.11} parent=95 // pred_check_branch
            %450 = sbr.rel (0) target = $region100
          $region99: #{custom-call.11} parent=95 // pred_region
            // Predicated region
            $region101: #{custom-call.11} parent=99 // pred_check
              _
            $region102: #{custom-call.11} parent=99 // pred_check_branch
              %452 = sbr.rel target = $region104
            $region103: #{custom-call.11} parent=99 // pred_region
              // Predicated region
              $region116: #{custom-call.11} parent=103 // pred_check
                _
              $region117: #{custom-call.11} parent=103 // pred_check_branch
                %468 = sbr.rel (0) target = $region119
              $region118: #{custom-call.11} parent=103 // pred_region
                %s470 = ssub.s32 16, 1
                loop: start=0, step=1, limit=1
                $region120: #{custom-call.11} parent=118 // loop_pre_header
                  _
                $region121: #{custom-call.11} parent=118 // loop_header
                  %s472 = sphi 0, %s476
                  %p473 = scmp.ge.s32.totalorder %s472, 1
                  %s477 = sphi %s388, %s388
                  %s478 = sphi %s448, %s448
                $region122: #{custom-call.11} parent=118 // loop_header_branch
                  %475 = sbr.rel (%p473) target = $region126
                $region123: #{custom-call.11} parent=118 // loop_body
                  %v479 = vld [vmem:[%s477] sm:%s470]
                  %480 = vst [vmem:[%s478] sm:%s470] %v479
                $region124: #{custom-call.11} parent=118 // loop_footer
                  %s476 = sadd.s32 1, %s472
                $region125: #{custom-call.11} parent=118 // loop_footer_branch
                  %471 = sbr.rel target = $region121
                $region126: #{custom-call.11} parent=118 // loop_exit
                  _
              $region119: #{custom-call.11} parent=103 // pred_fallthru
                _
            $region104: #{custom-call.11} parent=99 // pred_fallthru
              _
            // Predicated region
            $region105: #{custom-call.11} parent=99 // pred_check
              _
            $region106: #{custom-call.11} parent=99 // pred_check_branch
              %454 = sbr.rel (0) target = $region108
            $region107: #{custom-call.11} parent=99 // pred_region
              %s456 = ssub.s32 16, 1
              loop: start=0, step=1, limit=1
              $region109: #{custom-call.11} parent=107 // loop_pre_header
                _
              $region110: #{custom-call.11} parent=107 // loop_header
                %s458 = sphi 0, %s462
                %p459 = scmp.ge.s32.totalorder %s458, 1
                %s463 = sphi %s388, %s388
                %s464 = sphi %s448, %s448
              $region111: #{custom-call.11} parent=107 // loop_header_branch
                %461 = sbr.rel (%p459) target = $region115
              $region112: #{custom-call.11} parent=107 // loop_body
                %v465 = vld [vmem:[%s463] sm:%s456]
                %466 = vst [vmem:[%s464] sm:%s456] %v465
              $region113: #{custom-call.11} parent=107 // loop_footer
                %s462 = sadd.s32 1, %s458
              $region114: #{custom-call.11} parent=107 // loop_footer_branch
                %457 = sbr.rel target = $region110
              $region115: #{custom-call.11} parent=107 // loop_exit
                _
            $region108: #{custom-call.11} parent=99 // pred_fallthru
              _
          $region100: #{custom-call.11} parent=95 // pred_fallthru
            _
          %481 = vnop
        $region96: #{custom-call.11} parent=49 // pred_fallthru
          _
      $region50: #{custom-call.11} parent=5 // pred_fallthru
        _
      %p482 = scmp.le.s32.totalorder 2, %s9
      // Predicated region
      $region127: #{custom-call.11} parent=5 // pred_check
        %p483 = pneg %p482
      $region128: #{custom-call.11} parent=5 // pred_check_branch
        %485 = sbr.rel (%p483) target = $region130
      $region129: #{custom-call.11} parent=5 // pred_region
        %s486 = ssub.s32 %s9, 2
        %s487 = sand.u32 %s15, 1
        %s488 = sand.u32 %s15, 1
        %s489 = smul.addr %s488, 4
        %s490 = scalar_lea.vmem [#allocation3], %s489
        // Predicated region
        $region131: #{custom-call.11} parent=129 // pred_check
          %p491 = pneg %p54
        $region132: #{custom-call.11} parent=129 // pred_check_branch
          %493 = sbr.rel (%p491) target = $region134
        $region133: #{custom-call.11} parent=129 // pred_region
          %s494 = sand.u32 %s39, 1
          %s495 = scalar_lea.sflag [#allocation6], %s494
          %s496 = sand.u32 %s39, 1
          %s497 = smul.addr %s496, 4
          %s498 = scalar_lea.vmem [#allocation5], %s497
          %500 = dma.done %s495, 64
        $region134: #{custom-call.11} parent=129 // pred_fallthru
          _
        // Predicated region
        $region135: #{custom-call.11} parent=129 // pred_check
          %p501 = pneg %p84
        $region136: #{custom-call.11} parent=129 // pred_check_branch
          %503 = sbr.rel (%p501) target = $region138
        $region137: #{custom-call.11} parent=129 // pred_region
          %s504 = sand.u32 %s69, 1
          %s505 = sand.u32 %s69, 1
          %s506 = smul.addr %s505, 4
          %s507 = scalar_lea.vmem [#allocation8], %s506
        $region138: #{custom-call.11} parent=129 // pred_fallthru
          _
      $region130: #{custom-call.11} parent=5 // pred_fallthru
        _
    $region6: #{custom-call.11} parent=1 // loop_footer
      %s13 = sadd.s32 1, %s9
    $region7: #{custom-call.11} parent=1 // loop_footer_branch
      %8 = sbr.rel target = $region3
    $region8: #{custom-call.11} parent=1 // loop_exit
      _
    %508 = vsyncpa [#allocation6], 1
    %s509 = scalar_lea.sflag [#allocation6], 1
    %510 = vsyncpa %s509, 1

// kernel: custom-call.13
$region0: #{custom-call.13}
  %s0 = inlined_call_operand.vmem [shape: f32[2,4,1,4,4], index: 0, kind: input, shape index: {}]
  %s1 = inlined_call_operand.vmem [shape: f32[2,4,1,4,4], index: 1, kind: output, shape index: {}]
  $region1: #{custom-call.13} parent=0
    #allocation0 [shape = 'u8[4096]{0}', space=vmem, size = 0x1000, scoped, tag = 'operand span for operand 0']
    #allocation1 [shape = 'u8[4096]{0}', space=vmem, size = 0x1000, scoped, tag = 'packed  for operand 0']
    #allocation2 [shape = 'u8[4096]{0}', space=vmem, size = 0x1000, scoped, tag = 'operand span for operand 1']
    #allocation3 [shape = 'u8[4096]{0}', space=vmem, size = 0x1000, scoped, tag = 'packed  for operand 1']
    loop: start=0, step=1, limit=10
    $region2: #{custom-call.13} parent=1 // loop_pre_header
      _
    $region3: #{custom-call.13} parent=1 // loop_header
      %s3 = sphi 0, %s7
      %p4 = scmp.ge.s32.totalorder %s3, 10
      %s10 = sphi 0, %s43
      %s11 = sphi 0, %s39
      %s12 = sphi 0, %s35
      %s13 = sphi 0, %s31
      %s14 = sphi 0, %s27
      %s15 = sphi 0, %s10
      %s16 = sphi 0, %s11
      %s17 = sphi 0, %s12
      %s18 = sphi 0, %s13
      %s19 = sphi 0, %s14
      %s20 = sphi 0, %s15
      %s21 = sphi 0, %s16
      %s22 = sphi 0, %s17
      %s23 = sphi 0, %s18
      %s24 = sphi 0, %s19
    $region4: #{custom-call.13} parent=1 // loop_header_branch
      %6 = sbr.rel (%p4) target = $region8
    $region5: #{custom-call.13} parent=1 // loop_body
      %s8 = ssub.s32 %s3, 1
      %s9 = ssub.s32 %s3, 2
      %s25 = sadd.s32 1, %s14
      %p26 = scmp.ge.s32.totalorder %s25, 1
      %s27 = scalar_select %p26, 0, %s25
      %s28 = sadd.s32 1, %s13
      %s29 = scalar_select %p26, %s28, %s13
      %p30 = scmp.ge.s32.totalorder %s29, 1
      %s31 = scalar_select %p30, 0, %s29
      %s32 = sadd.s32 1, %s12
      %s33 = scalar_select %p30, %s32, %s12
      %p34 = scmp.ge.s32.totalorder %s33, 1
      %s35 = scalar_select %p34, 0, %s33
      %s36 = sadd.s32 1, %s11
      %s37 = scalar_select %p34, %s36, %s11
      %p38 = scmp.ge.s32.totalorder %s37, 4
      %s39 = scalar_select %p38, 0, %s37
      %s40 = sadd.s32 1, %s10
      %s41 = scalar_select %p38, %s40, %s10
      %p42 = scmp.ge.s32.totalorder %s41, 2
      %s43 = scalar_select %p42, 0, %s41
      %p44 = scmp.le.s32.totalorder 1, %s3
      %p45 = scmp.lt.s32.totalorder %s3, 9
      %p46 = pnand %p44, %p45
      %p47 = pneg %p46
      // Predicated region
      $region9: #{custom-call.13} parent=5 // pred_check
        _
      $region10: #{custom-call.13} parent=5 // pred_check_branch
        %49 = sbr.rel (%p46) target = $region12
      $region11: #{custom-call.13} parent=5 // pred_region
        %s50 = ssub.s32 %s3, 1
      $region12: #{custom-call.13} parent=5 // pred_fallthru
        _
      %p51 = scmp.lt.s32.totalorder %s3, 8
      // Predicated region
      $region13: #{custom-call.13} parent=5 // pred_check
        %p52 = pneg %p51
      $region14: #{custom-call.13} parent=5 // pred_check_branch
        %54 = sbr.rel (%p52) target = $region16
      $region15: #{custom-call.13} parent=5 // pred_region
        %s55 = sand.u32 %s3, 1
        %s56 = sand.u32 %s3, 1
        %s57 = smul.addr %s56, 4
        %s58 = scalar_lea.vmem [#allocation1], %s57
        %s59 = sadd.s32 %s14, %s13
        %s60 = sadd.s32 %s59, %s12
        %s61 = sadd.s32 %s60, %s11
        %s62 = smul.addr %s10, 4
        %s63 = sadd.s32 %s61, %s62
        %s64 = smul.addr %s63, 4
        %s65 = scalar_lea.vmem %s0, %s64
        // Predicated region
        $region17: #{custom-call.13} parent=15 // pred_check
          _
        $region18: #{custom-call.13} parent=15 // pred_check_branch
          %67 = sbr.rel (0) target = $region20
        $region19: #{custom-call.13} parent=15 // pred_region
          // Predicated region
          $region21: #{custom-call.13} parent=19 // pred_check
            _
          $region22: #{custom-call.13} parent=19 // pred_check_branch
            %69 = sbr.rel target = $region24
          $region23: #{custom-call.13} parent=19 // pred_region
            // Predicated region
            $region36: #{custom-call.13} parent=23 // pred_check
              _
            $region37: #{custom-call.13} parent=23 // pred_check_branch
              %85 = sbr.rel (0) target = $region39
            $region38: #{custom-call.13} parent=23 // pred_region
              %s87 = ssub.s32 16, 1
              loop: start=0, step=1, limit=1
              $region40: #{custom-call.13} parent=38 // loop_pre_header
                _
              $region41: #{custom-call.13} parent=38 // loop_header
                %s89 = sphi 0, %s93
                %p90 = scmp.ge.s32.totalorder %s89, 1
                %s94 = sphi %s65, %s65
                %s95 = sphi %s58, %s58
              $region42: #{custom-call.13} parent=38 // loop_header_branch
                %92 = sbr.rel (%p90) target = $region46
              $region43: #{custom-call.13} parent=38 // loop_body
                %v96 = vld [vmem:[%s94] sm:%s87]
                %97 = vst [vmem:[%s95] sm:%s87] %v96
              $region44: #{custom-call.13} parent=38 // loop_footer
                %s93 = sadd.s32 1, %s89
              $region45: #{custom-call.13} parent=38 // loop_footer_branch
                %88 = sbr.rel target = $region41
              $region46: #{custom-call.13} parent=38 // loop_exit
                _
            $region39: #{custom-call.13} parent=23 // pred_fallthru
              _
          $region24: #{custom-call.13} parent=19 // pred_fallthru
            _
          // Predicated region
          $region25: #{custom-call.13} parent=19 // pred_check
            _
          $region26: #{custom-call.13} parent=19 // pred_check_branch
            %71 = sbr.rel (0) target = $region28
          $region27: #{custom-call.13} parent=19 // pred_region
            %s73 = ssub.s32 16, 1
            loop: start=0, step=1, limit=1
            $region29: #{custom-call.13} parent=27 // loop_pre_header
              _
            $region30: #{custom-call.13} parent=27 // loop_header
              %s75 = sphi 0, %s79
              %p76 = scmp.ge.s32.totalorder %s75, 1
              %s80 = sphi %s65, %s65
              %s81 = sphi %s58, %s58
            $region31: #{custom-call.13} parent=27 // loop_header_branch
              %78 = sbr.rel (%p76) target = $region35
            $region32: #{custom-call.13} parent=27 // loop_body
              %v82 = vld [vmem:[%s80] sm:%s73]
              %83 = vst [vmem:[%s81] sm:%s73] %v82
            $region33: #{custom-call.13} parent=27 // loop_footer
              %s79 = sadd.s32 1, %s75
            $region34: #{custom-call.13} parent=27 // loop_footer_branch
              %74 = sbr.rel target = $region30
            $region35: #{custom-call.13} parent=27 // loop_exit
              _
          $region28: #{custom-call.13} parent=19 // pred_fallthru
            _
        $region20: #{custom-call.13} parent=15 // pred_fallthru
          _
        %98 = vnop
      $region16: #{custom-call.13} parent=5 // pred_fallthru
        _
      %p99 = scmp.le.s32.totalorder 1, %s3
      %p100 = scmp.lt.s32.totalorder %s3, 9
      %p101 = pnand %p99, %p100
      %p102 = pneg %p101
      // Predicated region
      $region47: #{custom-call.13} parent=5 // pred_check
        _
      $region48: #{custom-call.13} parent=5 // pred_check_branch
        %104 = sbr.rel (%p101) target = $region50
      $region49: #{custom-call.13} parent=5 // pred_region
        #allocation4 [shape = 'f32[4,4]{1,0}', space=vmem, size = 0x1000, scoped, tag = 'rescaled input a']
        %s105 = ssub.s32 %s3, 1
        %s106 = sand.u32 %s8, 1
        %s107 = sand.u32 %s8, 1
        %s108 = smul.addr %s107, 4
        %s109 = scalar_lea.vmem [#allocation1], %s108
        %s110 = sand.u32 %s8, 1
        %s111 = sand.u32 %s8, 1
        %s112 = smul.addr %s111, 4
        %s113 = scalar_lea.vmem [#allocation1], %s112
        %s114 = sand.u32 %s8, 1
        %s115 = sand.u32 %s8, 1
        %s116 = smul.addr %s115, 4
        %s117 = scalar_lea.vmem [#allocation3], %s116
        %s119 = ssub.s32 16, 1
        %v120 = vld [vmem:[%s113] sm:%s119]
        %121 = vst [vmem:[#allocation0] sm:%s119] %v120
        %v122 = vlaneseq
        %v123 = vand.u32 %v122, 127
        %vm124 = vcmp.lt.s32.totalorder %v123, 4
        %v125 = vlaneseq
        %v126 = vshrl.u32 %v125, 7
        %vm128 = vcmp.eq.s32.totalorder %v126, %v123
        %v129 = vld [vmem:[#allocation0] sm:$0xff]
        %v130 = vsel %vm128, %v129, 0.0
        %131 = vadd.xlane.f32.xlu0 %v130
        %v132 = vpop.xlane.xlu0 %131
        %vm133 = vcmp.ge.s32.totalorder %v126, %v123
        %vm134 = vmand %vm133, %vm124
        %v135 = vsel %vm134, %v129, 0.0
        %v136 = vrcp.pop %v132
        %v137 = vmul.f32 %v132, %v136
        %v138 = vsub.f32 1.0, %v137
        %v139 = vmul.f32 %v136, %v138
        %v140 = vadd.f32 %v136, %v139
        %vm141 = vweird.f32 %v132
        %vm142 = vweird.f32 %v136
        %vm143 = vmor %vm141, %vm142
        %v144 = vsel %vm143, %v136, %v140
        %v145 = vand.u32 2147483647, %v132
        %vm146 = vcmp.eq.f32.partialorder %v145, 8.507059e+37
        %v147 = vand.u32 %v132, 2147483648
        %v148 = vor.u32 1.1754944e-38, %v147
        %v149 = vsel %vm146, %v148, %v144
        %v150 = vmul.f32 %v135, %v149
        %151 = vst [vmem:[#allocation4] sm:$0xff] %v150
        %v152 = vlaneseq
        %v153 = vand.u32 %v152, 127
        %v154 = vlaneseq
        %v155 = vshrl.u32 %v154, 7
        %vm157 = vcmp.eq.s32.totalorder %v153, %v155
        %v158 = vlaneseq
        %v159 = vand.u32 %v158, 127
        %vm160 = vcmp.eq.s32.totalorder %v159, 0
        %v161 = vsel %vm160, 1.0, -1.0
        %v162 = vsel %vm157, %v161, 0.0
        %s163 = scalar_lea.vmem [#allocation4], 1
        %v164 = vld [vmem:[%s163] ss:$0 sm:$0xff]
        %v165 = vxor.u32 %v164, 2147483648
        %v166 = vlaneseq
        %v167 = vand.u32 %v166, 127
        %vm168 = vcmp.eq.s32.totalorder %v167, 1
        %v169 = vmul.f32 %v165, %v162
        %170 = vadd.xlane.f32.xlu0 %v169
        %v171 = vpop.xlane.xlu0 %170
        %v172 = vsel %vm168, %v171, %v162
        %s173 = scalar_lea.vmem [#allocation4], 2
        %v174 = vld [vmem:[%s173] ss:$0 sm:$0xff]
        %v175 = vxor.u32 %v174, 2147483648
        %v176 = vlaneseq
        %v177 = vand.u32 %v176, 127
        %vm178 = vcmp.eq.s32.totalorder %v177, 2
        %v179 = vmul.f32 %v175, %v172
        %180 = vadd.xlane.f32.xlu0 %v179
        %v181 = vpop.xlane.xlu0 %180
        %v182 = vsel %vm178, %v181, %v172
        %s183 = scalar_lea.vmem [#allocation4], 3
        %v184 = vld [vmem:[%s183] ss:$0 sm:$0xff]
        %v185 = vxor.u32 %v184, 2147483648
        %v186 = vlaneseq
        %v187 = vand.u32 %v186, 127
        %vm188 = vcmp.eq.s32.totalorder %v187, 3
        %v189 = vmul.f32 %v185, %v182
        %190 = vadd.xlane.f32.xlu0 %v189
        %v191 = vpop.xlane.xlu0 %190
        %v192 = vsel %vm188, %v191, %v182
        %v193 = vrcp.pop %v132
        %v194 = vmul.f32 %v132, %v193
        %v195 = vsub.f32 1.0, %v194
        %v196 = vmul.f32 %v193, %v195
        %v197 = vadd.f32 %v193, %v196
        %vm198 = vweird.f32 %v132
        %vm199 = vweird.f32 %v193
        %vm200 = vmor %vm198, %vm199
        %v201 = vsel %vm200, %v193, %v197
        %v202 = vand.u32 2147483647, %v132
        %vm203 = vcmp.eq.f32.partialorder %v202, 8.507059e+37
        %v204 = vand.u32 %v132, 2147483648
        %v205 = vor.u32 1.1754944e-38, %v204
        %v206 = vsel %vm203, %v205, %v201
        %v207 = vmul.f32 %v192, %v206
        %vm208 = vweird.f32 %v132
        %v209 = vsel %vm208, %v192, %v207
        %210 = vst [vmem:[#allocation2] sm:$0xff] %v209
        %s212 = ssub.s32 16, 1
        %v213 = vld [vmem:[#allocation2] sm:%s212]
        %s215 = ssub.s32 16, 1
        %216 = vst [vmem:[%s117] sm:%s215] %v213
        %s217 = sand.u32 %s8, 1
        %s218 = sand.u32 %s8, 1
        %s219 = smul.addr %s218, 4
        %s220 = scalar_lea.vmem [#allocation3], %s219
        %s221 = sadd.s32 %s19, %s18
        %s222 = sadd.s32 %s221, %s17
        %s223 = sadd.s32 %s222, %s16
        %s224 = smul.addr %s15, 4
        %s225 = sadd.s32 %s223, %s224
        %s226 = smul.addr %s225, 4
        %s227 = scalar_lea.vmem %s1, %s226
        // Predicated region
        $region51: #{custom-call.13} parent=49 // pred_check
          _
        $region52: #{custom-call.13} parent=49 // pred_check_branch
          %229 = sbr.rel (0) target = $region54
        $region53: #{custom-call.13} parent=49 // pred_region
          // Predicated region
          $region55: #{custom-call.13} parent=53 // pred_check
            _
          $region56: #{custom-call.13} parent=53 // pred_check_branch
            %231 = sbr.rel target = $region58
          $region57: #{custom-call.13} parent=53 // pred_region
            // Predicated region
            $region70: #{custom-call.13} parent=57 // pred_check
              _
            $region71: #{custom-call.13} parent=57 // pred_check_branch
              %247 = sbr.rel (0) target = $region73
            $region72: #{custom-call.13} parent=57 // pred_region
              %s249 = ssub.s32 16, 1
              loop: start=0, step=1, limit=1
              $region74: #{custom-call.13} parent=72 // loop_pre_header
                _
              $region75: #{custom-call.13} parent=72 // loop_header
                %s251 = sphi 0, %s255
                %p252 = scmp.ge.s32.totalorder %s251, 1
                %s256 = sphi %s220, %s220
                %s257 = sphi %s227, %s227
              $region76: #{custom-call.13} parent=72 // loop_header_branch
                %254 = sbr.rel (%p252) target = $region80
              $region77: #{custom-call.13} parent=72 // loop_body
                %v258 = vld [vmem:[%s256] sm:%s249]
                %259 = vst [vmem:[%s257] sm:%s249] %v258
              $region78: #{custom-call.13} parent=72 // loop_footer
                %s255 = sadd.s32 1, %s251
              $region79: #{custom-call.13} parent=72 // loop_footer_branch
                %250 = sbr.rel target = $region75
              $region80: #{custom-call.13} parent=72 // loop_exit
                _
            $region73: #{custom-call.13} parent=57 // pred_fallthru
              _
          $region58: #{custom-call.13} parent=53 // pred_fallthru
            _
          // Predicated region
          $region59: #{custom-call.13} parent=53 // pred_check
            _
          $region60: #{custom-call.13} parent=53 // pred_check_branch
            %233 = sbr.rel (0) target = $region62
          $region61: #{custom-call.13} parent=53 // pred_region
            %s235 = ssub.s32 16, 1
            loop: start=0, step=1, limit=1
            $region63: #{custom-call.13} parent=61 // loop_pre_header
              _
            $region64: #{custom-call.13} parent=61 // loop_header
              %s237 = sphi 0, %s241
              %p238 = scmp.ge.s32.totalorder %s237, 1
              %s242 = sphi %s220, %s220
              %s243 = sphi %s227, %s227
            $region65: #{custom-call.13} parent=61 // loop_header_branch
              %240 = sbr.rel (%p238) target = $region69
            $region66: #{custom-call.13} parent=61 // loop_body
              %v244 = vld [vmem:[%s242] sm:%s235]
              %245 = vst [vmem:[%s243] sm:%s235] %v244
            $region67: #{custom-call.13} parent=61 // loop_footer
              %s241 = sadd.s32 1, %s237
            $region68: #{custom-call.13} parent=61 // loop_footer_branch
              %236 = sbr.rel target = $region64
            $region69: #{custom-call.13} parent=61 // loop_exit
              _
          $region62: #{custom-call.13} parent=53 // pred_fallthru
            _
        $region54: #{custom-call.13} parent=49 // pred_fallthru
          _
        %260 = vnop
      $region50: #{custom-call.13} parent=5 // pred_fallthru
        _
      %p261 = scmp.le.s32.totalorder 2, %s3
      // Predicated region
      $region81: #{custom-call.13} parent=5 // pred_check
        %p262 = pneg %p261
      $region82: #{custom-call.13} parent=5 // pred_check_branch
        %264 = sbr.rel (%p262) target = $region84
      $region83: #{custom-call.13} parent=5 // pred_region
        %s265 = ssub.s32 %s3, 2
        %s266 = sand.u32 %s9, 1
        %s267 = sand.u32 %s9, 1
        %s268 = smul.addr %s267, 4
        %s269 = scalar_lea.vmem [#allocation3], %s268
      $region84: #{custom-call.13} parent=5 // pred_fallthru
        _
    $region6: #{custom-call.13} parent=1 // loop_footer
      %s7 = sadd.s32 1, %s3
    $region7: #{custom-call.13} parent=1 // loop_footer_branch
      %2 = sbr.rel target = $region3
    $region8: #{custom-call.13} parent=1 // loop_exit
      _

// kernel: forward.4
$region0: #{forward.4}
  #allocation0 [shape = 'u32[]', space=smem, size = 0x4, offset = 0x4, fixed_abs, tag = 'smem constant byte address 0x4 - core index']
  #allocation1 [shape = 'u32[72,128]{1,0:T(1,128)}', space=vmem, size = 0x9000, scoped, tag = 'internal scratch']
  %s0 = inlined_call_operand.vmem [shape: f32[2,4,256], index: 0, kind: input, shape index: {}]
  %s1 = inlined_call_operand.vmem [shape: f32[2,4,4], index: 1, kind: input, shape index: {}]
  %s2 = inlined_call_operand.vmem [shape: s32[2,1,256], index: 2, kind: output, shape index: {0}]
  %s3 = inlined_call_operand.vmem [shape: f32[2,4,1], index: 3, kind: output, shape index: {1}]
  %s4 = inlined_call_operand.vmem [shape: f32[2,4,4], index: 4, kind: output, shape index: {2}]
  %s5 = inlined_call_operand.vmem [shape: f32[2,4,4,4], index: 5, kind: output, shape index: {3}]
  %6 = xla_tuple %s2, %s3, %s4, %s5
  %s7 = sld [smem:[#allocation0]]
  $region69: #{forward.4} parent=0
    _
  %s9 = ssub.s32 1, %s7
  %s10 = scalar_select 0, %s9, %s7
  loop: start=0, step=1, limit=4
  $region2: #{forward.4} parent=0 // loop_pre_header
    _
  $region3: #{forward.4} parent=0 // loop_header
    %s12 = sphi 0, %s16
    %p13 = scmp.ge.s32.totalorder %s12, 4
    %s19 = sphi 0, %s31
    %s20 = sphi 0, %s27
    %s21 = sphi 0, %s19
    %s22 = sphi 0, %s20
    %s23 = sphi 0, %s21
    %s24 = sphi 0, %s22
    %s36 = sphi 0, %s38
    %s39 = sphi 0, %s36
    %s40 = sphi 0, %s39
    %s56 = sphi 0, %s40
    %s62 = sphi 0, %s64
    %s65 = sphi 0, %s62
    %s66 = sphi 0, %s65
    %s82 = sphi 0, %s66
    %s90 = sphi 0, %s92
    %s93 = sphi 0, %s90
    %s94 = sphi 0, %s93
    %s110 = sphi 0, %s94
    %s116 = sphi 0, %s118
    %s119 = sphi 0, %s116
    %s120 = sphi 0, %s119
    %s136 = sphi 0, %s120
    %s142 = sphi 0, %s144
    %s145 = sphi 0, %s142
    %s146 = sphi 0, %s145
    %s162 = sphi 0, %s146
    %s168 = sphi 0, %s170
    %s171 = sphi 0, %s168
    %s172 = sphi 0, %s171
    %s188 = sphi 0, %s172
  $region4: #{forward.4} parent=0 // loop_header_branch
    %15 = sbr.rel (%p13) target = $region8
  $region5: #{forward.4} parent=0 // loop_body
    %s17 = ssub.s32 %s12, 1
    %s18 = ssub.s32 %s12, 2
    %s25 = sadd.s32 1, %s20
    %p26 = scmp.ge.s32.totalorder %s25, 1
    %s27 = scalar_select %p26, 0, %s25
    %s28 = sadd.s32 1, %s19
    %s29 = scalar_select %p26, %s28, %s19
    %p30 = scmp.ge.s32.totalorder %s29, 2
    %s31 = scalar_select %p30, 0, %s29
    %s32 = ssub.s32 %s19, %s31
    %s33 = ssub.s32 %s20, %s27
    %s34 = sor.u32 %s32, %s33
    %p35 = scmp.eq.s32.totalorder %s34, 0
    %s37 = sadd.s32 %s36, 1
    %s38 = scalar_select %p35, %s36, %s37
    %p41 = pneg %p35
    %p42 = scmp.eq.s32.totalorder %s12, 1
    %p43 = por %p41, %p42
    %p44 = scmp.ne.s32.totalorder %s36, %s39
    %p45 = scmp.eq.s32.totalorder %s12, 0
    %p46 = por %p44, %p45
    %p47 = scmp.ne.s32.totalorder %s36, %s39
    %p48 = scmp.eq.s32.totalorder %s17, 1
    %p49 = por %p47, %p48
    %p50 = scmp.ne.s32.totalorder %s39, %s40
    %p51 = scmp.eq.s32.totalorder %s17, 0
    %p52 = por %p50, %p51
    %p53 = scmp.ne.s32.totalorder %s39, %s40
    %p54 = scmp.eq.s32.totalorder %s18, 1
    %p55 = por %p53, %p54
    %p57 = scmp.ne.s32.totalorder %s40, %s56
    %p58 = scmp.eq.s32.totalorder %s18, 0
    %p59 = por %p57, %p58
    %s60 = ssub.s32 %s19, %s31
    %p61 = scmp.eq.s32.totalorder %s60, 0
    %s63 = sadd.s32 %s62, 1
    %s64 = scalar_select %p61, %s62, %s63
    %p67 = pneg %p61
    %p68 = scmp.eq.s32.totalorder %s12, 1
    %p69 = por %p67, %p68
    %p70 = scmp.ne.s32.totalorder %s62, %s65
    %p71 = scmp.eq.s32.totalorder %s12, 0
    %p72 = por %p70, %p71
    %p73 = scmp.ne.s32.totalorder %s62, %s65
    %p74 = scmp.eq.s32.totalorder %s17, 1
    %p75 = por %p73, %p74
    %p76 = scmp.ne.s32.totalorder %s65, %s66
    %p77 = scmp.eq.s32.totalorder %s17, 0
    %p78 = por %p76, %p77
    %p79 = scmp.ne.s32.totalorder %s65, %s66
    %p80 = scmp.eq.s32.totalorder %s18, 1
    %p81 = por %p79, %p80
    %p83 = scmp.ne.s32.totalorder %s66, %s82
    %p84 = scmp.eq.s32.totalorder %s18, 0
    %p85 = por %p83, %p84
    %s86 = ssub.s32 %s19, %s31
    %s87 = ssub.s32 %s20, %s27
    %s88 = sor.u32 %s86, %s87
    %p89 = scmp.eq.s32.totalorder %s88, 0
    %s91 = sadd.s32 %s90, 1
    %s92 = scalar_select %p89, %s90, %s91
    %p95 = pneg %p89
    %p96 = scmp.eq.s32.totalorder %s12, 1
    %p97 = por %p95, %p96
    %p98 = scmp.ne.s32.totalorder %s90, %s93
    %p99 = scmp.eq.s32.totalorder %s12, 0
    %p100 = por %p98, %p99
    %p101 = scmp.ne.s32.totalorder %s90, %s93
    %p102 = scmp.eq.s32.totalorder %s17, 1
    %p103 = por %p101, %p102
    %p104 = scmp.ne.s32.totalorder %s93, %s94
    %p105 = scmp.eq.s32.totalorder %s17, 0
    %p106 = por %p104, %p105
    %p107 = scmp.ne.s32.totalorder %s93, %s94
    %p108 = scmp.eq.s32.totalorder %s18, 1
    %p109 = por %p107, %p108
    %p111 = scmp.ne.s32.totalorder %s94, %s110
    %p112 = scmp.eq.s32.totalorder %s18, 0
    %p113 = por %p111, %p112
    %s114 = ssub.s32 %s19, %s31
    %p115 = scmp.eq.s32.totalorder %s114, 0
    %s117 = sadd.s32 %s116, 1
    %s118 = scalar_select %p115, %s116, %s117
    %p121 = pneg %p115
    %p122 = scmp.eq.s32.totalorder %s12, 1
    %p123 = por %p121, %p122
    %p124 = scmp.ne.s32.totalorder %s116, %s119
    %p125 = scmp.eq.s32.totalorder %s12, 0
    %p126 = por %p124, %p125
    %p127 = scmp.ne.s32.totalorder %s116, %s119
    %p128 = scmp.eq.s32.totalorder %s17, 1
    %p129 = por %p127, %p128
    %p130 = scmp.ne.s32.totalorder %s119, %s120
    %p131 = scmp.eq.s32.totalorder %s17, 0
    %p132 = por %p130, %p131
    %p133 = scmp.ne.s32.totalorder %s119, %s120
    %p134 = scmp.eq.s32.totalorder %s18, 1
    %p135 = por %p133, %p134
    %p137 = scmp.ne.s32.totalorder %s120, %s136
    %p138 = scmp.eq.s32.totalorder %s18, 0
    %p139 = por %p137, %p138
    %s140 = ssub.s32 %s19, %s31
    %p141 = scmp.eq.s32.totalorder %s140, 0
    %s143 = sadd.s32 %s142, 1
    %s144 = scalar_select %p141, %s142, %s143
    %p147 = pneg %p141
    %p148 = scmp.eq.s32.totalorder %s12, 1
    %p149 = por %p147, %p148
    %p150 = scmp.ne.s32.totalorder %s142, %s145
    %p151 = scmp.eq.s32.totalorder %s12, 0
    %p152 = por %p150, %p151
    %p153 = scmp.ne.s32.totalorder %s142, %s145
    %p154 = scmp.eq.s32.totalorder %s17, 1
    %p155 = por %p153, %p154
    %p156 = scmp.ne.s32.totalorder %s145, %s146
    %p157 = scmp.eq.s32.totalorder %s17, 0
    %p158 = por %p156, %p157
    %p159 = scmp.ne.s32.totalorder %s145, %s146
    %p160 = scmp.eq.s32.totalorder %s18, 1
    %p161 = por %p159, %p160
    %p163 = scmp.ne.s32.totalorder %s146, %s162
    %p164 = scmp.eq.s32.totalorder %s18, 0
    %p165 = por %p163, %p164
    %s166 = ssub.s32 %s19, %s31
    %p167 = scmp.eq.s32.totalorder %s166, 0
    %s169 = sadd.s32 %s168, 1
    %s170 = scalar_select %p167, %s168, %s169
    %p173 = pneg %p167
    %p174 = scmp.eq.s32.totalorder %s12, 1
    %p175 = por %p173, %p174
    %p176 = scmp.ne.s32.totalorder %s168, %s171
    %p177 = scmp.eq.s32.totalorder %s12, 0
    %p178 = por %p176, %p177
    %p179 = scmp.ne.s32.totalorder %s168, %s171
    %p180 = scmp.eq.s32.totalorder %s17, 1
    %p181 = por %p179, %p180
    %p182 = scmp.ne.s32.totalorder %s171, %s172
    %p183 = scmp.eq.s32.totalorder %s17, 0
    %p184 = por %p182, %p183
    %p185 = scmp.ne.s32.totalorder %s171, %s172
    %p186 = scmp.eq.s32.totalorder %s18, 1
    %p187 = por %p185, %p186
    %p189 = scmp.ne.s32.totalorder %s172, %s188
    %p190 = scmp.eq.s32.totalorder %s18, 0
    %p191 = por %p189, %p190
    %p192 = scmp.le.s32.totalorder 1, %s12
    %p193 = scmp.lt.s32.totalorder %s12, 3
    %p194 = pnand %p192, %p193
    %p195 = pneg %p194
    // Predicated region
    $region9: #{forward.4} parent=5 // pred_check
      _
    $region10: #{forward.4} parent=5 // pred_check_branch
      %197 = sbr.rel (%p194) target = $region12
    $region11: #{forward.4} parent=5 // pred_region
      %s198 = ssub.s32 %s12, 1
    $region12: #{forward.4} parent=5 // pred_fallthru
      _
    %p199 = scmp.lt.s32.totalorder %s12, 2
    // Predicated region
    $region13: #{forward.4} parent=5 // pred_check
      %p200 = pneg %p199
    $region14: #{forward.4} parent=5 // pred_check_branch
      %202 = sbr.rel (%p200) target = $region16
    $region15: #{forward.4} parent=5 // pred_region
      // Predicated region
      $region17: #{forward.4} parent=15 // pred_check
        %p203 = pneg %p46
      $region18: #{forward.4} parent=15 // pred_check_branch
        %205 = sbr.rel (%p203) target = $region20
      $region19: #{forward.4} parent=15 // pred_region
        %s206 = smul.u32 2, %s20
        %p207 = scmp.lt.s32.totalorder %s19, 1
        %s208 = scalar_select %p207, %s19, 1
        %p209 = scmp.lt.s32.totalorder %s206, 1
        %s210 = scalar_select %p209, %s206, 1
        %s211 = smul.addr %s208, 2
        %s212 = sadd.s32 %s210, %s211
        %s213 = smul.addr %s212, 4
        %s214 = scalar_lea.vmem %s0, %s213
        %s215 = smul.u32 2, %s20
      $region20: #{forward.4} parent=15 // pred_fallthru
        _
      // Predicated region
      $region21: #{forward.4} parent=15 // pred_check
        %p216 = pneg %p72
      $region22: #{forward.4} parent=15 // pred_check_branch
        %218 = sbr.rel (%p216) target = $region24
      $region23: #{forward.4} parent=15 // pred_region
        %p219 = scmp.lt.s32.totalorder %s19, 1
        %s220 = scalar_select %p219, %s19, 1
        %s221 = smul.addr %s220, 4
        %s222 = scalar_lea.vmem %s1, %s221
      $region24: #{forward.4} parent=15 // pred_fallthru
        _
    $region16: #{forward.4} parent=5 // pred_fallthru
      _
    %p223 = scmp.le.s32.totalorder 1, %s12
    %p224 = scmp.lt.s32.totalorder %s12, 3
    %p225 = pnand %p223, %p224
    %p226 = pneg %p225
    // Predicated region
    $region25: #{forward.4} parent=5 // pred_check
      _
    $region26: #{forward.4} parent=5 // pred_check_branch
      %228 = sbr.rel (%p225) target = $region28
    $region27: #{forward.4} parent=5 // pred_region
      %s229 = ssub.s32 %s12, 1
      %s230 = smul.u32 2, %s22
      %p231 = scmp.lt.s32.totalorder %s21, 1
      %s232 = scalar_select %p231, %s21, 1
      %p233 = scmp.lt.s32.totalorder %s230, 1
      %s234 = scalar_select %p233, %s230, 1
      %s235 = smul.addr %s232, 2
      %s236 = sadd.s32 %s234, %s235
      %s237 = smul.addr %s236, 4
      %s238 = scalar_lea.vmem %s0, %s237
      %p239 = pneg %p52
      %p240 = pneg %p49
      %p241 = scmp.lt.s32.totalorder %s21, 1
      %s242 = scalar_select %p241, %s21, 1
      %s243 = smul.addr %s242, 4
      %s244 = scalar_lea.vmem %s1, %s243
      %p245 = pneg %p78
      %p246 = pneg %p75
      %p247 = pneg %p106
      %p248 = pneg %p103
      %s249 = smul.u32 2, %s22
      %p250 = scmp.lt.s32.totalorder %s21, 1
      %s251 = scalar_select %p250, %s21, 1
      %p252 = scmp.lt.s32.totalorder %s249, 1
      %s253 = scalar_select %p252, %s249, 1
      %s254 = smul.addr %s251, 2
      %s255 = sadd.s32 %s253, %s254
      %s256 = scalar_lea.vmem %s2, %s255
      %p257 = pneg %p132
      %p258 = pneg %p129
      %p259 = scmp.lt.s32.totalorder %s21, 1
      %s260 = scalar_select %p259, %s21, 1
      %s261 = smul.addr %s260, 4
      %s262 = scalar_lea.vmem %s3, %s261
      %p263 = pneg %p158
      %p264 = pneg %p155
      %p265 = scmp.lt.s32.totalorder %s21, 1
      %s266 = scalar_select %p265, %s21, 1
      %s267 = smul.addr %s266, 4
      %s268 = scalar_lea.vmem %s4, %s267
      %p269 = pneg %p184
      %p270 = pneg %p181
      %p271 = scmp.lt.s32.totalorder %s21, 1
      %s272 = scalar_select %p271, %s21, 1
      %s273 = smul.addr %s272, 4
      %s274 = smul.addr %s273, 4
      %s275 = scalar_lea.vmem %s5, %s274
      %s276 = smul.u32 2, %s22
      %p277 = scmp.lt.s32.totalorder %s21, 1
      %s278 = scalar_select %p277, %s21, 1
      %p279 = scmp.lt.s32.totalorder %s276, 1
      %s280 = scalar_select %p279, %s276, 1
      %s281 = smul.addr %s278, 2
      %s282 = sadd.s32 %s280, %s281
      %s283 = smul.addr %s282, 4
      %s284 = scalar_lea.vmem %s0, %s283
      %s285 = smul.u32 2, %s22
      %p286 = scmp.lt.s32.totalorder %s21, 1
      %s287 = scalar_select %p286, %s21, 1
      %s288 = smul.addr %s287, 4
      %s289 = scalar_lea.vmem %s1, %s288
      %s290 = smul.u32 2, %s22
      %p291 = scmp.lt.s32.totalorder %s21, 1
      %s292 = scalar_select %p291, %s21, 1
      %p293 = scmp.lt.s32.totalorder %s290, 1
      %s294 = scalar_select %p293, %s290, 1
      %s295 = smul.addr %s292, 2
      %s296 = sadd.s32 %s294, %s295
      %s297 = scalar_lea.vmem %s2, %s296
      %s298 = smul.u32 2, %s22
      %p299 = scmp.lt.s32.totalorder %s21, 1
      %s300 = scalar_select %p299, %s21, 1
      %s301 = smul.addr %s300, 4
      %s302 = scalar_lea.vmem %s3, %s301
      %p303 = scmp.lt.s32.totalorder %s21, 1
      %s304 = scalar_select %p303, %s21, 1
      %s305 = smul.addr %s304, 4
      %s306 = scalar_lea.vmem %s4, %s305
      %p307 = scmp.lt.s32.totalorder %s21, 1
      %s308 = scalar_select %p307, %s21, 1
      %s309 = smul.addr %s308, 4
      %s310 = smul.addr %s309, 4
      %s311 = scalar_lea.vmem %s5, %s310
      %v312 = vld [vmem:[%s284] sm:$0xff]
      %v313 = vld [vmem:[%s289] sm:$0xf]
      %v314 = vmul.f32 %v313, %v313
      %vm315 = vcmask 27648
      %v316 = vsel %vm315, %v314, 0.0
      %317 = vadd.xlane.f32.xlu0 %v316
      %v318 = vpop.xlane.xlu0 %317
      %320 = vst [vmem:[#allocation1] ss:$2 sm:$0xff] %v312
      %v321 = vld.sshfl [vmem:[#allocation1] sm:$0xff pattern:$0x75316420]
      %v322 = vld.sshfl [vmem:[#allocation1 + $0x8] sm:$0xff pattern:$0x75316420]
      %vm323 = vcmask 31744
      %v325 = vsel %vm323, %v313, 0
      %vm327 = vcmask 1043456
      %v328 = vsel %vm327, %v321, 0
      %v330 = vsel %vm327, %v322, 0
      %332 = vmatpush.msra.mxu0 0.0
      %333 = vmatpush.msra.mxu0 0.0
      %334 = vmatpush.msra.mxu0 0.0
      %335 = vmatpush.msra.mxu0 0.0
      %336 = vmatpush.msra.mxu0 0.0
      %337 = vmatpush.msra.mxu0 0.0
      %338 = vmatpush.msra.mxu0 0.0
      %339 = vmatpush.msra.mxu0 0.0
      %340 = vmatpush.msra.mxu0 0.0
      %341 = vmatpush.msra.mxu0 0.0
      %342 = vmatpush.msra.mxu0 0.0
      %343 = vmatpush.msra.mxu0 0.0
      %344 = vmatpush.msra.mxu0 0.0
      %345 = vmatpush.msra.mxu0 0.0
      %346 = vmatpush.msra.mxu0 0.0
      %347 = vmatpush.msra.mxu0 %v328
      %348 = vmatmul.f32.gmra.mxu0 %v325
      %v349 = vpop.f32.mrf.mxu0
      %v350 = vadd.f32 0.0, %v349
      %351 = vdwg.mxu0
      %352 = vmatpush.msra.mxu0 0.0
      %353 = vmatpush.msra.mxu0 0.0
      %354 = vmatpush.msra.mxu0 0.0
      %355 = vmatpush.msra.mxu0 0.0
      %356 = vmatpush.msra.mxu0 0.0
      %357 = vmatpush.msra.mxu0 0.0
      %358 = vmatpush.msra.mxu0 0.0
      %359 = vmatpush.msra.mxu0 0.0
      %360 = vmatpush.msra.mxu0 0.0
      %361 = vmatpush.msra.mxu0 0.0
      %362 = vmatpush.msra.mxu0 0.0
      %363 = vmatpush.msra.mxu0 0.0
      %364 = vmatpush.msra.mxu0 0.0
      %365 = vmatpush.msra.mxu0 0.0
      %366 = vmatpush.msra.mxu0 0.0
      %367 = vmatpush.msra.mxu0 %v330
      %368 = vmatmul.f32.gmra.mxu0 %v325
      %v369 = vpop.f32.mrf.mxu0
      %v370 = vadd.f32 0.0, %v369
      %371 = vdwg.mxu0
      %v372 = vmul.f32 %v350, 2.0
      %v373 = vmul.f32 %v370, 2.0
      %v374 = vsub.f32 %v318, %v372
      %v375 = vsub.f32 %v318, %v373
      %v376 = vlaneseq
      %v377 = vshrl.u32 %v376, 7
      %v378 = vsel %vm327, %v374, inf
      %v379 = vrot.slane %v378, 4
      %v380 = vmin.f32 %v378, %v379
      %v381 = vrot.slane %v380, 2
      %v382 = vmin.f32 %v380, %v381
      %v383 = vrot.slane %v382, 1
      %v384 = vmin.f32 %v382, %v383
      %v385 = vsel %vm327, %v375, inf
      %v386 = vrot.slane %v385, 4
      %v387 = vmin.f32 %v385, %v386
      %v388 = vrot.slane %v387, 2
      %v389 = vmin.f32 %v387, %v388
      %v390 = vrot.slane %v389, 1
      %v391 = vmin.f32 %v389, %v390
      %vm392 = vcmp.le.f32.partialorder %v374, %v384
      %vm393 = vcmp.le.f32.partialorder %v375, %v391
      %v394 = vsel %vm392, %v377, 4
      %v395 = vsel %vm393, %v377, 4
      %v396 = vsel %vm327, %v394, 2147483647
      %v397 = vrot.slane %v396, 4
      %vm398 = vcmp.lt.s32.totalorder %v396, %v397
      %v399 = vsel %vm398, %v396, %v397
      %v400 = vrot.slane %v399, 2
      %vm401 = vcmp.lt.s32.totalorder %v399, %v400
      %v402 = vsel %vm401, %v399, %v400
      %v403 = vrot.slane %v402, 1
      %vm404 = vcmp.lt.s32.totalorder %v402, %v403
      %v405 = vsel %vm404, %v402, %v403
      %v406 = vsel %vm327, %v395, 2147483647
      %v407 = vrot.slane %v406, 4
      %vm408 = vcmp.lt.s32.totalorder %v406, %v407
      %v409 = vsel %vm408, %v406, %v407
      %v410 = vrot.slane %v409, 2
      %vm411 = vcmp.lt.s32.totalorder %v409, %v410
      %v412 = vsel %vm411, %v409, %v410
      %v413 = vrot.slane %v412, 1
      %vm414 = vcmp.lt.s32.totalorder %v412, %v413
      %v415 = vsel %vm414, %v412, %v413
      %v416 = vrot.slane %v415, 7
      %vm417 = vcmask 1040384
      %v418 = vsel %vm417, %v405, %v416
      %v419 = vlaneseq
      %vm420 = vcmp.ge.s32.totalorder %v419, 0
      %vm421 = vcmp.lt.s32.totalorder %v419, 256
      %vm422 = vmand %vm420, %vm421
      %423 = vst.msk [vmem:[%s297] sm:$0x3] %vm422, %v418
      %vm424 = vcmp.eq.s32.totalorder %v377, %v405
      %vm425 = vcmp.eq.s32.totalorder %v377, %v415
      %v426 = vsel %vm424, 1, 0
      %v427 = vsel %vm425, 1, 0
      %v428 = vcvt.s32.f32 %v426
      %v429 = vcvt.s32.f32 %v427
      %p430 = scmp.eq.s32.totalorder %s22, 0
      // Predicated region
      $region29: #{forward.4} parent=27 // pred_check
        %p431 = pneg %p430
      $region30: #{forward.4} parent=27 // pred_check_branch
        %433 = sbr.rel (%p431) target = $region32
      $region31: #{forward.4} parent=27 // pred_region
        %vm434 = vcmask 3072
        %435 = vst.msk [vmem:[%s302] sm:$0xf] %vm434, 0.0
        %436 = vst.msk [vmem:[%s306] sm:$0xf] %vm315, 0.0
        %437 = vst.msk [vmem:[%s311] sm:$0xf] %vm315, 0.0
        %438 = vst.msk [vmem:[%s311 + $0x4] sm:$0xf] %vm315, 0.0
        %439 = vst.msk [vmem:[%s311 + $0x8] sm:$0xf] %vm315, 0.0
        %440 = vst.msk [vmem:[%s311 + $0xc] sm:$0xf] %vm315, 0.0
      $region32: #{forward.4} parent=27 // pred_fallthru
        _
      %v441 = vld [vmem:[%s302] sm:$0xf]
      %v442 = vsel %vm327, %v428, 0.0
      %v443 = vsel %vm327, %v429, 0.0
      %v444 = vadd.f32 %v442, %v443
      %445 = vadd.xlane.f32.xlu0 %v444
      %v446 = vpop.xlane.xlu0 %445
      %v447 = vadd.f32 %v441, %v446
      %vm448 = vcmask 3072
      %449 = vst.msk [vmem:[%s302] sm:$0xf] %vm448, %v447
      %v450 = vld [vmem:[%s306] sm:$0xf]
      %451 = vst [vmem:[#allocation1] ss:$2 sm:$0xff] %v312
      %v452 = vld.sshfl [vmem:[#allocation1] sm:$0xff pattern:$0x75316420]
      %v453 = vld.sshfl [vmem:[#allocation1 + $0x8] sm:$0xff pattern:$0x75316420]
      %456 = vmatpush.xpose.msra.mxu0 0.0
      %457 = vmatpush.xpose.msra.mxu0 0.0
      %458 = vmatpush.xpose.msra.mxu0 0.0
      %459 = vmatpush.xpose.msra.mxu0 0.0
      %460 = vmatpush.xpose.msra.mxu0 0.0
      %461 = vmatpush.xpose.msra.mxu0 0.0
      %462 = vmatpush.xpose.msra.mxu0 0.0
      %463 = vmatpush.xpose.msra.mxu0 0.0
      %464 = vmatpush.xpose.msra.mxu0 0.0
      %465 = vmatpush.xpose.msra.mxu0 0.0
      %466 = vmatpush.xpose.msra.mxu0 0.0
      %467 = vmatpush.xpose.msra.mxu0 0.0
      %468 = vmatpush.xpose.msra.mxu0 0.0
      %469 = vmatpush.xpose.msra.mxu0 0.0
      %470 = vmatpush.xpose.msra.mxu0 0.0
      %471 = vmatpush.xpose.msra.mxu0 %v452
      %472 = vmatmul.f32.gmra.mxu0 %v428
      %v473 = vpop.f32.mrf.mxu0
      %v474 = vadd.f32 0.0, %v473
      %475 = vdwg.mxu0
      %476 = vmatpush.xpose.msra.mxu0 0.0
      %477 = vmatpush.xpose.msra.mxu0 0.0
      %478 = vmatpush.xpose.msra.mxu0 0.0
      %479 = vmatpush.xpose.msra.mxu0 0.0
      %480 = vmatpush.xpose.msra.mxu0 0.0
      %481 = vmatpush.xpose.msra.mxu0 0.0
      %482 = vmatpush.xpose.msra.mxu0 0.0
      %483 = vmatpush.xpose.msra.mxu0 0.0
      %484 = vmatpush.xpose.msra.mxu0 0.0
      %485 = vmatpush.xpose.msra.mxu0 0.0
      %486 = vmatpush.xpose.msra.mxu0 0.0
      %487 = vmatpush.xpose.msra.mxu0 0.0
      %488 = vmatpush.xpose.msra.mxu0 0.0
      %489 = vmatpush.xpose.msra.mxu0 0.0
      %490 = vmatpush.xpose.msra.mxu0 0.0
      %491 = vmatpush.xpose.msra.mxu0 %v453
      %492 = vmatmul.f32.gmra.mxu0 %v429
      %v493 = vpop.f32.mrf.mxu0
      %v494 = vadd.f32 %v474, %v493
      %495 = vdwg.mxu0
      %v496 = vadd.f32 %v450, %v494
      %497 = vst.msk [vmem:[%s306] sm:$0xf] %vm315, %v496
      %v498 = vperm.slane %v428, 0
      %v499 = vperm.slane %v429, 0
      %v502 = vrot.slane %v499, 4
      %v503 = vsel %vm327, %v498, %v502
      %v505 = vmul.f32 %v312, %v503
      %v506 = vld [vmem:[%s311] sm:$0xf]
      %508 = vst [vmem:[#allocation1] ss:$2 sm:$0xff] %v505
      %v509 = vld.sshfl [vmem:[#allocation1] sm:$0xff pattern:$0x75316420]
      %v510 = vld.sshfl [vmem:[#allocation1 + $0x8] sm:$0xff pattern:$0x75316420]
      %513 = vst [vmem:[#allocation1] ss:$2 sm:$0xff] %v312
      %v514 = vld.sshfl [vmem:[#allocation1] sm:$0xff pattern:$0x75316420]
      %v515 = vld.sshfl [vmem:[#allocation1 + $0x8] sm:$0xff pattern:$0x75316420]
      %518 = vmatpush.xpose.msra.mxu0 0.0
      %519 = vmatpush.xpose.msra.mxu0 0.0
      %520 = vmatpush.xpose.msra.mxu0 0.0
      %521 = vmatpush.xpose.msra.mxu0 0.0
      %522 = vmatpush.xpose.msra.mxu0 0.0
      %523 = vmatpush.xpose.msra.mxu0 0.0
      %524 = vmatpush.xpose.msra.mxu0 0.0
      %525 = vmatpush.xpose.msra.mxu0 0.0
      %526 = vmatpush.xpose.msra.mxu0 0.0
      %527 = vmatpush.xpose.msra.mxu0 0.0
      %528 = vmatpush.xpose.msra.mxu0 0.0
      %529 = vmatpush.xpose.msra.mxu0 0.0
      %530 = vmatpush.xpose.msra.mxu0 0.0
      %531 = vmatpush.xpose.msra.mxu0 0.0
      %532 = vmatpush.xpose.msra.mxu0 0.0
      %533 = vmatpush.xpose.msra.mxu0 %v514
      %534 = vmatmul.f32.gmra.mxu0 %v509
      %v535 = vpop.f32.mrf.mxu0
      %v536 = vadd.f32 0.0, %v535
      %537 = vdwg.mxu0
      %538 = vmatpush.xpose.msra.mxu0 0.0
      %539 = vmatpush.xpose.msra.mxu0 0.0
      %540 = vmatpush.xpose.msra.mxu0 0.0
      %541 = vmatpush.xpose.msra.mxu0 0.0
      %542 = vmatpush.xpose.msra.mxu0 0.0
      %543 = vmatpush.xpose.msra.mxu0 0.0
      %544 = vmatpush.xpose.msra.mxu0 0.0
      %545 = vmatpush.xpose.msra.mxu0 0.0
      %546 = vmatpush.xpose.msra.mxu0 0.0
      %547 = vmatpush.xpose.msra.mxu0 0.0
      %548 = vmatpush.xpose.msra.mxu0 0.0
      %549 = vmatpush.xpose.msra.mxu0 0.0
      %550 = vmatpush.xpose.msra.mxu0 0.0
      %551 = vmatpush.xpose.msra.mxu0 0.0
      %552 = vmatpush.xpose.msra.mxu0 0.0
      %553 = vmatpush.xpose.msra.mxu0 %v515
      %554 = vmatmul.f32.gmra.mxu0 %v510
      %v555 = vpop.f32.mrf.mxu0
      %v556 = vadd.f32 %v536, %v555
      %557 = vdwg.mxu0
      %v558 = vadd.f32 %v506, %v556
      %559 = vst.msk [vmem:[%s311] sm:$0xf] %vm315, %v558
      %v560 = vperm.slane %v428, 1
      %v561 = vperm.slane %v429, 1
      %v564 = vrot.slane %v561, 4
      %v565 = vsel %vm327, %v560, %v564
      %v567 = vmul.f32 %v312, %v565
      %s568 = scalar_lea.vmem %s311, 4
      %v569 = vld [vmem:[%s568] sm:$0xf]
      %571 = vst [vmem:[#allocation1] ss:$2 sm:$0xff] %v567
      %v572 = vld.sshfl [vmem:[#allocation1] sm:$0xff pattern:$0x75316420]
      %v573 = vld.sshfl [vmem:[#allocation1 + $0x8] sm:$0xff pattern:$0x75316420]
      %576 = vst [vmem:[#allocation1] ss:$2 sm:$0xff] %v312
      %v577 = vld.sshfl [vmem:[#allocation1] sm:$0xff pattern:$0x75316420]
      %v578 = vld.sshfl [vmem:[#allocation1 + $0x8] sm:$0xff pattern:$0x75316420]
      %581 = vmatpush.xpose.msra.mxu0 0.0
      %582 = vmatpush.xpose.msra.mxu0 0.0
      %583 = vmatpush.xpose.msra.mxu0 0.0
      %584 = vmatpush.xpose.msra.mxu0 0.0
      %585 = vmatpush.xpose.msra.mxu0 0.0
      %586 = vmatpush.xpose.msra.mxu0 0.0
      %587 = vmatpush.xpose.msra.mxu0 0.0
      %588 = vmatpush.xpose.msra.mxu0 0.0
      %589 = vmatpush.xpose.msra.mxu0 0.0
      %590 = vmatpush.xpose.msra.mxu0 0.0
      %591 = vmatpush.xpose.msra.mxu0 0.0
      %592 = vmatpush.xpose.msra.mxu0 0.0
      %593 = vmatpush.xpose.msra.mxu0 0.0
      %594 = vmatpush.xpose.msra.mxu0 0.0
      %595 = vmatpush.xpose.msra.mxu0 0.0
      %596 = vmatpush.xpose.msra.mxu0 %v577
      %597 = vmatmul.f32.gmra.mxu0 %v572
      %v598 = vpop.f32.mrf.mxu0
      %v599 = vadd.f32 0.0, %v598
      %600 = vdwg.mxu0
      %601 = vmatpush.xpose.msra.mxu0 0.0
      %602 = vmatpush.xpose.msra.mxu0 0.0
      %603 = vmatpush.xpose.msra.mxu0 0.0
      %604 = vmatpush.xpose.msra.mxu0 0.0
      %605 = vmatpush.xpose.msra.mxu0 0.0
      %606 = vmatpush.xpose.msra.mxu0 0.0
      %607 = vmatpush.xpose.msra.mxu0 0.0
      %608 = vmatpush.xpose.msra.mxu0 0.0
      %609 = vmatpush.xpose.msra.mxu0 0.0
      %610 = vmatpush.xpose.msra.mxu0 0.0
      %611 = vmatpush.xpose.msra.mxu0 0.0
      %612 = vmatpush.xpose.msra.mxu0 0.0
      %613 = vmatpush.xpose.msra.mxu0 0.0
      %614 = vmatpush.xpose.msra.mxu0 0.0
      %615 = vmatpush.xpose.msra.mxu0 0.0
      %616 = vmatpush.xpose.msra.mxu0 %v578
      %617 = vmatmul.f32.gmra.mxu0 %v573
      %v618 = vpop.f32.mrf.mxu0
      %v619 = vadd.f32 %v599, %v618
      %620 = vdwg.mxu0
      %v621 = vadd.f32 %v569, %v619
      %622 = vst.msk [vmem:[%s568] sm:$0xf] %vm315, %v621
      %v623 = vperm.slane %v428, 2
      %v624 = vperm.slane %v429, 2
      %v627 = vrot.slane %v624, 4
      %v628 = vsel %vm327, %v623, %v627
      %v630 = vmul.f32 %v312, %v628
      %s631 = scalar_lea.vmem %s311, 8
      %v632 = vld [vmem:[%s631] sm:$0xf]
      %634 = vst [vmem:[#allocation1] ss:$2 sm:$0xff] %v630
      %v635 = vld.sshfl [vmem:[#allocation1] sm:$0xff pattern:$0x75316420]
      %v636 = vld.sshfl [vmem:[#allocation1 + $0x8] sm:$0xff pattern:$0x75316420]
      %639 = vst [vmem:[#allocation1] ss:$2 sm:$0xff] %v312
      %v640 = vld.sshfl [vmem:[#allocation1] sm:$0xff pattern:$0x75316420]
      %v641 = vld.sshfl [vmem:[#allocation1 + $0x8] sm:$0xff pattern:$0x75316420]
      %644 = vmatpush.xpose.msra.mxu0 0.0
      %645 = vmatpush.xpose.msra.mxu0 0.0
      %646 = vmatpush.xpose.msra.mxu0 0.0
      %647 = vmatpush.xpose.msra.mxu0 0.0
      %648 = vmatpush.xpose.msra.mxu0 0.0
      %649 = vmatpush.xpose.msra.mxu0 0.0
      %650 = vmatpush.xpose.msra.mxu0 0.0
      %651 = vmatpush.xpose.msra.mxu0 0.0
      %652 = vmatpush.xpose.msra.mxu0 0.0
      %653 = vmatpush.xpose.msra.mxu0 0.0
      %654 = vmatpush.xpose.msra.mxu0 0.0
      %655 = vmatpush.xpose.msra.mxu0 0.0
      %656 = vmatpush.xpose.msra.mxu0 0.0
      %657 = vmatpush.xpose.msra.mxu0 0.0
      %658 = vmatpush.xpose.msra.mxu0 0.0
      %659 = vmatpush.xpose.msra.mxu0 %v640
      %660 = vmatmul.f32.gmra.mxu0 %v635
      %v661 = vpop.f32.mrf.mxu0
      %v662 = vadd.f32 0.0, %v661
      %663 = vdwg.mxu0
      %664 = vmatpush.xpose.msra.mxu0 0.0
      %665 = vmatpush.xpose.msra.mxu0 0.0
      %666 = vmatpush.xpose.msra.mxu0 0.0
      %667 = vmatpush.xpose.msra.mxu0 0.0
      %668 = vmatpush.xpose.msra.mxu0 0.0
      %669 = vmatpush.xpose.msra.mxu0 0.0
      %670 = vmatpush.xpose.msra.mxu0 0.0
      %671 = vmatpush.xpose.msra.mxu0 0.0
      %672 = vmatpush.xpose.msra.mxu0 0.0
      %673 = vmatpush.xpose.msra.mxu0 0.0
      %674 = vmatpush.xpose.msra.mxu0 0.0
      %675 = vmatpush.xpose.msra.mxu0 0.0
      %676 = vmatpush.xpose.msra.mxu0 0.0
      %677 = vmatpush.xpose.msra.mxu0 0.0
      %678 = vmatpush.xpose.msra.mxu0 0.0
      %679 = vmatpush.xpose.msra.mxu0 %v641
      %680 = vmatmul.f32.gmra.mxu0 %v636
      %v681 = vpop.f32.mrf.mxu0
      %v682 = vadd.f32 %v662, %v681
      %683 = vdwg.mxu0
      %v684 = vadd.f32 %v632, %v682
      %685 = vst.msk [vmem:[%s631] sm:$0xf] %vm315, %v684
      %v686 = vperm.slane %v428, 3
      %v687 = vperm.slane %v429, 3
      %v690 = vrot.slane %v687, 4
      %v691 = vsel %vm327, %v686, %v690
      %v693 = vmul.f32 %v312, %v691
      %s694 = scalar_lea.vmem %s311, 12
      %v695 = vld [vmem:[%s694] sm:$0xf]
      %697 = vst [vmem:[#allocation1] ss:$2 sm:$0xff] %v693
      %v698 = vld.sshfl [vmem:[#allocation1] sm:$0xff pattern:$0x75316420]
      %v699 = vld.sshfl [vmem:[#allocation1 + $0x8] sm:$0xff pattern:$0x75316420]
      %702 = vst [vmem:[#allocation1] ss:$2 sm:$0xff] %v312
      %v703 = vld.sshfl [vmem:[#allocation1] sm:$0xff pattern:$0x75316420]
      %v704 = vld.sshfl [vmem:[#allocation1 + $0x8] sm:$0xff pattern:$0x75316420]
      %707 = vmatpush.xpose.msra.mxu0 0.0
      %708 = vmatpush.xpose.msra.mxu0 0.0
      %709 = vmatpush.xpose.msra.mxu0 0.0
      %710 = vmatpush.xpose.msra.mxu0 0.0
      %711 = vmatpush.xpose.msra.mxu0 0.0
      %712 = vmatpush.xpose.msra.mxu0 0.0
      %713 = vmatpush.xpose.msra.mxu0 0.0
      %714 = vmatpush.xpose.msra.mxu0 0.0
      %715 = vmatpush.xpose.msra.mxu0 0.0
      %716 = vmatpush.xpose.msra.mxu0 0.0
      %717 = vmatpush.xpose.msra.mxu0 0.0
      %718 = vmatpush.xpose.msra.mxu0 0.0
      %719 = vmatpush.xpose.msra.mxu0 0.0
      %720 = vmatpush.xpose.msra.mxu0 0.0
      %721 = vmatpush.xpose.msra.mxu0 0.0
      %722 = vmatpush.xpose.msra.mxu0 %v703
      %723 = vmatmul.f32.gmra.mxu0 %v698
      %v724 = vpop.f32.mrf.mxu0
      %v725 = vadd.f32 0.0, %v724
      %726 = vdwg.mxu0
      %727 = vmatpush.xpose.msra.mxu0 0.0
      %728 = vmatpush.xpose.msra.mxu0 0.0
      %729 = vmatpush.xpose.msra.mxu0 0.0
      %730 = vmatpush.xpose.msra.mxu0 0.0
      %731 = vmatpush.xpose.msra.mxu0 0.0
      %732 = vmatpush.xpose.msra.mxu0 0.0
      %733 = vmatpush.xpose.msra.mxu0 0.0
      %734 = vmatpush.xpose.msra.mxu0 0.0
      %735 = vmatpush.xpose.msra.mxu0 0.0
      %736 = vmatpush.xpose.msra.mxu0 0.0
      %737 = vmatpush.xpose.msra.mxu0 0.0
      %738 = vmatpush.xpose.msra.mxu0 0.0
      %739 = vmatpush.xpose.msra.mxu0 0.0
      %740 = vmatpush.xpose.msra.mxu0 0.0
      %741 = vmatpush.xpose.msra.mxu0 0.0
      %742 = vmatpush.xpose.msra.mxu0 %v704
      %743 = vmatmul.f32.gmra.mxu0 %v699
      %v744 = vpop.f32.mrf.mxu0
      %v745 = vadd.f32 %v725, %v744
      %746 = vdwg.mxu0
      %v747 = vadd.f32 %v695, %v745
      %748 = vst.msk [vmem:[%s694] sm:$0xf] %vm315, %v747
      %s749 = smul.u32 2, %s22
      %p750 = scmp.lt.s32.totalorder %s21, 1
      %s751 = scalar_select %p750, %s21, 1
      %p752 = scmp.lt.s32.totalorder %s749, 1
      %s753 = scalar_select %p752, %s749, 1
      %s754 = smul.addr %s751, 2
      %s755 = sadd.s32 %s753, %s754
      %s756 = scalar_lea.vmem %s2, %s755
      %p757 = scmp.lt.s32.totalorder %s21, 1
      %s758 = scalar_select %p757, %s21, 1
      %s759 = smul.addr %s758, 4
      %s760 = scalar_lea.vmem %s3, %s759
      %p761 = scmp.lt.s32.totalorder %s21, 1
      %s762 = scalar_select %p761, %s21, 1
      %s763 = smul.addr %s762, 4
      %s764 = scalar_lea.vmem %s4, %s763
      %p765 = scmp.lt.s32.totalorder %s21, 1
      %s766 = scalar_select %p765, %s21, 1
      %s767 = smul.addr %s766, 4
      %s768 = smul.addr %s767, 4
      %s769 = scalar_lea.vmem %s5, %s768
      // Predicated region
      $region33: #{forward.4} parent=27 // pred_check
        %p770 = pneg %p103
      $region34: #{forward.4} parent=27 // pred_check_branch
        %772 = sbr.rel (%p770) target = $region36
      $region35: #{forward.4} parent=27 // pred_region
        %s773 = smul.u32 2, %s22
      $region36: #{forward.4} parent=27 // pred_fallthru
        _
      // Predicated region
      $region37: #{forward.4} parent=27 // pred_check
        %p774 = pneg %p129
      $region38: #{forward.4} parent=27 // pred_check_branch
        %776 = sbr.rel (%p774) target = $region40
      $region39: #{forward.4} parent=27 // pred_region
        _
      $region40: #{forward.4} parent=27 // pred_fallthru
        _
      // Predicated region
      $region41: #{forward.4} parent=27 // pred_check
        %p777 = pneg %p155
      $region42: #{forward.4} parent=27 // pred_check_branch
        %779 = sbr.rel (%p777) target = $region44
      $region43: #{forward.4} parent=27 // pred_region
        _
      $region44: #{forward.4} parent=27 // pred_fallthru
        _
      // Predicated region
      $region45: #{forward.4} parent=27 // pred_check
        %p780 = pneg %p181
      $region46: #{forward.4} parent=27 // pred_check_branch
        %782 = sbr.rel (%p780) target = $region48
      $region47: #{forward.4} parent=27 // pred_region
        _
      $region48: #{forward.4} parent=27 // pred_fallthru
        _
    $region28: #{forward.4} parent=5 // pred_fallthru
      _
    %p783 = scmp.le.s32.totalorder 2, %s12
    // Predicated region
    $region49: #{forward.4} parent=5 // pred_check
      %p784 = pneg %p783
    $region50: #{forward.4} parent=5 // pred_check_branch
      %786 = sbr.rel (%p784) target = $region52
    $region51: #{forward.4} parent=5 // pred_region
      %s787 = ssub.s32 %s12, 2
      // Predicated region
      $region53: #{forward.4} parent=51 // pred_check
        %p788 = pneg %p109
      $region54: #{forward.4} parent=51 // pred_check_branch
        %790 = sbr.rel (%p788) target = $region56
      $region55: #{forward.4} parent=51 // pred_region
        %s791 = smul.u32 2, %s24
        %p792 = scmp.lt.s32.totalorder %s23, 1
        %s793 = scalar_select %p792, %s23, 1
        %p794 = scmp.lt.s32.totalorder %s791, 1
        %s795 = scalar_select %p794, %s791, 1
        %s796 = smul.addr %s793, 2
        %s797 = sadd.s32 %s795, %s796
        %s798 = scalar_lea.vmem %s2, %s797
      $region56: #{forward.4} parent=51 // pred_fallthru
        _
      // Predicated region
      $region57: #{forward.4} parent=51 // pred_check
        %p799 = pneg %p135
      $region58: #{forward.4} parent=51 // pred_check_branch
        %801 = sbr.rel (%p799) target = $region60
      $region59: #{forward.4} parent=51 // pred_region
        %p802 = scmp.lt.s32.totalorder %s23, 1
        %s803 = scalar_select %p802, %s23, 1
        %s804 = smul.addr %s803, 4
        %s805 = scalar_lea.vmem %s3, %s804
      $region60: #{forward.4} parent=51 // pred_fallthru
        _
      // Predicated region
      $region61: #{forward.4} parent=51 // pred_check
        %p806 = pneg %p161
      $region62: #{forward.4} parent=51 // pred_check_branch
        %808 = sbr.rel (%p806) target = $region64
      $region63: #{forward.4} parent=51 // pred_region
        %p809 = scmp.lt.s32.totalorder %s23, 1
        %s810 = scalar_select %p809, %s23, 1
        %s811 = smul.addr %s810, 4
        %s812 = scalar_lea.vmem %s4, %s811
      $region64: #{forward.4} parent=51 // pred_fallthru
        _
      // Predicated region
      $region65: #{forward.4} parent=51 // pred_check
        %p813 = pneg %p187
      $region66: #{forward.4} parent=51 // pred_check_branch
        %815 = sbr.rel (%p813) target = $region68
      $region67: #{forward.4} parent=51 // pred_region
        %p816 = scmp.lt.s32.totalorder %s23, 1
        %s817 = scalar_select %p816, %s23, 1
        %s818 = smul.addr %s817, 4
        %s819 = smul.addr %s818, 4
        %s820 = scalar_lea.vmem %s5, %s819
      $region68: #{forward.4} parent=51 // pred_fallthru
        _
    $region52: #{forward.4} parent=5 // pred_fallthru
      _
  $region6: #{forward.4} parent=0 // loop_footer
    %s16 = sadd.s32 1, %s12
  $region7: #{forward.4} parent=0 // loop_footer_branch
    %11 = sbr.rel target = $region3
  $region8: #{forward.4} parent=0 // loop_exit
    _

// kernel: forward.3
$region0: #{forward.3}
  #allocation0 [shape = 'u32[]', space=smem, size = 0x4, offset = 0x4, fixed_abs, tag = 'smem constant byte address 0x4 - core index']
  #allocation1 [shape = 'u32[72,128]{1,0:T(1,128)}', space=vmem, size = 0x9000, scoped, tag = 'internal scratch']
  #allocation2 [shape = 'f32[4,4]{1,0:T(4,128)}', space=vmem, size = 0x800, scoped, tag = 'scratch operand']
  #allocation3 [shape = 'f32[4,1]{1,0:T(4,128)}', space=vmem, size = 0x800, scoped, tag = 'scratch operand']
  #allocation4 [shape = 'f32[4,4]{1,0:T(4,128)}', space=vmem, size = 0x800, scoped, tag = 'scratch operand']
  %s0 = inlined_call_operand.vmem [shape: bf16[2,4,256], index: 0, kind: input, shape index: {}]
  %s1 = inlined_call_operand.vmem [shape: f32[2,4,4], index: 1, kind: input, shape index: {}]
  %s2 = inlined_call_operand.vmem [shape: f32[2,4,4], index: 2, kind: output, shape index: {}]
  %s3 = sld [smem:[#allocation0]]
  $region53: #{forward.3} parent=0
    _
  %s5 = ssub.s32 1, %s3
  %s6 = scalar_select 0, %s5, %s3
  loop: start=0, step=1, limit=22
  $region2: #{forward.3} parent=0 // loop_pre_header
    _
  $region3: #{forward.3} parent=0 // loop_header
    %s8 = sphi 0, %s12
    %p9 = scmp.ge.s32.totalorder %s8, 22
    %s15 = sphi 0, %s34
    %s16 = sphi 0, %s30
    %s17 = sphi 0, %s26
    %s18 = sphi 0, %s15
    %s19 = sphi 0, %s16
    %s20 = sphi 0, %s17
    %s21 = sphi 0, %s18
    %s22 = sphi 0, %s19
    %s23 = sphi 0, %s20
    %s39 = sphi 0, %s41
    %s42 = sphi 0, %s39
    %s43 = sphi 0, %s42
    %s59 = sphi 0, %s43
    %s65 = sphi 0, %s67
    %s68 = sphi 0, %s65
    %s69 = sphi 0, %s68
    %s85 = sphi 0, %s69
    %s91 = sphi 0, %s93
    %s94 = sphi 0, %s91
    %s95 = sphi 0, %s94
    %s111 = sphi 0, %s95
  $region4: #{forward.3} parent=0 // loop_header_branch
    %11 = sbr.rel (%p9) target = $region8
  $region5: #{forward.3} parent=0 // loop_body
    %s13 = ssub.s32 %s8, 1
    %s14 = ssub.s32 %s8, 2
    %s24 = sadd.s32 1, %s17
    %p25 = scmp.ge.s32.totalorder %s24, 1
    %s26 = scalar_select %p25, 0, %s24
    %s27 = sadd.s32 1, %s16
    %s28 = scalar_select %p25, %s27, %s16
    %p29 = scmp.ge.s32.totalorder %s28, 10
    %s30 = scalar_select %p29, 0, %s28
    %s31 = sadd.s32 1, %s15
    %s32 = scalar_select %p29, %s31, %s15
    %p33 = scmp.ge.s32.totalorder %s32, 2
    %s34 = scalar_select %p33, 0, %s32
    %s35 = ssub.s32 %s15, %s34
    %s36 = ssub.s32 %s17, %s26
    %s37 = sor.u32 %s35, %s36
    %p38 = scmp.eq.s32.totalorder %s37, 0
    %s40 = sadd.s32 %s39, 1
    %s41 = scalar_select %p38, %s39, %s40
    %p44 = pneg %p38
    %p45 = scmp.eq.s32.totalorder %s8, 19
    %p46 = por %p44, %p45
    %p47 = scmp.ne.s32.totalorder %s39, %s42
    %p48 = scmp.eq.s32.totalorder %s8, 0
    %p49 = por %p47, %p48
    %p50 = scmp.ne.s32.totalorder %s39, %s42
    %p51 = scmp.eq.s32.totalorder %s13, 19
    %p52 = por %p50, %p51
    %p53 = scmp.ne.s32.totalorder %s42, %s43
    %p54 = scmp.eq.s32.totalorder %s13, 0
    %p55 = por %p53, %p54
    %p56 = scmp.ne.s32.totalorder %s42, %s43
    %p57 = scmp.eq.s32.totalorder %s14, 19
    %p58 = por %p56, %p57
    %p60 = scmp.ne.s32.totalorder %s43, %s59
    %p61 = scmp.eq.s32.totalorder %s14, 0
    %p62 = por %p60, %p61
    %s63 = ssub.s32 %s15, %s34
    %p64 = scmp.eq.s32.totalorder %s63, 0
    %s66 = sadd.s32 %s65, 1
    %s67 = scalar_select %p64, %s65, %s66
    %p70 = pneg %p64
    %p71 = scmp.eq.s32.totalorder %s8, 19
    %p72 = por %p70, %p71
    %p73 = scmp.ne.s32.totalorder %s65, %s68
    %p74 = scmp.eq.s32.totalorder %s8, 0
    %p75 = por %p73, %p74
    %p76 = scmp.ne.s32.totalorder %s65, %s68
    %p77 = scmp.eq.s32.totalorder %s13, 19
    %p78 = por %p76, %p77
    %p79 = scmp.ne.s32.totalorder %s68, %s69
    %p80 = scmp.eq.s32.totalorder %s13, 0
    %p81 = por %p79, %p80
    %p82 = scmp.ne.s32.totalorder %s68, %s69
    %p83 = scmp.eq.s32.totalorder %s14, 19
    %p84 = por %p82, %p83
    %p86 = scmp.ne.s32.totalorder %s69, %s85
    %p87 = scmp.eq.s32.totalorder %s14, 0
    %p88 = por %p86, %p87
    %s89 = ssub.s32 %s15, %s34
    %p90 = scmp.eq.s32.totalorder %s89, 0
    %s92 = sadd.s32 %s91, 1
    %s93 = scalar_select %p90, %s91, %s92
    %p96 = pneg %p90
    %p97 = scmp.eq.s32.totalorder %s8, 19
    %p98 = por %p96, %p97
    %p99 = scmp.ne.s32.totalorder %s91, %s94
    %p100 = scmp.eq.s32.totalorder %s8, 0
    %p101 = por %p99, %p100
    %p102 = scmp.ne.s32.totalorder %s91, %s94
    %p103 = scmp.eq.s32.totalorder %s13, 19
    %p104 = por %p102, %p103
    %p105 = scmp.ne.s32.totalorder %s94, %s95
    %p106 = scmp.eq.s32.totalorder %s13, 0
    %p107 = por %p105, %p106
    %p108 = scmp.ne.s32.totalorder %s94, %s95
    %p109 = scmp.eq.s32.totalorder %s14, 19
    %p110 = por %p108, %p109
    %p112 = scmp.ne.s32.totalorder %s95, %s111
    %p113 = scmp.eq.s32.totalorder %s14, 0
    %p114 = por %p112, %p113
    %p115 = scmp.le.s32.totalorder 1, %s8
    %p116 = scmp.lt.s32.totalorder %s8, 21
    %p117 = pnand %p115, %p116
    %p118 = pneg %p117
    // Predicated region
    $region9: #{forward.3} parent=5 // pred_check
      _
    $region10: #{forward.3} parent=5 // pred_check_branch
      %120 = sbr.rel (%p117) target = $region12
    $region11: #{forward.3} parent=5 // pred_region
      %s121 = ssub.s32 %s8, 1
    $region12: #{forward.3} parent=5 // pred_fallthru
      _
    %p122 = scmp.lt.s32.totalorder %s8, 20
    // Predicated region
    $region13: #{forward.3} parent=5 // pred_check
      %p123 = pneg %p122
    $region14: #{forward.3} parent=5 // pred_check_branch
      %125 = sbr.rel (%p123) target = $region16
    $region15: #{forward.3} parent=5 // pred_region
      // Predicated region
      $region17: #{forward.3} parent=15 // pred_check
        %p126 = pneg %p49
      $region18: #{forward.3} parent=15 // pred_check_branch
        %128 = sbr.rel (%p126) target = $region20
      $region19: #{forward.3} parent=15 // pred_region
        %s129 = smul.u32 2, %s17
        %p130 = scmp.lt.s32.totalorder %s15, 1
        %s131 = scalar_select %p130, %s15, 1
        %p132 = scmp.lt.s32.totalorder %s129, 1
        %s133 = scalar_select %p132, %s129, 1
        %s134 = smul.addr %s131, 2
        %s135 = sadd.s32 %s133, %s134
        %s136 = smul.addr %s135, 2
        %s137 = scalar_lea.vmem %s0, %s136
        %s138 = smul.u32 2, %s17
      $region20: #{forward.3} parent=15 // pred_fallthru
        _
      // Predicated region
      $region21: #{forward.3} parent=15 // pred_check
        %p139 = pneg %p75
      $region22: #{forward.3} parent=15 // pred_check_branch
        %141 = sbr.rel (%p139) target = $region24
      $region23: #{forward.3} parent=15 // pred_region
        %p142 = scmp.lt.s32.totalorder %s15, 1
        %s143 = scalar_select %p142, %s15, 1
        %s144 = smul.addr %s143, 4
        %s145 = scalar_lea.vmem %s1, %s144
      $region24: #{forward.3} parent=15 // pred_fallthru
        _
    $region16: #{forward.3} parent=5 // pred_fallthru
      _
    %p146 = scmp.le.s32.totalorder 1, %s8
    %p147 = scmp.lt.s32.totalorder %s8, 21
    %p148 = pnand %p146, %p147
    %p149 = pneg %p148
    // Predicated region
    $region25: #{forward.3} parent=5 // pred_check
      _
    $region26: #{forward.3} parent=5 // pred_check_branch
      %151 = sbr.rel (%p148) target = $region28
    $region27: #{forward.3} parent=5 // pred_region
      %s152 = ssub.s32 %s8, 1
      %s153 = smul.u32 2, %s20
      %p154 = scmp.lt.s32.totalorder %s18, 1
      %s155 = scalar_select %p154, %s18, 1
      %p156 = scmp.lt.s32.totalorder %s153, 1
      %s157 = scalar_select %p156, %s153, 1
      %s158 = smul.addr %s155, 2
      %s159 = sadd.s32 %s157, %s158
      %s160 = smul.addr %s159, 2
      %s161 = scalar_lea.vmem %s0, %s160
      %p162 = pneg %p55
      %p163 = pneg %p52
      %p164 = scmp.lt.s32.totalorder %s18, 1
      %s165 = scalar_select %p164, %s18, 1
      %s166 = smul.addr %s165, 4
      %s167 = scalar_lea.vmem %s1, %s166
      %p168 = pneg %p81
      %p169 = pneg %p78
      %p170 = pneg %p107
      %p171 = pneg %p104
      %p172 = scmp.lt.s32.totalorder %s18, 1
      %s173 = scalar_select %p172, %s18, 1
      %s174 = smul.addr %s173, 4
      %s175 = scalar_lea.vmem %s2, %s174
      %s176 = smul.u32 2, %s20
      %p177 = scmp.lt.s32.totalorder %s18, 1
      %s178 = scalar_select %p177, %s18, 1
      %p179 = scmp.lt.s32.totalorder %s176, 1
      %s180 = scalar_select %p179, %s176, 1
      %s181 = smul.addr %s178, 2
      %s182 = sadd.s32 %s180, %s181
      %s183 = smul.addr %s182, 2
      %s184 = scalar_lea.vmem %s0, %s183
      %s185 = smul.u32 2, %s20
      %p186 = scmp.lt.s32.totalorder %s18, 1
      %s187 = scalar_select %p186, %s18, 1
      %s188 = smul.addr %s187, 4
      %s189 = scalar_lea.vmem %s1, %s188
      %p190 = scmp.lt.s32.totalorder %s18, 1
      %s191 = scalar_select %p190, %s18, 1
      %s192 = smul.addr %s191, 4
      %s193 = scalar_lea.vmem %s2, %s192
      %p195 = scmp.eq.s32.totalorder %s19, 0
      %p196 = scmp.eq.s32.totalorder %s20, 0
      %p197 = pnand %p195, %p196
      %p198 = pneg %p197
      // Predicated region
      $region29: #{forward.3} parent=27 // pred_check
        _
      $region30: #{forward.3} parent=27 // pred_check_branch
        %200 = sbr.rel (%p197) target = $region32
      $region31: #{forward.3} parent=27 // pred_region
        %v201 = vld [vmem:[%s189] sm:$0xf]
        %vm202 = vcmask 27648
        %203 = vst.msk [vmem:[#allocation2] sm:$0xf] %vm202, %v201
      $region32: #{forward.3} parent=27 // pred_fallthru
        _
      // Predicated region
      $region33: #{forward.3} parent=27 // pred_check
        %p204 = pneg %p196
      $region34: #{forward.3} parent=27 // pred_check_branch
        %206 = sbr.rel (%p204) target = $region36
      $region35: #{forward.3} parent=27 // pred_region
        %vm207 = vcmask 3072
        %208 = vst.msk [vmem:[#allocation3] sm:$0xf] %vm207, 0.0
        %vm209 = vcmask 27648
        %210 = vst.msk [vmem:[#allocation4] sm:$0xf] %vm209, 0.0
      $region36: #{forward.3} parent=27 // pred_fallthru
        _
      %v211 = vld [vmem:[%s184] sm:$0xf]
      %v212 = vld [vmem:[#allocation2] sm:$0xf]
      %v213 = vmul.f32 %v212, %v212
      %vm214 = vcmask 27648
      %v215 = vsel %vm214, %v213, 0.0
      %216 = vadd.xlane.f32.xlu0 %v215
      %v217 = vpop.xlane.xlu0 %216
      %v218 = vpack.c.bf16 %v212, %v212
      %220 = vst [vmem:[#allocation1] ss:$4 sm:$0xff] %v211
      %v221 = vld.sshfl [vmem:[#allocation1] sm:$0xff pattern:$0x73625140]
      %v222 = vld.sshfl [vmem:[#allocation1 + $0x8] sm:$0xff pattern:$0x73625140]
      %vm223 = vcmask 31744
      %v225 = vsel %vm223, %v218, 0
      %vm227 = vcmask 1041408
      %v228 = vsel %vm227, %v221, 0
      %v230 = vsel %vm227, %v222, 0
      %232 = vmatpush.bf16.msra.mxu0 0
      %233 = vmatpush.bf16.msra.mxu0 0
      %234 = vmatpush.bf16.msra.mxu0 0
      %235 = vmatpush.bf16.msra.mxu0 0
      %236 = vmatpush.bf16.msra.mxu0 0
      %237 = vmatpush.bf16.msra.mxu0 0
      %238 = vmatpush.bf16.msra.mxu0 0
      %239 = vmatpush.bf16.msra.mxu0 %v228
      %240 = vmatmul.bf16.gmra.mxu0 %v225
      %v241 = vpop.f32.mrf.mxu0
      %v242 = vadd.f32 0.0, %v241
      %v243 = vpop.f32.mrf.mxu0
      %244 = vdwg.mxu0
      %245 = vmatpush.bf16.msra.mxu0 0
      %246 = vmatpush.bf16.msra.mxu0 0
      %247 = vmatpush.bf16.msra.mxu0 0
      %248 = vmatpush.bf16.msra.mxu0 0
      %249 = vmatpush.bf16.msra.mxu0 0
      %250 = vmatpush.bf16.msra.mxu0 0
      %251 = vmatpush.bf16.msra.mxu0 0
      %252 = vmatpush.bf16.msra.mxu0 %v230
      %253 = vmatmul.bf16.gmra.mxu0 %v225
      %v254 = vpop.f32.mrf.mxu0
      %v255 = vadd.f32 0.0, %v254
      %v256 = vpop.f32.mrf.mxu0
      %257 = vdwg.mxu0
      %v258 = vmul.f32 %v242, 2.0
      %v259 = vmul.f32 %v255, 2.0
      %v260 = vsub.f32 %v217, %v258
      %v261 = vsub.f32 %v217, %v259
      %v262 = vlaneseq
      %v263 = vshrl.u32 %v262, 7
      %vm264 = vcmask 1043456
      %v265 = vsel %vm264, %v260, inf
      %v266 = vrot.slane %v265, 4
      %v267 = vmin.f32 %v265, %v266
      %v268 = vrot.slane %v267, 2
      %v269 = vmin.f32 %v267, %v268
      %v270 = vrot.slane %v269, 1
      %v271 = vmin.f32 %v269, %v270
      %v272 = vsel %vm264, %v261, inf
      %v273 = vrot.slane %v272, 4
      %v274 = vmin.f32 %v272, %v273
      %v275 = vrot.slane %v274, 2
      %v276 = vmin.f32 %v274, %v275
      %v277 = vrot.slane %v276, 1
      %v278 = vmin.f32 %v276, %v277
      %vm279 = vcmp.le.f32.partialorder %v260, %v271
      %vm280 = vcmp.le.f32.partialorder %v261, %v278
      %v281 = vsel %vm279, %v263, 4
      %v282 = vsel %vm280, %v263, 4
      %v283 = vsel %vm264, %v281, 2147483647
      %v284 = vrot.slane %v283, 4
      %vm285 = vcmp.lt.s32.totalorder %v283, %v284
      %v286 = vsel %vm285, %v283, %v284
      %v287 = vrot.slane %v286, 2
      %vm288 = vcmp.lt.s32.totalorder %v286, %v287
      %v289 = vsel %vm288, %v286, %v287
      %v290 = vrot.slane %v289, 1
      %vm291 = vcmp.lt.s32.totalorder %v289, %v290
      %v292 = vsel %vm291, %v289, %v290
      %v293 = vsel %vm264, %v282, 2147483647
      %v294 = vrot.slane %v293, 4
      %vm295 = vcmp.lt.s32.totalorder %v293, %v294
      %v296 = vsel %vm295, %v293, %v294
      %v297 = vrot.slane %v296, 2
      %vm298 = vcmp.lt.s32.totalorder %v296, %v297
      %v299 = vsel %vm298, %v296, %v297
      %v300 = vrot.slane %v299, 1
      %vm301 = vcmp.lt.s32.totalorder %v299, %v300
      %v302 = vsel %vm301, %v299, %v300
      %vm303 = vcmp.eq.s32.totalorder %v263, %v292
      %vm304 = vcmp.eq.s32.totalorder %v263, %v302
      %v305 = vsel %vm303, 1, 0
      %v306 = vsel %vm304, 1, 0
      %v307 = vcvt.s32.f32 %v305
      %v308 = vcvt.s32.f32 %v306
      %v309 = vld [vmem:[#allocation3] sm:$0xf]
      %v310 = vsel %vm264, %v307, 0.0
      %v311 = vsel %vm264, %v308, 0.0
      %v312 = vadd.f32 %v310, %v311
      %313 = vadd.xlane.f32.xlu0 %v312
      %v314 = vpop.xlane.xlu0 %313
      %v315 = vadd.f32 %v309, %v314
      %vm316 = vcmask 3072
      %317 = vst.msk [vmem:[#allocation3] sm:$0xf] %vm316, %v315
      %v318 = vld [vmem:[#allocation4] sm:$0xf]
      %v319 = vpack.c.bf16 %v307, %v307
      %v320 = vpack.c.bf16 %v308, %v308
      %321 = vst [vmem:[#allocation1] ss:$4 sm:$0xff] %v211
      %v322 = vld.sshfl [vmem:[#allocation1] sm:$0xff pattern:$0x73625140]
      %v323 = vld.sshfl [vmem:[#allocation1 + $0x8] sm:$0xff pattern:$0x73625140]
      %326 = vmatpush.bf16.xpose.msra.mxu0 0
      %327 = vmatpush.bf16.xpose.msra.mxu0 0
      %328 = vmatpush.bf16.xpose.msra.mxu0 0
      %329 = vmatpush.bf16.xpose.msra.mxu0 0
      %330 = vmatpush.bf16.xpose.msra.mxu0 0
      %331 = vmatpush.bf16.xpose.msra.mxu0 0
      %332 = vmatpush.bf16.xpose.msra.mxu0 0
      %333 = vmatpush.bf16.xpose.msra.mxu0 %v322
      %334 = vmatmul.bf16.gmra.mxu0 %v319
      %v335 = vpop.f32.mrf.mxu0
      %v336 = vadd.f32 0.0, %v335
      %v337 = vpop.f32.mrf.mxu0
      %338 = vdwg.mxu0
      %339 = vmatpush.bf16.xpose.msra.mxu0 0
      %340 = vmatpush.bf16.xpose.msra.mxu0 0
      %341 = vmatpush.bf16.xpose.msra.mxu0 0
      %342 = vmatpush.bf16.xpose.msra.mxu0 0
      %343 = vmatpush.bf16.xpose.msra.mxu0 0
      %344 = vmatpush.bf16.xpose.msra.mxu0 0
      %345 = vmatpush.bf16.xpose.msra.mxu0 0
      %346 = vmatpush.bf16.xpose.msra.mxu0 %v323
      %347 = vmatmul.bf16.gmra.mxu0 %v320
      %v348 = vpop.f32.mrf.mxu0
      %v349 = vadd.f32 %v336, %v348
      %v350 = vpop.f32.mrf.mxu0
      %351 = vdwg.mxu0
      %v352 = vadd.f32 %v318, %v349
      %353 = vst.msk [vmem:[#allocation4] sm:$0xf] %vm214, %v352
      // Predicated region
      $region37: #{forward.3} parent=27 // pred_check
        %p354 = pneg %p196
      $region38: #{forward.3} parent=27 // pred_check_branch
        %356 = sbr.rel (%p354) target = $region40
      $region39: #{forward.3} parent=27 // pred_region
        %v357 = vld [vmem:[#allocation3] sm:$0xf]
        %v358 = vld [vmem:[#allocation4] sm:$0xf]
        %v359 = vmax.f32 %v357, 1.0
        %361 = vset.pattern.permute.xlu0 0
        %362 = vperm.xlu0 %361, %v359
        %v363 = vpop.permute.xlu0 %362
        %v365 = vrcp.pop %v363
        %v366 = vmul.f32 %v363, %v365
        %v367 = vsub.f32 1.0, %v366
        %v368 = vmul.f32 %v365, %v367
        %v369 = vadd.f32 %v365, %v368
        %vm370 = vweird.f32 %v363
        %vm371 = vweird.f32 %v365
        %vm372 = vmor %vm370, %vm371
        %v373 = vsel %vm372, %v365, %v369
        %v374 = vand.u32 2147483647, %v363
        %vm375 = vcmp.eq.f32.partialorder %v374, 8.507059e+37
        %v376 = vand.u32 %v363, 2147483648
        %v377 = vor.u32 1.1754944e-38, %v376
        %v378 = vsel %vm375, %v377, %v373
        %v379 = vmul.f32 %v358, %v378
        %vm380 = vcmp.gt.f32.partialorder %v357, 0.0
        %v381 = vld [vmem:[#allocation2] sm:$0xf]
        %v382 = vsel %vm380, 1, 0
        %383 = vset.pattern.permute.xlu0 0
        %384 = vperm.xlu0 %383, %v382
        %v385 = vpop.permute.xlu0 %384
        %vm386 = vcmp.eq.s32.totalorder %v385, 1
        %v387 = vsel %vm386, %v379, %v381
        %388 = vst.msk [vmem:[#allocation2] sm:$0xf] %vm214, %v387
        %v389 = vld [vmem:[#allocation2] sm:$0xf]
        %390 = vst.msk [vmem:[%s193] sm:$0xf] %vm214, %v389
      $region40: #{forward.3} parent=27 // pred_fallthru
        _
      %p391 = scmp.lt.s32.totalorder %s18, 1
      %s392 = scalar_select %p391, %s18, 1
      %s393 = smul.addr %s392, 4
      %s394 = scalar_lea.vmem %s2, %s393
      // Predicated region
      $region41: #{forward.3} parent=27 // pred_check
        %p395 = pneg %p104
      $region42: #{forward.3} parent=27 // pred_check_branch
        %397 = sbr.rel (%p395) target = $region44
      $region43: #{forward.3} parent=27 // pred_region
        _
      $region44: #{forward.3} parent=27 // pred_fallthru
        _
    $region28: #{forward.3} parent=5 // pred_fallthru
      _
    %p398 = scmp.le.s32.totalorder 2, %s8
    // Predicated region
    $region45: #{forward.3} parent=5 // pred_check
      %p399 = pneg %p398
    $region46: #{forward.3} parent=5 // pred_check_branch
      %401 = sbr.rel (%p399) target = $region48
    $region47: #{forward.3} parent=5 // pred_region
      %s402 = ssub.s32 %s8, 2
      // Predicated region
      $region49: #{forward.3} parent=47 // pred_check
        %p403 = pneg %p110
      $region50: #{forward.3} parent=47 // pred_check_branch
        %405 = sbr.rel (%p403) target = $region52
      $region51: #{forward.3} parent=47 // pred_region
        %p406 = scmp.lt.s32.totalorder %s21, 1
        %s407 = scalar_select %p406, %s21, 1
        %s408 = smul.addr %s407, 4
        %s409 = scalar_lea.vmem %s2, %s408
      $region52: #{forward.3} parent=47 // pred_fallthru
        _
    $region48: #{forward.3} parent=5 // pred_fallthru
      _
  $region6: #{forward.3} parent=0 // loop_footer
    %s12 = sadd.s32 1, %s8
  $region7: #{forward.3} parent=0 // loop_footer_branch
    %7 = sbr.rel target = $region3
  $region8: #{forward.3} parent=0 // loop_exit
    _

// kernel: custom-call.12
$region0: #{custom-call.12}
  %s0 = inlined_call_operand.vmem [shape: f32[2,4,1,4,4], index: 0, kind: input, shape index: {}]
  %s1 = inlined_call_operand.vmem [shape: f32[2,4,1,4,4], index: 1, kind: output, shape index: {}]
  $region1: #{custom-call.12} parent=0
    #allocation0 [shape = 'u8[4096]{0}', space=vmem, size = 0x1000, scoped, tag = 'operand span for operand 0']
    #allocation1 [shape = 'u8[4096]{0}', space=vmem, size = 0x1000, scoped, tag = 'packed  for operand 0']
    #allocation2 [shape = 'u8[4096]{0}', space=vmem, size = 0x1000, scoped, tag = 'operand span for operand 1']
    #allocation3 [shape = 'u8[4096]{0}', space=vmem, size = 0x1000, scoped, tag = 'packed  for operand 1']
    loop: start=0, step=1, limit=10
    $region2: #{custom-call.12} parent=1 // loop_pre_header
      _
    $region3: #{custom-call.12} parent=1 // loop_header
      %s3 = sphi 0, %s7
      %p4 = scmp.ge.s32.totalorder %s3, 10
      %s10 = sphi 0, %s43
      %s11 = sphi 0, %s39
      %s12 = sphi 0, %s35
      %s13 = sphi 0, %s31
      %s14 = sphi 0, %s27
      %s15 = sphi 0, %s10
      %s16 = sphi 0, %s11
      %s17 = sphi 0, %s12
      %s18 = sphi 0, %s13
      %s19 = sphi 0, %s14
      %s20 = sphi 0, %s15
      %s21 = sphi 0, %s16
      %s22 = sphi 0, %s17
      %s23 = sphi 0, %s18
      %s24 = sphi 0, %s19
    $region4: #{custom-call.12} parent=1 // loop_header_branch
      %6 = sbr.rel (%p4) target = $region8
    $region5: #{custom-call.12} parent=1 // loop_body
      %s8 = ssub.s32 %s3, 1
      %s9 = ssub.s32 %s3, 2
      %s25 = sadd.s32 1, %s14
      %p26 = scmp.ge.s32.totalorder %s25, 1
      %s27 = scalar_select %p26, 0, %s25
      %s28 = sadd.s32 1, %s13
      %s29 = scalar_select %p26, %s28, %s13
      %p30 = scmp.ge.s32.totalorder %s29, 1
      %s31 = scalar_select %p30, 0, %s29
      %s32 = sadd.s32 1, %s12
      %s33 = scalar_select %p30, %s32, %s12
      %p34 = scmp.ge.s32.totalorder %s33, 1
      %s35 = scalar_select %p34, 0, %s33
      %s36 = sadd.s32 1, %s11
      %s37 = scalar_select %p34, %s36, %s11
      %p38 = scmp.ge.s32.totalorder %s37, 4
      %s39 = scalar_select %p38, 0, %s37
      %s40 = sadd.s32 1, %s10
      %s41 = scalar_select %p38, %s40, %s10
      %p42 = scmp.ge.s32.totalorder %s41, 2
      %s43 = scalar_select %p42, 0, %s41
      %p44 = scmp.le.s32.totalorder 1, %s3
      %p45 = scmp.lt.s32.totalorder %s3, 9
      %p46 = pnand %p44, %p45
      %p47 = pneg %p46
      // Predicated region
      $region9: #{custom-call.12} parent=5 // pred_check
        _
      $region10: #{custom-call.12} parent=5 // pred_check_branch
        %49 = sbr.rel (%p46) target = $region12
      $region11: #{custom-call.12} parent=5 // pred_region
        %s50 = ssub.s32 %s3, 1
      $region12: #{custom-call.12} parent=5 // pred_fallthru
        _
      %p51 = scmp.lt.s32.totalorder %s3, 8
      // Predicated region
      $region13: #{custom-call.12} parent=5 // pred_check
        %p52 = pneg %p51
      $region14: #{custom-call.12} parent=5 // pred_check_branch
        %54 = sbr.rel (%p52) target = $region16
      $region15: #{custom-call.12} parent=5 // pred_region
        %s55 = sand.u32 %s3, 1
        %s56 = sand.u32 %s3, 1
        %s57 = smul.addr %s56, 4
        %s58 = scalar_lea.vmem [#allocation1], %s57
        %s59 = sadd.s32 %s14, %s13
        %s60 = sadd.s32 %s59, %s12
        %s61 = sadd.s32 %s60, %s11
        %s62 = smul.addr %s10, 4
        %s63 = sadd.s32 %s61, %s62
        %s64 = smul.addr %s63, 4
        %s65 = scalar_lea.vmem %s0, %s64
        // Predicated region
        $region17: #{custom-call.12} parent=15 // pred_check
          _
        $region18: #{custom-call.12} parent=15 // pred_check_branch
          %67 = sbr.rel (0) target = $region20
        $region19: #{custom-call.12} parent=15 // pred_region
          // Predicated region
          $region21: #{custom-call.12} parent=19 // pred_check
            _
          $region22: #{custom-call.12} parent=19 // pred_check_branch
            %69 = sbr.rel target = $region24
          $region23: #{custom-call.12} parent=19 // pred_region
            // Predicated region
            $region36: #{custom-call.12} parent=23 // pred_check
              _
            $region37: #{custom-call.12} parent=23 // pred_check_branch
              %85 = sbr.rel (0) target = $region39
            $region38: #{custom-call.12} parent=23 // pred_region
              %s87 = ssub.s32 16, 1
              loop: start=0, step=1, limit=1
              $region40: #{custom-call.12} parent=38 // loop_pre_header
                _
              $region41: #{custom-call.12} parent=38 // loop_header
                %s89 = sphi 0, %s93
                %p90 = scmp.ge.s32.totalorder %s89, 1
                %s94 = sphi %s65, %s65
                %s95 = sphi %s58, %s58
              $region42: #{custom-call.12} parent=38 // loop_header_branch
                %92 = sbr.rel (%p90) target = $region46
              $region43: #{custom-call.12} parent=38 // loop_body
                %v96 = vld [vmem:[%s94] sm:%s87]
                %97 = vst [vmem:[%s95] sm:%s87] %v96
              $region44: #{custom-call.12} parent=38 // loop_footer
                %s93 = sadd.s32 1, %s89
              $region45: #{custom-call.12} parent=38 // loop_footer_branch
                %88 = sbr.rel target = $region41
              $region46: #{custom-call.12} parent=38 // loop_exit
                _
            $region39: #{custom-call.12} parent=23 // pred_fallthru
              _
          $region24: #{custom-call.12} parent=19 // pred_fallthru
            _
          // Predicated region
          $region25: #{custom-call.12} parent=19 // pred_check
            _
          $region26: #{custom-call.12} parent=19 // pred_check_branch
            %71 = sbr.rel (0) target = $region28
          $region27: #{custom-call.12} parent=19 // pred_region
            %s73 = ssub.s32 16, 1
            loop: start=0, step=1, limit=1
            $region29: #{custom-call.12} parent=27 // loop_pre_header
              _
            $region30: #{custom-call.12} parent=27 // loop_header
              %s75 = sphi 0, %s79
              %p76 = scmp.ge.s32.totalorder %s75, 1
              %s80 = sphi %s65, %s65
              %s81 = sphi %s58, %s58
            $region31: #{custom-call.12} parent=27 // loop_header_branch
              %78 = sbr.rel (%p76) target = $region35
            $region32: #{custom-call.12} parent=27 // loop_body
              %v82 = vld [vmem:[%s80] sm:%s73]
              %83 = vst [vmem:[%s81] sm:%s73] %v82
            $region33: #{custom-call.12} parent=27 // loop_footer
              %s79 = sadd.s32 1, %s75
            $region34: #{custom-call.12} parent=27 // loop_footer_branch
              %74 = sbr.rel target = $region30
            $region35: #{custom-call.12} parent=27 // loop_exit
              _
          $region28: #{custom-call.12} parent=19 // pred_fallthru
            _
        $region20: #{custom-call.12} parent=15 // pred_fallthru
          _
        %98 = vnop
      $region16: #{custom-call.12} parent=5 // pred_fallthru
        _
      %p99 = scmp.le.s32.totalorder 1, %s3
      %p100 = scmp.lt.s32.totalorder %s3, 9
      %p101 = pnand %p99, %p100
      %p102 = pneg %p101
      // Predicated region
      $region47: #{custom-call.12} parent=5 // pred_check
        _
      $region48: #{custom-call.12} parent=5 // pred_check_branch
        %104 = sbr.rel (%p101) target = $region50
      $region49: #{custom-call.12} parent=5 // pred_region
        #allocation4 [shape = 'f32[4,4]{1,0}', space=vmem, size = 0x1000, scoped, tag = 'rescaled input a']
        %s105 = ssub.s32 %s3, 1
        %s106 = sand.u32 %s8, 1
        %s107 = sand.u32 %s8, 1
        %s108 = smul.addr %s107, 4
        %s109 = scalar_lea.vmem [#allocation1], %s108
        %s110 = sand.u32 %s8, 1
        %s111 = sand.u32 %s8, 1
        %s112 = smul.addr %s111, 4
        %s113 = scalar_lea.vmem [#allocation1], %s112
        %s114 = sand.u32 %s8, 1
        %s115 = sand.u32 %s8, 1
        %s116 = smul.addr %s115, 4
        %s117 = scalar_lea.vmem [#allocation3], %s116
        %s119 = ssub.s32 16, 1
        %v120 = vld [vmem:[%s113] sm:%s119]
        %121 = vst [vmem:[#allocation0] sm:%s119] %v120
        %v122 = vlaneseq
        %v123 = vand.u32 %v122, 127
        %vm124 = vcmp.lt.s32.totalorder %v123, 4
        %v125 = vlaneseq
        %v126 = vshrl.u32 %v125, 7
        %vm128 = vcmp.eq.s32.totalorder %v126, %v123
        %v129 = vld [vmem:[#allocation0] sm:$0xff]
        %v130 = vsel %vm128, %v129, 0.0
        %131 = vadd.xlane.f32.xlu0 %v130
        %v132 = vpop.xlane.xlu0 %131
        %vm133 = vcmp.le.s32.totalorder %v126, %v123
        %vm134 = vmand %vm133, %vm124
        %v135 = vsel %vm134, %v129, 0.0
        %v136 = vrcp.pop %v132
        %v137 = vmul.f32 %v132, %v136
        %v138 = vsub.f32 1.0, %v137
        %v139 = vmul.f32 %v136, %v138
        %v140 = vadd.f32 %v136, %v139
        %vm141 = vweird.f32 %v132
        %vm142 = vweird.f32 %v136
        %vm143 = vmor %vm141, %vm142
        %v144 = vsel %vm143, %v136, %v140
        %v145 = vand.u32 2147483647, %v132
        %vm146 = vcmp.eq.f32.partialorder %v145, 8.507059e+37
        %v147 = vand.u32 %v132, 2147483648
        %v148 = vor.u32 1.1754944e-38, %v147
        %v149 = vsel %vm146, %v148, %v144
        %v150 = vmul.f32 %v135, %v149
        %151 = vst [vmem:[#allocation4] sm:$0xff] %v150
        %v152 = vlaneseq
        %v153 = vand.u32 %v152, 127
        %v154 = vlaneseq
        %v155 = vshrl.u32 %v154, 7
        %vm157 = vcmp.eq.s32.totalorder %v153, %v155
        %v158 = vlaneseq
        %v159 = vand.u32 %v158, 127
        %vm160 = vcmp.eq.s32.totalorder %v159, 3
        %v161 = vsel %vm160, 1.0, -1.0
        %v162 = vsel %vm157, %v161, 0.0
        %s163 = scalar_lea.vmem [#allocation4], 2
        %v164 = vld [vmem:[%s163] ss:$0 sm:$0xff]
        %v165 = vxor.u32 %v164, 2147483648
        %v166 = vlaneseq
        %v167 = vand.u32 %v166, 127
        %vm168 = vcmp.eq.s32.totalorder %v167, 2
        %v169 = vmul.f32 %v165, %v162
        %170 = vadd.xlane.f32.xlu0 %v169
        %v171 = vpop.xlane.xlu0 %170
        %v172 = vsel %vm168, %v171, %v162
        %s173 = scalar_lea.vmem [#allocation4], 1
        %v174 = vld [vmem:[%s173] ss:$0 sm:$0xff]
        %v175 = vxor.u32 %v174, 2147483648
        %v176 = vlaneseq
        %v177 = vand.u32 %v176, 127
        %vm178 = vcmp.eq.s32.totalorder %v177, 1
        %v179 = vmul.f32 %v175, %v172
        %180 = vadd.xlane.f32.xlu0 %v179
        %v181 = vpop.xlane.xlu0 %180
        %v182 = vsel %vm178, %v181, %v172
        %v183 = vld [vmem:[#allocation4] ss:$0 sm:$0xff]
        %v184 = vxor.u32 %v183, 2147483648
        %v185 = vlaneseq
        %v186 = vand.u32 %v185, 127
        %vm187 = vcmp.eq.s32.totalorder %v186, 0
        %v188 = vmul.f32 %v184, %v182
        %189 = vadd.xlane.f32.xlu0 %v188
        %v190 = vpop.xlane.xlu0 %189
        %v191 = vsel %vm187, %v190, %v182
        %v192 = vrcp.pop %v132
        %v193 = vmul.f32 %v132, %v192
        %v194 = vsub.f32 1.0, %v193
        %v195 = vmul.f32 %v192, %v194
        %v196 = vadd.f32 %v192, %v195
        %vm197 = vweird.f32 %v132
        %vm198 = vweird.f32 %v192
        %vm199 = vmor %vm197, %vm198
        %v200 = vsel %vm199, %v192, %v196
        %v201 = vand.u32 2147483647, %v132
        %vm202 = vcmp.eq.f32.partialorder %v201, 8.507059e+37
        %v203 = vand.u32 %v132, 2147483648
        %v204 = vor.u32 1.1754944e-38, %v203
        %v205 = vsel %vm202, %v204, %v200
        %v206 = vmul.f32 %v191, %v205
        %vm207 = vweird.f32 %v132
        %v208 = vsel %vm207, %v191, %v206
        %209 = vst [vmem:[#allocation2] sm:$0xff] %v208
        %s211 = ssub.s32 16, 1
        %v212 = vld [vmem:[#allocation2] sm:%s211]
        %s214 = ssub.s32 16, 1
        %215 = vst [vmem:[%s117] sm:%s214] %v212
        %s216 = sand.u32 %s8, 1
        %s217 = sand.u32 %s8, 1
        %s218 = smul.addr %s217, 4
        %s219 = scalar_lea.vmem [#allocation3], %s218
        %s220 = sadd.s32 %s19, %s18
        %s221 = sadd.s32 %s220, %s17
        %s222 = sadd.s32 %s221, %s16
        %s223 = smul.addr %s15, 4
        %s224 = sadd.s32 %s222, %s223
        %s225 = smul.addr %s224, 4
        %s226 = scalar_lea.vmem %s1, %s225
        // Predicated region
        $region51: #{custom-call.12} parent=49 // pred_check
          _
        $region52: #{custom-call.12} parent=49 // pred_check_branch
          %228 = sbr.rel (0) target = $region54
        $region53: #{custom-call.12} parent=49 // pred_region
          // Predicated region
          $region55: #{custom-call.12} parent=53 // pred_check
            _
          $region56: #{custom-call.12} parent=53 // pred_check_branch
            %230 = sbr.rel target = $region58
          $region57: #{custom-call.12} parent=53 // pred_region
            // Predicated region
            $region70: #{custom-call.12} parent=57 // pred_check
              _
            $region71: #{custom-call.12} parent=57 // pred_check_branch
              %246 = sbr.rel (0) target = $region73
            $region72: #{custom-call.12} parent=57 // pred_region
              %s248 = ssub.s32 16, 1
              loop: start=0, step=1, limit=1
              $region74: #{custom-call.12} parent=72 // loop_pre_header
                _
              $region75: #{custom-call.12} parent=72 // loop_header
                %s250 = sphi 0, %s254
                %p251 = scmp.ge.s32.totalorder %s250, 1
                %s255 = sphi %s219, %s219
                %s256 = sphi %s226, %s226
              $region76: #{custom-call.12} parent=72 // loop_header_branch
                %253 = sbr.rel (%p251) target = $region80
              $region77: #{custom-call.12} parent=72 // loop_body
                %v257 = vld [vmem:[%s255] sm:%s248]
                %258 = vst [vmem:[%s256] sm:%s248] %v257
              $region78: #{custom-call.12} parent=72 // loop_footer
                %s254 = sadd.s32 1, %s250
              $region79: #{custom-call.12} parent=72 // loop_footer_branch
                %249 = sbr.rel target = $region75
              $region80: #{custom-call.12} parent=72 // loop_exit
                _
            $region73: #{custom-call.12} parent=57 // pred_fallthru
              _
          $region58: #{custom-call.12} parent=53 // pred_fallthru
            _
          // Predicated region
          $region59: #{custom-call.12} parent=53 // pred_check
            _
          $region60: #{custom-call.12} parent=53 // pred_check_branch
            %232 = sbr.rel (0) target = $region62
          $region61: #{custom-call.12} parent=53 // pred_region
            %s234 = ssub.s32 16, 1
            loop: start=0, step=1, limit=1
            $region63: #{custom-call.12} parent=61 // loop_pre_header
              _
            $region64: #{custom-call.12} parent=61 // loop_header
              %s236 = sphi 0, %s240
              %p237 = scmp.ge.s32.totalorder %s236, 1
              %s241 = sphi %s219, %s219
              %s242 = sphi %s226, %s226
            $region65: #{custom-call.12} parent=61 // loop_header_branch
              %239 = sbr.rel (%p237) target = $region69
            $region66: #{custom-call.12} parent=61 // loop_body
              %v243 = vld [vmem:[%s241] sm:%s234]
              %244 = vst [vmem:[%s242] sm:%s234] %v243
            $region67: #{custom-call.12} parent=61 // loop_footer
              %s240 = sadd.s32 1, %s236
            $region68: #{custom-call.12} parent=61 // loop_footer_branch
              %235 = sbr.rel target = $region64
            $region69: #{custom-call.12} parent=61 // loop_exit
              _
          $region62: #{custom-call.12} parent=53 // pred_fallthru
            _
        $region54: #{custom-call.12} parent=49 // pred_fallthru
          _
        %259 = vnop
      $region50: #{custom-call.12} parent=5 // pred_fallthru
        _
      %p260 = scmp.le.s32.totalorder 2, %s3
      // Predicated region
      $region81: #{custom-call.12} parent=5 // pred_check
        %p261 = pneg %p260
      $region82: #{custom-call.12} parent=5 // pred_check_branch
        %263 = sbr.rel (%p261) target = $region84
      $region83: #{custom-call.12} parent=5 // pred_region
        %s264 = ssub.s32 %s3, 2
        %s265 = sand.u32 %s9, 1
        %s266 = sand.u32 %s9, 1
        %s267 = smul.addr %s266, 4
        %s268 = scalar_lea.vmem [#allocation3], %s267
      $region84: #{custom-call.12} parent=5 // pred_fallthru
        _
    $region6: #{custom-call.12} parent=1 // loop_footer
      %s7 = sadd.s32 1, %s3
    $region7: #{custom-call.12} parent=1 // loop_footer_branch
      %2 = sbr.rel target = $region3
    $region8: #{custom-call.12} parent=1 // loop_exit
      _

// kernel: forward.5
$region0: #{forward.5}
  #allocation0 [shape = 'u32[]', space=smem, size = 0x4, offset = 0x4, fixed_abs, tag = 'smem constant byte address 0x4 - core index']
  #allocation1 [shape = 'u32[72,128]{1,0:T(1,128)}', space=vmem, size = 0x9000, scoped, tag = 'internal scratch']
  %s0 = inlined_call_operand.vmem [shape: bf16[2,4,256], index: 0, kind: input, shape index: {}]
  %s1 = inlined_call_operand.vmem [shape: f32[2,4,4], index: 1, kind: input, shape index: {}]
  %s2 = inlined_call_operand.vmem [shape: f32[2,4,1], index: 2, kind: input, shape index: {}]
  %s3 = inlined_call_operand.vmem [shape: s32[2,1,256], index: 3, kind: input, shape index: {}]
  %s4 = inlined_call_operand.vmem [shape: f32[2,1,256], index: 4, kind: output, shape index: {}]
  %s5 = sld [smem:[#allocation0]]
  $region49: #{forward.5} parent=0
    _
  %s7 = ssub.s32 1, %s5
  %s8 = scalar_select 0, %s7, %s5
  loop: start=0, step=1, limit=4
  $region2: #{forward.5} parent=0 // loop_pre_header
    _
  $region3: #{forward.5} parent=0 // loop_header
    %s10 = sphi 0, %s14
    %p11 = scmp.ge.s32.totalorder %s10, 4
    %s17 = sphi 0, %s29
    %s18 = sphi 0, %s25
    %s19 = sphi 0, %s17
    %s20 = sphi 0, %s18
    %s21 = sphi 0, %s19
    %s22 = sphi 0, %s20
    %s34 = sphi 0, %s36
    %s37 = sphi 0, %s34
    %s38 = sphi 0, %s37
    %s54 = sphi 0, %s38
    %s60 = sphi 0, %s62
    %s63 = sphi 0, %s60
    %s64 = sphi 0, %s63
    %s80 = sphi 0, %s64
    %s86 = sphi 0, %s88
    %s89 = sphi 0, %s86
    %s90 = sphi 0, %s89
    %s106 = sphi 0, %s90
    %s114 = sphi 0, %s116
    %s117 = sphi 0, %s114
    %s118 = sphi 0, %s117
    %s134 = sphi 0, %s118
    %s142 = sphi 0, %s144
    %s145 = sphi 0, %s142
    %s146 = sphi 0, %s145
    %s162 = sphi 0, %s146
  $region4: #{forward.5} parent=0 // loop_header_branch
    %13 = sbr.rel (%p11) target = $region8
  $region5: #{forward.5} parent=0 // loop_body
    %s15 = ssub.s32 %s10, 1
    %s16 = ssub.s32 %s10, 2
    %s23 = sadd.s32 1, %s18
    %p24 = scmp.ge.s32.totalorder %s23, 1
    %s25 = scalar_select %p24, 0, %s23
    %s26 = sadd.s32 1, %s17
    %s27 = scalar_select %p24, %s26, %s17
    %p28 = scmp.ge.s32.totalorder %s27, 2
    %s29 = scalar_select %p28, 0, %s27
    %s30 = ssub.s32 %s17, %s29
    %s31 = ssub.s32 %s18, %s25
    %s32 = sor.u32 %s30, %s31
    %p33 = scmp.eq.s32.totalorder %s32, 0
    %s35 = sadd.s32 %s34, 1
    %s36 = scalar_select %p33, %s34, %s35
    %p39 = pneg %p33
    %p40 = scmp.eq.s32.totalorder %s10, 1
    %p41 = por %p39, %p40
    %p42 = scmp.ne.s32.totalorder %s34, %s37
    %p43 = scmp.eq.s32.totalorder %s10, 0
    %p44 = por %p42, %p43
    %p45 = scmp.ne.s32.totalorder %s34, %s37
    %p46 = scmp.eq.s32.totalorder %s15, 1
    %p47 = por %p45, %p46
    %p48 = scmp.ne.s32.totalorder %s37, %s38
    %p49 = scmp.eq.s32.totalorder %s15, 0
    %p50 = por %p48, %p49
    %p51 = scmp.ne.s32.totalorder %s37, %s38
    %p52 = scmp.eq.s32.totalorder %s16, 1
    %p53 = por %p51, %p52
    %p55 = scmp.ne.s32.totalorder %s38, %s54
    %p56 = scmp.eq.s32.totalorder %s16, 0
    %p57 = por %p55, %p56
    %s58 = ssub.s32 %s17, %s29
    %p59 = scmp.eq.s32.totalorder %s58, 0
    %s61 = sadd.s32 %s60, 1
    %s62 = scalar_select %p59, %s60, %s61
    %p65 = pneg %p59
    %p66 = scmp.eq.s32.totalorder %s10, 1
    %p67 = por %p65, %p66
    %p68 = scmp.ne.s32.totalorder %s60, %s63
    %p69 = scmp.eq.s32.totalorder %s10, 0
    %p70 = por %p68, %p69
    %p71 = scmp.ne.s32.totalorder %s60, %s63
    %p72 = scmp.eq.s32.totalorder %s15, 1
    %p73 = por %p71, %p72
    %p74 = scmp.ne.s32.totalorder %s63, %s64
    %p75 = scmp.eq.s32.totalorder %s15, 0
    %p76 = por %p74, %p75
    %p77 = scmp.ne.s32.totalorder %s63, %s64
    %p78 = scmp.eq.s32.totalorder %s16, 1
    %p79 = por %p77, %p78
    %p81 = scmp.ne.s32.totalorder %s64, %s80
    %p82 = scmp.eq.s32.totalorder %s16, 0
    %p83 = por %p81, %p82
    %s84 = ssub.s32 %s17, %s29
    %p85 = scmp.eq.s32.totalorder %s84, 0
    %s87 = sadd.s32 %s86, 1
    %s88 = scalar_select %p85, %s86, %s87
    %p91 = pneg %p85
    %p92 = scmp.eq.s32.totalorder %s10, 1
    %p93 = por %p91, %p92
    %p94 = scmp.ne.s32.totalorder %s86, %s89
    %p95 = scmp.eq.s32.totalorder %s10, 0
    %p96 = por %p94, %p95
    %p97 = scmp.ne.s32.totalorder %s86, %s89
    %p98 = scmp.eq.s32.totalorder %s15, 1
    %p99 = por %p97, %p98
    %p100 = scmp.ne.s32.totalorder %s89, %s90
    %p101 = scmp.eq.s32.totalorder %s15, 0
    %p102 = por %p100, %p101
    %p103 = scmp.ne.s32.totalorder %s89, %s90
    %p104 = scmp.eq.s32.totalorder %s16, 1
    %p105 = por %p103, %p104
    %p107 = scmp.ne.s32.totalorder %s90, %s106
    %p108 = scmp.eq.s32.totalorder %s16, 0
    %p109 = por %p107, %p108
    %s110 = ssub.s32 %s17, %s29
    %s111 = ssub.s32 %s18, %s25
    %s112 = sor.u32 %s110, %s111
    %p113 = scmp.eq.s32.totalorder %s112, 0
    %s115 = sadd.s32 %s114, 1
    %s116 = scalar_select %p113, %s114, %s115
    %p119 = pneg %p113
    %p120 = scmp.eq.s32.totalorder %s10, 1
    %p121 = por %p119, %p120
    %p122 = scmp.ne.s32.totalorder %s114, %s117
    %p123 = scmp.eq.s32.totalorder %s10, 0
    %p124 = por %p122, %p123
    %p125 = scmp.ne.s32.totalorder %s114, %s117
    %p126 = scmp.eq.s32.totalorder %s15, 1
    %p127 = por %p125, %p126
    %p128 = scmp.ne.s32.totalorder %s117, %s118
    %p129 = scmp.eq.s32.totalorder %s15, 0
    %p130 = por %p128, %p129
    %p131 = scmp.ne.s32.totalorder %s117, %s118
    %p132 = scmp.eq.s32.totalorder %s16, 1
    %p133 = por %p131, %p132
    %p135 = scmp.ne.s32.totalorder %s118, %s134
    %p136 = scmp.eq.s32.totalorder %s16, 0
    %p137 = por %p135, %p136
    %s138 = ssub.s32 %s17, %s29
    %s139 = ssub.s32 %s18, %s25
    %s140 = sor.u32 %s138, %s139
    %p141 = scmp.eq.s32.totalorder %s140, 0
    %s143 = sadd.s32 %s142, 1
    %s144 = scalar_select %p141, %s142, %s143
    %p147 = pneg %p141
    %p148 = scmp.eq.s32.totalorder %s10, 1
    %p149 = por %p147, %p148
    %p150 = scmp.ne.s32.totalorder %s142, %s145
    %p151 = scmp.eq.s32.totalorder %s10, 0
    %p152 = por %p150, %p151
    %p153 = scmp.ne.s32.totalorder %s142, %s145
    %p154 = scmp.eq.s32.totalorder %s15, 1
    %p155 = por %p153, %p154
    %p156 = scmp.ne.s32.totalorder %s145, %s146
    %p157 = scmp.eq.s32.totalorder %s15, 0
    %p158 = por %p156, %p157
    %p159 = scmp.ne.s32.totalorder %s145, %s146
    %p160 = scmp.eq.s32.totalorder %s16, 1
    %p161 = por %p159, %p160
    %p163 = scmp.ne.s32.totalorder %s146, %s162
    %p164 = scmp.eq.s32.totalorder %s16, 0
    %p165 = por %p163, %p164
    %p166 = scmp.le.s32.totalorder 1, %s10
    %p167 = scmp.lt.s32.totalorder %s10, 3
    %p168 = pnand %p166, %p167
    %p169 = pneg %p168
    // Predicated region
    $region9: #{forward.5} parent=5 // pred_check
      _
    $region10: #{forward.5} parent=5 // pred_check_branch
      %171 = sbr.rel (%p168) target = $region12
    $region11: #{forward.5} parent=5 // pred_region
      %s172 = ssub.s32 %s10, 1
    $region12: #{forward.5} parent=5 // pred_fallthru
      _
    %p173 = scmp.lt.s32.totalorder %s10, 2
    // Predicated region
    $region13: #{forward.5} parent=5 // pred_check
      %p174 = pneg %p173
    $region14: #{forward.5} parent=5 // pred_check_branch
      %176 = sbr.rel (%p174) target = $region16
    $region15: #{forward.5} parent=5 // pred_region
      // Predicated region
      $region17: #{forward.5} parent=15 // pred_check
        %p177 = pneg %p44
      $region18: #{forward.5} parent=15 // pred_check_branch
        %179 = sbr.rel (%p177) target = $region20
      $region19: #{forward.5} parent=15 // pred_region
        %s180 = smul.u32 2, %s18
        %p181 = scmp.lt.s32.totalorder %s17, 1
        %s182 = scalar_select %p181, %s17, 1
        %p183 = scmp.lt.s32.totalorder %s180, 1
        %s184 = scalar_select %p183, %s180, 1
        %s185 = smul.addr %s182, 2
        %s186 = sadd.s32 %s184, %s185
        %s187 = smul.addr %s186, 2
        %s188 = scalar_lea.vmem %s0, %s187
        %s189 = smul.u32 2, %s18
      $region20: #{forward.5} parent=15 // pred_fallthru
        _
      // Predicated region
      $region21: #{forward.5} parent=15 // pred_check
        %p190 = pneg %p70
      $region22: #{forward.5} parent=15 // pred_check_branch
        %192 = sbr.rel (%p190) target = $region24
      $region23: #{forward.5} parent=15 // pred_region
        %p193 = scmp.lt.s32.totalorder %s17, 1
        %s194 = scalar_select %p193, %s17, 1
        %s195 = smul.addr %s194, 4
        %s196 = scalar_lea.vmem %s1, %s195
      $region24: #{forward.5} parent=15 // pred_fallthru
        _
      // Predicated region
      $region25: #{forward.5} parent=15 // pred_check
        %p197 = pneg %p96
      $region26: #{forward.5} parent=15 // pred_check_branch
        %199 = sbr.rel (%p197) target = $region28
      $region27: #{forward.5} parent=15 // pred_region
        %p200 = scmp.lt.s32.totalorder %s17, 1
        %s201 = scalar_select %p200, %s17, 1
        %s202 = smul.addr %s201, 4
        %s203 = scalar_lea.vmem %s2, %s202
      $region28: #{forward.5} parent=15 // pred_fallthru
        _
      // Predicated region
      $region29: #{forward.5} parent=15 // pred_check
        %p204 = pneg %p124
      $region30: #{forward.5} parent=15 // pred_check_branch
        %206 = sbr.rel (%p204) target = $region32
      $region31: #{forward.5} parent=15 // pred_region
        %s207 = smul.u32 2, %s18
        %p208 = scmp.lt.s32.totalorder %s17, 1
        %s209 = scalar_select %p208, %s17, 1
        %p210 = scmp.lt.s32.totalorder %s207, 1
        %s211 = scalar_select %p210, %s207, 1
        %s212 = smul.addr %s209, 2
        %s213 = sadd.s32 %s211, %s212
        %s214 = scalar_lea.vmem %s3, %s213
        %s215 = smul.u32 2, %s18
      $region32: #{forward.5} parent=15 // pred_fallthru
        _
    $region16: #{forward.5} parent=5 // pred_fallthru
      _
    %p216 = scmp.le.s32.totalorder 1, %s10
    %p217 = scmp.lt.s32.totalorder %s10, 3
    %p218 = pnand %p216, %p217
    %p219 = pneg %p218
    // Predicated region
    $region33: #{forward.5} parent=5 // pred_check
      _
    $region34: #{forward.5} parent=5 // pred_check_branch
      %221 = sbr.rel (%p218) target = $region36
    $region35: #{forward.5} parent=5 // pred_region
      %s222 = ssub.s32 %s10, 1
      %s223 = smul.u32 2, %s20
      %p224 = scmp.lt.s32.totalorder %s19, 1
      %s225 = scalar_select %p224, %s19, 1
      %p226 = scmp.lt.s32.totalorder %s223, 1
      %s227 = scalar_select %p226, %s223, 1
      %s228 = smul.addr %s225, 2
      %s229 = sadd.s32 %s227, %s228
      %s230 = smul.addr %s229, 2
      %s231 = scalar_lea.vmem %s0, %s230
      %p232 = pneg %p50
      %p233 = pneg %p47
      %p234 = scmp.lt.s32.totalorder %s19, 1
      %s235 = scalar_select %p234, %s19, 1
      %s236 = smul.addr %s235, 4
      %s237 = scalar_lea.vmem %s1, %s236
      %p238 = pneg %p76
      %p239 = pneg %p73
      %p240 = scmp.lt.s32.totalorder %s19, 1
      %s241 = scalar_select %p240, %s19, 1
      %s242 = smul.addr %s241, 4
      %s243 = scalar_lea.vmem %s2, %s242
      %p244 = pneg %p102
      %p245 = pneg %p99
      %s246 = smul.u32 2, %s20
      %p247 = scmp.lt.s32.totalorder %s19, 1
      %s248 = scalar_select %p247, %s19, 1
      %p249 = scmp.lt.s32.totalorder %s246, 1
      %s250 = scalar_select %p249, %s246, 1
      %s251 = smul.addr %s248, 2
      %s252 = sadd.s32 %s250, %s251
      %s253 = scalar_lea.vmem %s3, %s252
      %p254 = pneg %p130
      %p255 = pneg %p127
      %p256 = pneg %p158
      %p257 = pneg %p155
      %s258 = smul.u32 2, %s20
      %p259 = scmp.lt.s32.totalorder %s19, 1
      %s260 = scalar_select %p259, %s19, 1
      %p261 = scmp.lt.s32.totalorder %s258, 1
      %s262 = scalar_select %p261, %s258, 1
      %s263 = smul.addr %s260, 2
      %s264 = sadd.s32 %s262, %s263
      %s265 = scalar_lea.vmem %s4, %s264
      %s266 = smul.u32 2, %s20
      %p267 = scmp.lt.s32.totalorder %s19, 1
      %s268 = scalar_select %p267, %s19, 1
      %p269 = scmp.lt.s32.totalorder %s266, 1
      %s270 = scalar_select %p269, %s266, 1
      %s271 = smul.addr %s268, 2
      %s272 = sadd.s32 %s270, %s271
      %s273 = smul.addr %s272, 2
      %s274 = scalar_lea.vmem %s0, %s273
      %s275 = smul.u32 2, %s20
      %p276 = scmp.lt.s32.totalorder %s19, 1
      %s277 = scalar_select %p276, %s19, 1
      %s278 = smul.addr %s277, 4
      %s279 = scalar_lea.vmem %s1, %s278
      %p280 = scmp.lt.s32.totalorder %s19, 1
      %s281 = scalar_select %p280, %s19, 1
      %s282 = smul.addr %s281, 4
      %s283 = scalar_lea.vmem %s2, %s282
      %s284 = smul.u32 2, %s20
      %p285 = scmp.lt.s32.totalorder %s19, 1
      %s286 = scalar_select %p285, %s19, 1
      %p287 = scmp.lt.s32.totalorder %s284, 1
      %s288 = scalar_select %p287, %s284, 1
      %s289 = smul.addr %s286, 2
      %s290 = sadd.s32 %s288, %s289
      %s291 = scalar_lea.vmem %s3, %s290
      %s292 = smul.u32 2, %s20
      %s293 = smul.u32 2, %s20
      %p294 = scmp.lt.s32.totalorder %s19, 1
      %s295 = scalar_select %p294, %s19, 1
      %p296 = scmp.lt.s32.totalorder %s293, 1
      %s297 = scalar_select %p296, %s293, 1
      %s298 = smul.addr %s295, 2
      %s299 = sadd.s32 %s297, %s298
      %s300 = scalar_lea.vmem %s4, %s299
      %s301 = smul.u32 2, %s20
      %v303 = vld [vmem:[%s274] sm:$0xf]
      %v304 = vld [vmem:[%s279] sm:$0xf]
      %v305 = vpack.c.bf16 %v304, %v304
      %v306 = vld [vmem:[%s283] sm:$0xf]
      %v307 = vld [vmem:[%s291] sm:$0x3]
      %309 = vst [vmem:[#allocation1] ss:$4 sm:$0xff] %v303
      %v310 = vld.sshfl [vmem:[#allocation1] sm:$0xff pattern:$0x73625140]
      %v311 = vld.sshfl [vmem:[#allocation1 + $0x8] sm:$0xff pattern:$0x73625140]
      %vm312 = vcmask 31744
      %v314 = vsel %vm312, %v305, 0
      %vm316 = vcmask 1041408
      %v317 = vsel %vm316, %v310, 0
      %v319 = vsel %vm316, %v311, 0
      %321 = vmatpush.bf16.msra.mxu0 0
      %322 = vmatpush.bf16.msra.mxu0 0
      %323 = vmatpush.bf16.msra.mxu0 0
      %324 = vmatpush.bf16.msra.mxu0 0
      %325 = vmatpush.bf16.msra.mxu0 0
      %326 = vmatpush.bf16.msra.mxu0 0
      %327 = vmatpush.bf16.msra.mxu0 0
      %328 = vmatpush.bf16.msra.mxu0 %v317
      %329 = vmatmul.bf16.gmra.mxu0 %v314
      %v330 = vpop.f32.mrf.mxu0
      %v331 = vadd.f32 0.0, %v330
      %v332 = vpop.f32.mrf.mxu0
      %333 = vdwg.mxu0
      %334 = vmatpush.bf16.msra.mxu0 0
      %335 = vmatpush.bf16.msra.mxu0 0
      %336 = vmatpush.bf16.msra.mxu0 0
      %337 = vmatpush.bf16.msra.mxu0 0
      %338 = vmatpush.bf16.msra.mxu0 0
      %339 = vmatpush.bf16.msra.mxu0 0
      %340 = vmatpush.bf16.msra.mxu0 0
      %341 = vmatpush.bf16.msra.mxu0 %v319
      %342 = vmatmul.bf16.gmra.mxu0 %v314
      %v343 = vpop.f32.mrf.mxu0
      %v344 = vadd.f32 0.0, %v343
      %v345 = vpop.f32.mrf.mxu0
      %346 = vdwg.mxu0
      %348 = vset.pattern.permute.xlu0 0
      %349 = vperm.xlu0 %348, %v306
      %v350 = vpop.permute.xlu0 %349
      %v352 = vsub.f32 %v331, %v350
      %v353 = vsub.f32 %v344, %v350
      %v354 = vlaneseq
      %v355 = vshrl.u32 %v354, 7
      %v356 = vperm.slane %v307, 0
      %v357 = vperm.slane %v307, 1
      %vm358 = vcmp.eq.s32.totalorder %v355, %v356
      %vm359 = vcmp.eq.s32.totalorder %v355, %v357
      %v360 = vsel %vm358, 1, 0
      %v361 = vsel %vm359, 1, 0
      %v362 = vcvt.s32.f32 %v360
      %v363 = vcvt.s32.f32 %v361
      %v364 = vmul.f32 %v362, %v352
      %v365 = vmul.f32 %v363, %v353
      %vm366 = vcmask 1043456
      %v367 = vsel %vm366, %v364, 0.0
      %v368 = vrot.slane %v367, 4
      %v369 = vadd.f32 %v367, %v368
      %v370 = vrot.slane %v369, 2
      %v371 = vadd.f32 %v369, %v370
      %v372 = vrot.slane %v371, 1
      %v373 = vadd.f32 %v371, %v372
      %v374 = vsel %vm366, %v365, 0.0
      %v375 = vrot.slane %v374, 4
      %v376 = vadd.f32 %v374, %v375
      %v377 = vrot.slane %v376, 2
      %v378 = vadd.f32 %v376, %v377
      %v379 = vrot.slane %v378, 1
      %v380 = vadd.f32 %v378, %v379
      %v383 = vrot.slane %v380, 7
      %vm384 = vcmask 1040384
      %v385 = vsel %vm384, %v373, %v383
      %v387 = vlaneseq
      %vm388 = vcmp.ge.s32.totalorder %v387, 0
      %vm389 = vcmp.lt.s32.totalorder %v387, 256
      %vm390 = vmand %vm388, %vm389
      %391 = vst.msk [vmem:[%s300] sm:$0x3] %vm390, %v385
      %s392 = smul.u32 2, %s20
      %p393 = scmp.lt.s32.totalorder %s19, 1
      %s394 = scalar_select %p393, %s19, 1
      %p395 = scmp.lt.s32.totalorder %s392, 1
      %s396 = scalar_select %p395, %s392, 1
      %s397 = smul.addr %s394, 2
      %s398 = sadd.s32 %s396, %s397
      %s399 = scalar_lea.vmem %s4, %s398
      // Predicated region
      $region37: #{forward.5} parent=35 // pred_check
        %p400 = pneg %p155
      $region38: #{forward.5} parent=35 // pred_check_branch
        %402 = sbr.rel (%p400) target = $region40
      $region39: #{forward.5} parent=35 // pred_region
        %s403 = smul.u32 2, %s20
      $region40: #{forward.5} parent=35 // pred_fallthru
        _
    $region36: #{forward.5} parent=5 // pred_fallthru
      _
    %p404 = scmp.le.s32.totalorder 2, %s10
    // Predicated region
    $region41: #{forward.5} parent=5 // pred_check
      %p405 = pneg %p404
    $region42: #{forward.5} parent=5 // pred_check_branch
      %407 = sbr.rel (%p405) target = $region44
    $region43: #{forward.5} parent=5 // pred_region
      %s408 = ssub.s32 %s10, 2
      // Predicated region
      $region45: #{forward.5} parent=43 // pred_check
        %p409 = pneg %p161
      $region46: #{forward.5} parent=43 // pred_check_branch
        %411 = sbr.rel (%p409) target = $region48
      $region47: #{forward.5} parent=43 // pred_region
        %s412 = smul.u32 2, %s22
        %p413 = scmp.lt.s32.totalorder %s21, 1
        %s414 = scalar_select %p413, %s21, 1
        %p415 = scmp.lt.s32.totalorder %s412, 1
        %s416 = scalar_select %p415, %s412, 1
        %s417 = smul.addr %s414, 2
        %s418 = sadd.s32 %s416, %s417
        %s419 = scalar_lea.vmem %s4, %s418
      $region48: #{forward.5} parent=43 // pred_fallthru
        _
    $region44: #{forward.5} parent=5 // pred_fallthru
      _
  $region6: #{forward.5} parent=0 // loop_footer
    %s14 = sadd.s32 1, %s10
  $region7: #{forward.5} parent=0 // loop_footer_branch
    %9 = sbr.rel target = $region3
  $region8: #{forward.5} parent=0 // loop_exit
    _

</llo_original>
